<compile_context>
chip_gen: v7x
topology: tpu7x:2x2x1
jax: 0.10.0
libtpu: 0.0.40
codegen_flags: <defaults>
</compile_context>

<pallas_src>
import jax
import jax.numpy as jnp
from jax import lax
from jax.experimental import pallas as pl
from jax.experimental.pallas import tpu as pltpu


# ---------------------------------------------------------------------------
# Static network geometry
# ---------------------------------------------------------------------------
_H_IN, _W_IN = 28, 28            # conv1 input
_OH1, _OW1 = 24, 24              # conv1 output
_HP, _WP = 12, 12                # after 2x2 max-pool
_OH2, _OW2 = 10, 10              # conv2 output
_C1, _C2 = 10, 20                # conv channel counts
_LANES1 = _OW1 * _C1             # 240 : conv1 slab lane width, lanes = (w, c)
_LSTRIDE = 2 * _C1               # 20  : lane stride of one pooled-W position
_LANESP = (_WP - 1) * _LSTRIDE + _C1   # 230 : pooled slab lane width (junk-interleaved)
_LANES2 = _OW2 * _C2             # 200 : conv2 slab lane width, lanes = (w, c)
_HID = 500
_CLS = 10


# ---------------------------------------------------------------------------
# Host-side (one-time) weight preparation
# ---------------------------------------------------------------------------
def _conv1_banded(w_oihw):
    """(10,1,5,5) OIHW -> (5, 28, 240) banded matrices T with
       T[kh, ow+kw, ow*10+co] = w[co, 0, kh, kw]."""
    w = jnp.transpose(w_oihw, (2, 3, 1, 0)).astype(jnp.float32)   # HWIO (5,5,1,10)
    KH, KW, _, Cout = w.shape
    OW = _W_IN - KW + 1
    T = jnp.zeros((KH, _W_IN, OW, Cout), jnp.float32)
    ow = jnp.arange(OW)
    for kh in range(KH):
        for kw in range(KW):
            T = T.at[kh, ow + kw, ow].add(w[kh, kw, 0])
    return T.reshape(KH, _W_IN, OW * Cout)


def _conv2_banded(w_oihw):
    """(20,10,3,3) OIHW -> (3, 230, 200) banded matrices over the
       junk-interleaved pooled slab: input lane r encodes
       (w_in = r // 20, ci = r % 20); lanes with r % 20 >= 10 are junk and
       get all-zero weight rows (so they never contribute)."""
    w = jnp.transpose(w_oihw, (2, 3, 1, 0)).astype(jnp.float32)   # HWIO (3,3,10,20)
    KH, KW, Cin, Cout = w.shape
    OW = _WP - KW + 1                                             # 10
    T = jnp.zeros((KH, _WP, OW, _LSTRIDE, Cout), jnp.float32)
    ow = jnp.arange(OW)
    for kh in range(KH):
        for kw in range(KW):
            wpad = jnp.zeros((_LSTRIDE, Cout), jnp.float32).at[:Cin].set(w[kh, kw])
            T = T.at[kh, ow + kw, ow].add(wpad)
    T = jnp.transpose(T, (0, 1, 3, 2, 4))                          # (KH, W, 20, OW, Cout)
    return T.reshape(KH, _WP * _LSTRIDE, OW * Cout)[:, :_LANESP, :]


def pack_params(p):
    """Convert PyTorch-layout params (OIHW conv, (out,in) fc) into the
       kernel's lane-dense layouts.  One-time host/trace-side cost."""
    # fc1: fold the NCHW flatten (index = c*100 + h*10 + w) into the weight.
    fc1 = jnp.transpose(p["fc1_w"]).astype(jnp.float32)   # (2000, 500), row = c*100+h*10+w
    fc1 = fc1.reshape(_C2, _OH2, _OW2, _HID)              # (c, h, w, u)
    fc1 = jnp.transpose(fc1, (1, 2, 0, 3))                # (h, w, c, u)
    fc1 = fc1.reshape(_OH2, _OW2 * _C2, _HID)             # (h, w*20 + c, u)
    return {
        "w1t": _conv1_banded(p["conv1_w"]),                         # (5, 28, 240)
        "b1t": jnp.tile(p["conv1_b"], _OW1).reshape(1, _LANES1),    # (1, 240)
        "w2t": _conv2_banded(p["conv2_w"]),                         # (3, 230, 200)
        "b2t": jnp.tile(p["conv2_b"], _OW2).reshape(1, _LANES2),    # (1, 200)
        "fc1_w": fc1,                                               # (10, 200, 500)
        "fc1_b": p["fc1_b"].reshape(1, _HID).astype(jnp.float32),
        "fc2_w": jnp.transpose(p["fc2_w"]).astype(jnp.float32),     # (500, 10)
        "fc2_b": p["fc2_b"].reshape(1, _CLS).astype(jnp.float32),
    }


# ---------------------------------------------------------------------------
# The fused kernel
# ---------------------------------------------------------------------------
def _net_fused_kernel(x_ref, w1t_ref, b1t_ref, w2t_ref, b2t_ref,
                      fc1w_ref, fc1b_ref, fc2w_ref, fc2b_ref, o_ref):
    x = x_ref[...]                                       # (TB, 28, 28) f32
    tb = x.shape[0]

    # conv1 (5x5, 1->10) + bias + relu : 5 banded matmuls, K=28, N=240.
    acc1 = jnp.zeros((tb * _OH1, _LANES1), jnp.float32)
    for kh in range(5):
        rows = x[:, kh:kh + _OH1, :].reshape(tb * _OH1, _W_IN)
        acc1 = acc1 + jnp.dot(rows, w1t_ref[kh],
                              preferred_element_type=jnp.float32)
    h1 = jnp.maximum(acc1 + b1t_ref[...], 0.0)           # rows=(b,h), lanes=(w,c)

    # 2x2 max-pool: H via row-pair max, W via shifted-lane max.  The W step
    # leaves junk in lanes 20j+10 .. 20j+19; those are masked by the zero
    # rows of the conv2 banded weights, so no lane compaction is needed.
    h1 = h1.reshape(tb, _HP, 2, _LANES1)
    hh = jnp.maximum(h1[:, :, 0, :], h1[:, :, 1, :])     # (TB, 12, 240)
    hp = jnp.maximum(hh[:, :, 0:_LANESP],
                     hh[:, :, _C1:_C1 + _LANESP])        # (TB, 12, 230)

    # conv2 (3x3, 10->20) + bias + relu : 3 banded matmuls, K=230, N=200.
    acc2 = jnp.zeros((tb * _OH2, _LANES2), jnp.float32)
    for kh in range(3):
        rows = hp[:, kh:kh + _OH2, :].reshape(tb * _OH2, _LANESP)
        acc2 = acc2 + jnp.dot(rows, w2t_ref[kh],
                              preferred_element_type=jnp.float32)
    h2 = jnp.maximum(acc2 + b2t_ref[...], 0.0)           # (TB*10, 200)

    # fc1 (2000->500) + relu : 10 accumulating K=200 matmuls.  The fc1 weight
    # is pre-permuted so the (h, w, c) row/lane order feeds it directly ->
    # PyTorch's NCHW flatten costs nothing at runtime.
    h2 = h2.reshape(tb, _OH2, _LANES2)
    z1 = jnp.zeros((tb, _HID), jnp.float32)
    for oh in range(_OH2):
        z1 = z1 + jnp.dot(h2[:, oh, :], fc1w_ref[oh],
                          preferred_element_type=jnp.float32)
    z1 = jnp.maximum(z1 + fc1b_ref[...], 0.0)

    # fc2 (500->10) + log_softmax(dim=1).
    logits = jnp.dot(z1, fc2w_ref[...], preferred_element_type=jnp.float32)
    logits = logits + fc2b_ref[...]
    m = jnp.max(logits, axis=1, keepdims=True)
    s = logits - m
    lse = jnp.log(jnp.sum(jnp.exp(s), axis=1, keepdims=True))
    o_ref[...] = (s - lse).astype(o_ref.dtype)


def net_forward(x_nchw, kp):
    """x_nchw: (B, 1, 28, 28) float32 -> (B, 10) log-probabilities."""
    B = x_nchw.shape[0]
    x = x_nchw.reshape(B, _H_IN, _W_IN).astype(jnp.float32)   # Cin == 1

    tb = 8 if B % 8 == 0 else B      # batch tile (sublane-friendly when possible)
    grid = (B // tb,)

    return pl.pallas_call(
        _net_fused_kernel,
        out_shape=jax.ShapeDtypeStruct((B, _CLS), jnp.float32),
        grid=grid,
        in_specs=[
            pl.BlockSpec((tb, _H_IN, _W_IN), lambda i: (i, 0, 0)),
            pl.BlockSpec(kp["w1t"].shape, lambda i: (0, 0, 0)),
            pl.BlockSpec(kp["b1t"].shape, lambda i: (0, 0)),
            pl.BlockSpec(kp["w2t"].shape, lambda i: (0, 0, 0)),
            pl.BlockSpec(kp["b2t"].shape, lambda i: (0, 0)),
            pl.BlockSpec(kp["fc1_w"].shape, lambda i: (0, 0, 0)),
            pl.BlockSpec(kp["fc1_b"].shape, lambda i: (0, 0)),
            pl.BlockSpec(kp["fc2_w"].shape, lambda i: (0, 0)),
            pl.BlockSpec(kp["fc2_b"].shape, lambda i: (0, 0)),
        ],
        out_specs=pl.BlockSpec((tb, _CLS), lambda i: (i, 0)),
        compiler_params=pltpu.CompilerParams(
            dimension_semantics=("parallel",)),
    )(x, kp["w1t"], kp["b1t"], kp["w2t"], kp["b2t"],
      kp["fc1_w"], kp["fc1_b"], kp["fc2_w"], kp["fc2_b"])


# ---------------------------------------------------------------------------
# PyTorch-layout init and a pure-JAX reference for validation
# ---------------------------------------------------------------------------
def init_params(key):
    """PyTorch-layout parameters with uniform(+-1/sqrt(fan_in)) init."""
    ks = jax.random.split(key, 8)

    def u(k, shape, fan_in):
        b = 1.0 / jnp.sqrt(jnp.float32(fan_in))
        return jax.random.uniform(k, shape, jnp.float32, -b, b)

    return {
        "conv1_w": u(ks[0], (10, 1, 5, 5), 1 * 5 * 5),     # OIHW
        "conv1_b": u(ks[1], (10,), 1 * 5 * 5),
        "conv2_w": u(ks[2], (20, 10, 3, 3), 10 * 3 * 3),   # OIHW
        "conv2_b": u(ks[3], (20,), 10 * 3 * 3),
        "fc1_w":   u(ks[4], (500, 2000), 2000),            # (out, in), in = NCHW flatten
        "fc1_b":   u(ks[5], (500,), 2000),
        "fc2_w":   u(ks[6], (10, 500), 500),
        "fc2_b":   u(ks[7], (10,), 500),
    }


def reference_forward(x_nchw, p):
    """Pure-JAX/XLA reference of the PyTorch forward (for validation only)."""
    hi = lax.Precision.HIGHEST
    dn = ("NCHW", "OIHW", "NCHW")
    out = lax.conv_general_dilated(x_nchw.astype(jnp.float32), p["conv1_w"],
                                   (1, 1), "VALID", dimension_numbers=dn,
                                   precision=hi)
    out = jnp.maximum(out + p["conv1_b"].reshape(1, -1, 1, 1), 0.0)
    out = lax.reduce_window(out, -jnp.inf, lax.max,
                            (1, 1, 2, 2), (1, 1, 2, 2), "VALID")
    out = lax.conv_general_dilated(out, p["conv2_w"], (1, 1), "VALID",
                                   dimension_numbers=dn, precision=hi)
    out = jnp.maximum(out + p["conv2_b"].reshape(1, -1, 1, 1), 0.0)
    out = out.reshape(out.shape[0], -1)                    # NCHW flatten
    out = jnp.maximum(jnp.dot(out, p["fc1_w"].T, precision=hi) + p["fc1_b"], 0.0)
    out = jnp.dot(out, p["fc2_w"].T, precision=hi) + p["fc2_b"]
    return jax.nn.log_softmax(out, axis=1)


if __name__ == "__main__":
    key = jax.random.PRNGKey(0)
    pkey, xkey = jax.random.split(key)
    params = init_params(pkey)
    kparams = pack_params(params)

    # fc1 expects 20*10*10 features, which forces 1x28x28 (MNIST) inputs.
    x = jax.random.normal(xkey, (2, 1, 28, 28), jnp.float32)

    fwd = jax.jit(net_forward)
    out = jax.block_until_ready(fwd(x, kparams))

    assert out.shape == (2, 10)
    # rows of a log_softmax must exponentiate-sum to ~1
    assert bool(jnp.allclose(jnp.sum(jnp.exp(out), axis=1), 1.0, atol=1e-3))
    # match the pure-JAX reference of the PyTorch forward
    ref = reference_forward(x, params)
    assert bool(jnp.allclose(out, ref, atol=5e-2, rtol=5e-2))

    # TODO(synk): the training-side methods (partial_grad / calculate_loss_grad /
    # cal_inner_product / newalg_backward / sgd_backward) are optimizer logic,
    # not forward compute, and are intentionally not ported.

    print("KERNEL_OK")
</pallas_src>

<mosaic_0001>
module attributes {stable_mosaic.version = 11 : i64} {
  func.func @_net_fused_kernel(%arg0: i32, %arg1: memref<2x28x28xf32, #tpu.memory_space<vmem>>, %arg2: memref<5x28x240xf32, #tpu.memory_space<vmem>>, %arg3: memref<1x240xf32, #tpu.memory_space<vmem>>, %arg4: memref<3x230x200xf32, #tpu.memory_space<vmem>>, %arg5: memref<1x200xf32, #tpu.memory_space<vmem>>, %arg6: memref<10x200x500xf32, #tpu.memory_space<vmem>>, %arg7: memref<1x500xf32, #tpu.memory_space<vmem>>, %arg8: memref<500x10xf32, #tpu.memory_space<vmem>>, %arg9: memref<1x10xf32, #tpu.memory_space<vmem>>, %arg10: memref<2x10xf32, #tpu.memory_space<vmem>>) attributes {dimension_semantics = [#tpu.dimension_semantics<parallel>], iteration_bounds = array<i64: 1>, scalar_prefetch = 0 : i64, scratch_operands = 0 : i64, tpu.core_type = #tpu.core_type<tc>, window_params = [{transform_indices = @transform_0, window_bounds = array<i64: 2, 28, 28>}, {pipeline_mode = #tpu.pipeline_mode<synchronous>, transform_indices = @transform_1, window_bounds = array<i64: 5, 28, 240>}, {pipeline_mode = #tpu.pipeline_mode<synchronous>, transform_indices = @transform_2, window_bounds = array<i64: 1, 240>}, {pipeline_mode = #tpu.pipeline_mode<synchronous>, transform_indices = @transform_3, window_bounds = array<i64: 3, 230, 200>}, {pipeline_mode = #tpu.pipeline_mode<synchronous>, transform_indices = @transform_4, window_bounds = array<i64: 1, 200>}, {pipeline_mode = #tpu.pipeline_mode<synchronous>, transform_indices = @transform_5, window_bounds = array<i64: 10, 200, 500>}, {pipeline_mode = #tpu.pipeline_mode<synchronous>, transform_indices = @transform_6, window_bounds = array<i64: 1, 500>}, {pipeline_mode = #tpu.pipeline_mode<synchronous>, transform_indices = @transform_7, window_bounds = array<i64: 500, 10>}, {pipeline_mode = #tpu.pipeline_mode<synchronous>, transform_indices = @transform_8, window_bounds = array<i64: 1, 10>}, {transform_indices = @transform_9, window_bounds = array<i64: 2, 10>}]} {
    %c0 = arith.constant 0 : index
    %c0_0 = arith.constant 0 : index
    %c0_1 = arith.constant 0 : index
    %0 = vector.load %arg1[%c0, %c0_0, %c0_1] : memref<2x28x28xf32, #tpu.memory_space<vmem>>, vector<2x28x28xf32>
    %cst = arith.constant 0.000000e+00 : f32
    %1 = vector.broadcast %cst : f32 to vector<48x240xf32>
    %2 = vector.extract_strided_slice %0 {offsets = [0, 0, 0], sizes = [2, 24, 28], strides = [1, 1, 1]} : vector<2x28x28xf32> to vector<2x24x28xf32>
    %3 = vector.shape_cast %2 : vector<2x24x28xf32> to vector<48x28xf32>
    %c0_2 = arith.constant 0 : index
    %c0_3 = arith.constant 0 : index
    %c0_4 = arith.constant 0 : index
    %4 = vector.load %arg2[%c0_2, %c0_3, %c0_4] : memref<5x28x240xf32, #tpu.memory_space<vmem>>, vector<1x28x240xf32>
    %5 = vector.shape_cast %4 : vector<1x28x240xf32> to vector<28x240xf32>
    %cst_5 = arith.constant dense<0.000000e+00> : vector<48x240xf32>
    %6 = tpu.matmul %3, %5, %cst_5 {dimension_numbers = #tpu.dot_dimension_numbers<[1], [0], [0], [1], [0, 0, 1, 1], [], []>} : vector<48x28xf32>, vector<28x240xf32>, vector<48x240xf32> -> vector<48x240xf32>
    %7 = arith.addf %1, %6 : vector<48x240xf32>
    %8 = vector.extract_strided_slice %0 {offsets = [0, 1, 0], sizes = [2, 24, 28], strides = [1, 1, 1]} : vector<2x28x28xf32> to vector<2x24x28xf32>
    %9 = vector.shape_cast %8 : vector<2x24x28xf32> to vector<48x28xf32>
    %c1 = arith.constant 1 : index
    %c0_6 = arith.constant 0 : index
    %c0_7 = arith.constant 0 : index
    %10 = vector.load %arg2[%c1, %c0_6, %c0_7] : memref<5x28x240xf32, #tpu.memory_space<vmem>>, vector<1x28x240xf32>
    %11 = vector.shape_cast %10 : vector<1x28x240xf32> to vector<28x240xf32>
    %cst_8 = arith.constant dense<0.000000e+00> : vector<48x240xf32>
    %12 = tpu.matmul %9, %11, %cst_8 {dimension_numbers = #tpu.dot_dimension_numbers<[1], [0], [0], [1], [0, 0, 1, 1], [], []>} : vector<48x28xf32>, vector<28x240xf32>, vector<48x240xf32> -> vector<48x240xf32>
    %13 = arith.addf %7, %12 : vector<48x240xf32>
    %14 = vector.extract_strided_slice %0 {offsets = [0, 2, 0], sizes = [2, 24, 28], strides = [1, 1, 1]} : vector<2x28x28xf32> to vector<2x24x28xf32>
    %15 = vector.shape_cast %14 : vector<2x24x28xf32> to vector<48x28xf32>
    %c2 = arith.constant 2 : index
    %c0_9 = arith.constant 0 : index
    %c0_10 = arith.constant 0 : index
    %16 = vector.load %arg2[%c2, %c0_9, %c0_10] : memref<5x28x240xf32, #tpu.memory_space<vmem>>, vector<1x28x240xf32>
    %17 = vector.shape_cast %16 : vector<1x28x240xf32> to vector<28x240xf32>
    %cst_11 = arith.constant dense<0.000000e+00> : vector<48x240xf32>
    %18 = tpu.matmul %15, %17, %cst_11 {dimension_numbers = #tpu.dot_dimension_numbers<[1], [0], [0], [1], [0, 0, 1, 1], [], []>} : vector<48x28xf32>, vector<28x240xf32>, vector<48x240xf32> -> vector<48x240xf32>
    %19 = arith.addf %13, %18 : vector<48x240xf32>
    %20 = vector.extract_strided_slice %0 {offsets = [0, 3, 0], sizes = [2, 24, 28], strides = [1, 1, 1]} : vector<2x28x28xf32> to vector<2x24x28xf32>
    %21 = vector.shape_cast %20 : vector<2x24x28xf32> to vector<48x28xf32>
    %c3 = arith.constant 3 : index
    %c0_12 = arith.constant 0 : index
    %c0_13 = arith.constant 0 : index
    %22 = vector.load %arg2[%c3, %c0_12, %c0_13] : memref<5x28x240xf32, #tpu.memory_space<vmem>>, vector<1x28x240xf32>
    %23 = vector.shape_cast %22 : vector<1x28x240xf32> to vector<28x240xf32>
    %cst_14 = arith.constant dense<0.000000e+00> : vector<48x240xf32>
    %24 = tpu.matmul %21, %23, %cst_14 {dimension_numbers = #tpu.dot_dimension_numbers<[1], [0], [0], [1], [0, 0, 1, 1], [], []>} : vector<48x28xf32>, vector<28x240xf32>, vector<48x240xf32> -> vector<48x240xf32>
    %25 = arith.addf %19, %24 : vector<48x240xf32>
    %26 = vector.extract_strided_slice %0 {offsets = [0, 4, 0], sizes = [2, 24, 28], strides = [1, 1, 1]} : vector<2x28x28xf32> to vector<2x24x28xf32>
    %27 = vector.shape_cast %26 : vector<2x24x28xf32> to vector<48x28xf32>
    %c4 = arith.constant 4 : index
    %c0_15 = arith.constant 0 : index
    %c0_16 = arith.constant 0 : index
    %28 = vector.load %arg2[%c4, %c0_15, %c0_16] : memref<5x28x240xf32, #tpu.memory_space<vmem>>, vector<1x28x240xf32>
    %29 = vector.shape_cast %28 : vector<1x28x240xf32> to vector<28x240xf32>
    %cst_17 = arith.constant dense<0.000000e+00> : vector<48x240xf32>
    %30 = tpu.matmul %27, %29, %cst_17 {dimension_numbers = #tpu.dot_dimension_numbers<[1], [0], [0], [1], [0, 0, 1, 1], [], []>} : vector<48x28xf32>, vector<28x240xf32>, vector<48x240xf32> -> vector<48x240xf32>
    %31 = arith.addf %25, %30 : vector<48x240xf32>
    %c0_18 = arith.constant 0 : index
    %c0_19 = arith.constant 0 : index
    %32 = vector.load %arg3[%c0_18, %c0_19] : memref<1x240xf32, #tpu.memory_space<vmem>>, vector<1x240xf32>
    %33 = vector.broadcast %32 : vector<1x240xf32> to vector<48x240xf32>
    %34 = arith.addf %31, %33 : vector<48x240xf32>
    %cst_20 = arith.constant 0.000000e+00 : f32
    %35 = vector.broadcast %cst_20 : f32 to vector<48x240xf32>
    %36 = arith.maximumf %34, %35 : vector<48x240xf32>
    %37 = vector.shape_cast %36 : vector<48x240xf32> to vector<2x12x2x240xf32>
    %38 = vector.extract_strided_slice %37 {offsets = [0, 0, 0, 0], sizes = [2, 12, 1, 240], strides = [1, 1, 1, 1]} : vector<2x12x2x240xf32> to vector<2x12x1x240xf32>
    %39 = vector.shape_cast %38 : vector<2x12x1x240xf32> to vector<2x12x240xf32>
    %40 = vector.extract_strided_slice %37 {offsets = [0, 0, 1, 0], sizes = [2, 12, 1, 240], strides = [1, 1, 1, 1]} : vector<2x12x2x240xf32> to vector<2x12x1x240xf32>
    %41 = vector.shape_cast %40 : vector<2x12x1x240xf32> to vector<2x12x240xf32>
    %42 = arith.maximumf %39, %41 : vector<2x12x240xf32>
    %43 = vector.extract_strided_slice %42 {offsets = [0, 0, 0], sizes = [2, 12, 230], strides = [1, 1, 1]} : vector<2x12x240xf32> to vector<2x12x230xf32>
    %44 = vector.extract_strided_slice %42 {offsets = [0, 0, 10], sizes = [2, 12, 230], strides = [1, 1, 1]} : vector<2x12x240xf32> to vector<2x12x230xf32>
    %45 = arith.maximumf %43, %44 : vector<2x12x230xf32>
    %cst_21 = arith.constant 0.000000e+00 : f32
    %46 = vector.broadcast %cst_21 : f32 to vector<20x200xf32>
    %47 = vector.extract_strided_slice %45 {offsets = [0, 0, 0], sizes = [2, 10, 230], strides = [1, 1, 1]} : vector<2x12x230xf32> to vector<2x10x230xf32>
    %48 = vector.shape_cast %47 : vector<2x10x230xf32> to vector<20x230xf32>
    %c0_22 = arith.constant 0 : index
    %c0_23 = arith.constant 0 : index
    %c0_24 = arith.constant 0 : index
    %49 = vector.load %arg4[%c0_22, %c0_23, %c0_24] : memref<3x230x200xf32, #tpu.memory_space<vmem>>, vector<1x230x200xf32>
    %50 = vector.shape_cast %49 : vector<1x230x200xf32> to vector<230x200xf32>
    %cst_25 = arith.constant dense<0.000000e+00> : vector<20x200xf32>
    %51 = tpu.matmul %48, %50, %cst_25 {dimension_numbers = #tpu.dot_dimension_numbers<[1], [0], [0], [1], [0, 0, 1, 1], [], []>} : vector<20x230xf32>, vector<230x200xf32>, vector<20x200xf32> -> vector<20x200xf32>
    %52 = arith.addf %46, %51 : vector<20x200xf32>
    %53 = vector.extract_strided_slice %45 {offsets = [0, 1, 0], sizes = [2, 10, 230], strides = [1, 1, 1]} : vector<2x12x230xf32> to vector<2x10x230xf32>
    %54 = vector.shape_cast %53 : vector<2x10x230xf32> to vector<20x230xf32>
    %c1_26 = arith.constant 1 : index
    %c0_27 = arith.constant 0 : index
    %c0_28 = arith.constant 0 : index
    %55 = vector.load %arg4[%c1_26, %c0_27, %c0_28] : memref<3x230x200xf32, #tpu.memory_space<vmem>>, vector<1x230x200xf32>
    %56 = vector.shape_cast %55 : vector<1x230x200xf32> to vector<230x200xf32>
    %cst_29 = arith.constant dense<0.000000e+00> : vector<20x200xf32>
    %57 = tpu.matmul %54, %56, %cst_29 {dimension_numbers = #tpu.dot_dimension_numbers<[1], [0], [0], [1], [0, 0, 1, 1], [], []>} : vector<20x230xf32>, vector<230x200xf32>, vector<20x200xf32> -> vector<20x200xf32>
    %58 = arith.addf %52, %57 : vector<20x200xf32>
    %59 = vector.extract_strided_slice %45 {offsets = [0, 2, 0], sizes = [2, 10, 230], strides = [1, 1, 1]} : vector<2x12x230xf32> to vector<2x10x230xf32>
    %60 = vector.shape_cast %59 : vector<2x10x230xf32> to vector<20x230xf32>
    %c2_30 = arith.constant 2 : index
    %c0_31 = arith.constant 0 : index
    %c0_32 = arith.constant 0 : index
    %61 = vector.load %arg4[%c2_30, %c0_31, %c0_32] : memref<3x230x200xf32, #tpu.memory_space<vmem>>, vector<1x230x200xf32>
    %62 = vector.shape_cast %61 : vector<1x230x200xf32> to vector<230x200xf32>
    %cst_33 = arith.constant dense<0.000000e+00> : vector<20x200xf32>
    %63 = tpu.matmul %60, %62, %cst_33 {dimension_numbers = #tpu.dot_dimension_numbers<[1], [0], [0], [1], [0, 0, 1, 1], [], []>} : vector<20x230xf32>, vector<230x200xf32>, vector<20x200xf32> -> vector<20x200xf32>
    %64 = arith.addf %58, %63 : vector<20x200xf32>
    %c0_34 = arith.constant 0 : index
    %c0_35 = arith.constant 0 : index
    %65 = vector.load %arg5[%c0_34, %c0_35] : memref<1x200xf32, #tpu.memory_space<vmem>>, vector<1x200xf32>
    %66 = vector.broadcast %65 : vector<1x200xf32> to vector<20x200xf32>
    %67 = arith.addf %64, %66 : vector<20x200xf32>
    %cst_36 = arith.constant 0.000000e+00 : f32
    %68 = vector.broadcast %cst_36 : f32 to vector<20x200xf32>
    %69 = arith.maximumf %67, %68 : vector<20x200xf32>
    %70 = vector.shape_cast %69 : vector<20x200xf32> to vector<2x10x200xf32>
    %cst_37 = arith.constant 0.000000e+00 : f32
    %71 = vector.broadcast %cst_37 : f32 to vector<2x500xf32>
    %72 = vector.extract_strided_slice %70 {offsets = [0, 0, 0], sizes = [2, 1, 200], strides = [1, 1, 1]} : vector<2x10x200xf32> to vector<2x1x200xf32>
    %73 = vector.shape_cast %72 : vector<2x1x200xf32> to vector<2x200xf32>
    %c0_38 = arith.constant 0 : index
    %c0_39 = arith.constant 0 : index
    %c0_40 = arith.constant 0 : index
    %74 = vector.load %arg6[%c0_38, %c0_39, %c0_40] : memref<10x200x500xf32, #tpu.memory_space<vmem>>, vector<1x200x500xf32>
    %75 = vector.shape_cast %74 : vector<1x200x500xf32> to vector<200x500xf32>
    %cst_41 = arith.constant dense<0.000000e+00> : vector<2x500xf32>
    %76 = tpu.matmul %73, %75, %cst_41 {dimension_numbers = #tpu.dot_dimension_numbers<[1], [0], [0], [1], [0, 0, 1, 1], [], []>} : vector<2x200xf32>, vector<200x500xf32>, vector<2x500xf32> -> vector<2x500xf32>
    %77 = arith.addf %71, %76 : vector<2x500xf32>
    %78 = vector.extract_strided_slice %70 {offsets = [0, 1, 0], sizes = [2, 1, 200], strides = [1, 1, 1]} : vector<2x10x200xf32> to vector<2x1x200xf32>
    %79 = vector.shape_cast %78 : vector<2x1x200xf32> to vector<2x200xf32>
    %c1_42 = arith.constant 1 : index
    %c0_43 = arith.constant 0 : index
    %c0_44 = arith.constant 0 : index
    %80 = vector.load %arg6[%c1_42, %c0_43, %c0_44] : memref<10x200x500xf32, #tpu.memory_space<vmem>>, vector<1x200x500xf32>
    %81 = vector.shape_cast %80 : vector<1x200x500xf32> to vector<200x500xf32>
    %cst_45 = arith.constant dense<0.000000e+00> : vector<2x500xf32>
    %82 = tpu.matmul %79, %81, %cst_45 {dimension_numbers = #tpu.dot_dimension_numbers<[1], [0], [0], [1], [0, 0, 1, 1], [], []>} : vector<2x200xf32>, vector<200x500xf32>, vector<2x500xf32> -> vector<2x500xf32>
    %83 = arith.addf %77, %82 : vector<2x500xf32>
    %84 = vector.extract_strided_slice %70 {offsets = [0, 2, 0], sizes = [2, 1, 200], strides = [1, 1, 1]} : vector<2x10x200xf32> to vector<2x1x200xf32>
    %85 = vector.shape_cast %84 : vector<2x1x200xf32> to vector<2x200xf32>
    %c2_46 = arith.constant 2 : index
    %c0_47 = arith.constant 0 : index
    %c0_48 = arith.constant 0 : index
    %86 = vector.load %arg6[%c2_46, %c0_47, %c0_48] : memref<10x200x500xf32, #tpu.memory_space<vmem>>, vector<1x200x500xf32>
    %87 = vector.shape_cast %86 : vector<1x200x500xf32> to vector<200x500xf32>
    %cst_49 = arith.constant dense<0.000000e+00> : vector<2x500xf32>
    %88 = tpu.matmul %85, %87, %cst_49 {dimension_numbers = #tpu.dot_dimension_numbers<[1], [0], [0], [1], [0, 0, 1, 1], [], []>} : vector<2x200xf32>, vector<200x500xf32>, vector<2x500xf32> -> vector<2x500xf32>
    %89 = arith.addf %83, %88 : vector<2x500xf32>
    %90 = vector.extract_strided_slice %70 {offsets = [0, 3, 0], sizes = [2, 1, 200], strides = [1, 1, 1]} : vector<2x10x200xf32> to vector<2x1x200xf32>
    %91 = vector.shape_cast %90 : vector<2x1x200xf32> to vector<2x200xf32>
    %c3_50 = arith.constant 3 : index
    %c0_51 = arith.constant 0 : index
    %c0_52 = arith.constant 0 : index
    %92 = vector.load %arg6[%c3_50, %c0_51, %c0_52] : memref<10x200x500xf32, #tpu.memory_space<vmem>>, vector<1x200x500xf32>
    %93 = vector.shape_cast %92 : vector<1x200x500xf32> to vector<200x500xf32>
    %cst_53 = arith.constant dense<0.000000e+00> : vector<2x500xf32>
    %94 = tpu.matmul %91, %93, %cst_53 {dimension_numbers = #tpu.dot_dimension_numbers<[1], [0], [0], [1], [0, 0, 1, 1], [], []>} : vector<2x200xf32>, vector<200x500xf32>, vector<2x500xf32> -> vector<2x500xf32>
    %95 = arith.addf %89, %94 : vector<2x500xf32>
    %96 = vector.extract_strided_slice %70 {offsets = [0, 4, 0], sizes = [2, 1, 200], strides = [1, 1, 1]} : vector<2x10x200xf32> to vector<2x1x200xf32>
    %97 = vector.shape_cast %96 : vector<2x1x200xf32> to vector<2x200xf32>
    %c4_54 = arith.constant 4 : index
    %c0_55 = arith.constant 0 : index
    %c0_56 = arith.constant 0 : index
    %98 = vector.load %arg6[%c4_54, %c0_55, %c0_56] : memref<10x200x500xf32, #tpu.memory_space<vmem>>, vector<1x200x500xf32>
    %99 = vector.shape_cast %98 : vector<1x200x500xf32> to vector<200x500xf32>
    %cst_57 = arith.constant dense<0.000000e+00> : vector<2x500xf32>
    %100 = tpu.matmul %97, %99, %cst_57 {dimension_numbers = #tpu.dot_dimension_numbers<[1], [0], [0], [1], [0, 0, 1, 1], [], []>} : vector<2x200xf32>, vector<200x500xf32>, vector<2x500xf32> -> vector<2x500xf32>
    %101 = arith.addf %95, %100 : vector<2x500xf32>
    %102 = vector.extract_strided_slice %70 {offsets = [0, 5, 0], sizes = [2, 1, 200], strides = [1, 1, 1]} : vector<2x10x200xf32> to vector<2x1x200xf32>
    %103 = vector.shape_cast %102 : vector<2x1x200xf32> to vector<2x200xf32>
    %c5 = arith.constant 5 : index
    %c0_58 = arith.constant 0 : index
    %c0_59 = arith.constant 0 : index
    %104 = vector.load %arg6[%c5, %c0_58, %c0_59] : memref<10x200x500xf32, #tpu.memory_space<vmem>>, vector<1x200x500xf32>
    %105 = vector.shape_cast %104 : vector<1x200x500xf32> to vector<200x500xf32>
    %cst_60 = arith.constant dense<0.000000e+00> : vector<2x500xf32>
    %106 = tpu.matmul %103, %105, %cst_60 {dimension_numbers = #tpu.dot_dimension_numbers<[1], [0], [0], [1], [0, 0, 1, 1], [], []>} : vector<2x200xf32>, vector<200x500xf32>, vector<2x500xf32> -> vector<2x500xf32>
    %107 = arith.addf %101, %106 : vector<2x500xf32>
    %108 = vector.extract_strided_slice %70 {offsets = [0, 6, 0], sizes = [2, 1, 200], strides = [1, 1, 1]} : vector<2x10x200xf32> to vector<2x1x200xf32>
    %109 = vector.shape_cast %108 : vector<2x1x200xf32> to vector<2x200xf32>
    %c6 = arith.constant 6 : index
    %c0_61 = arith.constant 0 : index
    %c0_62 = arith.constant 0 : index
    %110 = vector.load %arg6[%c6, %c0_61, %c0_62] : memref<10x200x500xf32, #tpu.memory_space<vmem>>, vector<1x200x500xf32>
    %111 = vector.shape_cast %110 : vector<1x200x500xf32> to vector<200x500xf32>
    %cst_63 = arith.constant dense<0.000000e+00> : vector<2x500xf32>
    %112 = tpu.matmul %109, %111, %cst_63 {dimension_numbers = #tpu.dot_dimension_numbers<[1], [0], [0], [1], [0, 0, 1, 1], [], []>} : vector<2x200xf32>, vector<200x500xf32>, vector<2x500xf32> -> vector<2x500xf32>
    %113 = arith.addf %107, %112 : vector<2x500xf32>
    %114 = vector.extract_strided_slice %70 {offsets = [0, 7, 0], sizes = [2, 1, 200], strides = [1, 1, 1]} : vector<2x10x200xf32> to vector<2x1x200xf32>
    %115 = vector.shape_cast %114 : vector<2x1x200xf32> to vector<2x200xf32>
    %c7 = arith.constant 7 : index
    %c0_64 = arith.constant 0 : index
    %c0_65 = arith.constant 0 : index
    %116 = vector.load %arg6[%c7, %c0_64, %c0_65] : memref<10x200x500xf32, #tpu.memory_space<vmem>>, vector<1x200x500xf32>
    %117 = vector.shape_cast %116 : vector<1x200x500xf32> to vector<200x500xf32>
    %cst_66 = arith.constant dense<0.000000e+00> : vector<2x500xf32>
    %118 = tpu.matmul %115, %117, %cst_66 {dimension_numbers = #tpu.dot_dimension_numbers<[1], [0], [0], [1], [0, 0, 1, 1], [], []>} : vector<2x200xf32>, vector<200x500xf32>, vector<2x500xf32> -> vector<2x500xf32>
    %119 = arith.addf %113, %118 : vector<2x500xf32>
    %120 = vector.extract_strided_slice %70 {offsets = [0, 8, 0], sizes = [2, 1, 200], strides = [1, 1, 1]} : vector<2x10x200xf32> to vector<2x1x200xf32>
    %121 = vector.shape_cast %120 : vector<2x1x200xf32> to vector<2x200xf32>
    %c8 = arith.constant 8 : index
    %c0_67 = arith.constant 0 : index
    %c0_68 = arith.constant 0 : index
    %122 = vector.load %arg6[%c8, %c0_67, %c0_68] : memref<10x200x500xf32, #tpu.memory_space<vmem>>, vector<1x200x500xf32>
    %123 = vector.shape_cast %122 : vector<1x200x500xf32> to vector<200x500xf32>
    %cst_69 = arith.constant dense<0.000000e+00> : vector<2x500xf32>
    %124 = tpu.matmul %121, %123, %cst_69 {dimension_numbers = #tpu.dot_dimension_numbers<[1], [0], [0], [1], [0, 0, 1, 1], [], []>} : vector<2x200xf32>, vector<200x500xf32>, vector<2x500xf32> -> vector<2x500xf32>
    %125 = arith.addf %119, %124 : vector<2x500xf32>
    %126 = vector.extract_strided_slice %70 {offsets = [0, 9, 0], sizes = [2, 1, 200], strides = [1, 1, 1]} : vector<2x10x200xf32> to vector<2x1x200xf32>
    %127 = vector.shape_cast %126 : vector<2x1x200xf32> to vector<2x200xf32>
    %c9 = arith.constant 9 : index
    %c0_70 = arith.constant 0 : index
    %c0_71 = arith.constant 0 : index
    %128 = vector.load %arg6[%c9, %c0_70, %c0_71] : memref<10x200x500xf32, #tpu.memory_space<vmem>>, vector<1x200x500xf32>
    %129 = vector.shape_cast %128 : vector<1x200x500xf32> to vector<200x500xf32>
    %cst_72 = arith.constant dense<0.000000e+00> : vector<2x500xf32>
    %130 = tpu.matmul %127, %129, %cst_72 {dimension_numbers = #tpu.dot_dimension_numbers<[1], [0], [0], [1], [0, 0, 1, 1], [], []>} : vector<2x200xf32>, vector<200x500xf32>, vector<2x500xf32> -> vector<2x500xf32>
    %131 = arith.addf %125, %130 : vector<2x500xf32>
    %c0_73 = arith.constant 0 : index
    %c0_74 = arith.constant 0 : index
    %132 = vector.load %arg7[%c0_73, %c0_74] : memref<1x500xf32, #tpu.memory_space<vmem>>, vector<1x500xf32>
    %133 = vector.broadcast %132 : vector<1x500xf32> to vector<2x500xf32>
    %134 = arith.addf %131, %133 : vector<2x500xf32>
    %cst_75 = arith.constant 0.000000e+00 : f32
    %135 = vector.broadcast %cst_75 : f32 to vector<2x500xf32>
    %136 = arith.maximumf %134, %135 : vector<2x500xf32>
    %c0_76 = arith.constant 0 : index
    %c0_77 = arith.constant 0 : index
    %137 = vector.load %arg8[%c0_76, %c0_77] : memref<500x10xf32, #tpu.memory_space<vmem>>, vector<500x10xf32>
    %cst_78 = arith.constant dense<0.000000e+00> : vector<2x10xf32>
    %138 = tpu.matmul %136, %137, %cst_78 {dimension_numbers = #tpu.dot_dimension_numbers<[1], [0], [0], [1], [0, 0, 1, 1], [], []>} : vector<2x500xf32>, vector<500x10xf32>, vector<2x10xf32> -> vector<2x10xf32>
    %c0_79 = arith.constant 0 : index
    %c0_80 = arith.constant 0 : index
    %139 = vector.load %arg9[%c0_79, %c0_80] : memref<1x10xf32, #tpu.memory_space<vmem>>, vector<1x10xf32>
    %140 = vector.broadcast %139 : vector<1x10xf32> to vector<2x10xf32>
    %141 = arith.addf %138, %140 : vector<2x10xf32>
    %cst_81 = arith.constant dense<0xFF800000> : vector<2xf32>
    %142 = vector.multi_reduction <maximumf>, %141, %cst_81 [1] : vector<2x10xf32> to vector<2xf32>
    %143 = vector.shape_cast %142 : vector<2xf32> to vector<2x1xf32>
    %144 = vector.broadcast %143 : vector<2x1xf32> to vector<2x10xf32>
    %145 = arith.subf %141, %144 : vector<2x10xf32>
    %146 = math.exp %145 : vector<2x10xf32>
    %cst_82 = arith.constant dense<0.000000e+00> : vector<2xf32>
    %147 = vector.multi_reduction <add>, %146, %cst_82 [1] : vector<2x10xf32> to vector<2xf32>
    %148 = vector.shape_cast %147 : vector<2xf32> to vector<2x1xf32>
    %149 = math.log %148 : vector<2x1xf32>
    %150 = vector.broadcast %149 : vector<2x1xf32> to vector<2x10xf32>
    %151 = arith.subf %145, %150 : vector<2x10xf32>
    %c0_83 = arith.constant 0 : index
    %c0_84 = arith.constant 0 : index
    %152 = vector.load %arg10[%c0_83, %c0_84] : memref<2x10xf32, #tpu.memory_space<vmem>>, vector<2x10xf32>
    tpu.vector_store %arg10[%c0_83, %c0_84], %151 {strides = array<i32>} : memref<2x10xf32, #tpu.memory_space<vmem>>, vector<2x10xf32>,
    return
  }
  func.func @transform_0(%arg0: i32) -> (i32, i32, i32) {
    %c0_i32 = arith.constant 0 : i32
    %c0_i32_0 = arith.constant 0 : i32
    %c0_i32_1 = arith.constant 0 : i32
    return %arg0, %c0_i32, %c0_i32_0 : i32, i32, i32
  }
  func.func @transform_1(%arg0: i32) -> (i32, i32, i32) {
    %c0_i32 = arith.constant 0 : i32
    %c0_i32_0 = arith.constant 0 : i32
    %c0_i32_1 = arith.constant 0 : i32
    %c0_i32_2 = arith.constant 0 : i32
    return %c0_i32, %c0_i32_0, %c0_i32_1 : i32, i32, i32
  }
  func.func @transform_2(%arg0: i32) -> (i32, i32) {
    %c0_i32 = arith.constant 0 : i32
    %c0_i32_0 = arith.constant 0 : i32
    %c0_i32_1 = arith.constant 0 : i32
    return %c0_i32, %c0_i32_0 : i32, i32
  }
  func.func @transform_3(%arg0: i32) -> (i32, i32, i32) {
    %c0_i32 = arith.constant 0 : i32
    %c0_i32_0 = arith.constant 0 : i32
    %c0_i32_1 = arith.constant 0 : i32
    %c0_i32_2 = arith.constant 0 : i32
    return %c0_i32, %c0_i32_0, %c0_i32_1 : i32, i32, i32
  }
  func.func @transform_4(%arg0: i32) -> (i32, i32) {
    %c0_i32 = arith.constant 0 : i32
    %c0_i32_0 = arith.constant 0 : i32
    %c0_i32_1 = arith.constant 0 : i32
    return %c0_i32, %c0_i32_0 : i32, i32
  }
  func.func @transform_5(%arg0: i32) -> (i32, i32, i32) {
    %c0_i32 = arith.constant 0 : i32
    %c0_i32_0 = arith.constant 0 : i32
    %c0_i32_1 = arith.constant 0 : i32
    %c0_i32_2 = arith.constant 0 : i32
    return %c0_i32, %c0_i32_0, %c0_i32_1 : i32, i32, i32
  }
  func.func @transform_6(%arg0: i32) -> (i32, i32) {
    %c0_i32 = arith.constant 0 : i32
    %c0_i32_0 = arith.constant 0 : i32
    %c0_i32_1 = arith.constant 0 : i32
    return %c0_i32, %c0_i32_0 : i32, i32
  }
  func.func @transform_7(%arg0: i32) -> (i32, i32) {
    %c0_i32 = arith.constant 0 : i32
    %c0_i32_0 = arith.constant 0 : i32
    %c0_i32_1 = arith.constant 0 : i32
    return %c0_i32, %c0_i32_0 : i32, i32
  }
  func.func @transform_8(%arg0: i32) -> (i32, i32) {
    %c0_i32 = arith.constant 0 : i32
    %c0_i32_0 = arith.constant 0 : i32
    %c0_i32_1 = arith.constant 0 : i32
    return %c0_i32, %c0_i32_0 : i32, i32
  }
  func.func @transform_9(%arg0: i32) -> (i32, i32) {
    %c0_i32 = arith.constant 0 : i32
    %c0_i32_0 = arith.constant 0 : i32
    return %arg0, %c0_i32 : i32, i32
  }
}

</mosaic_0001>

<llo_original>
// kernel: net_forward.1
$region0: #{net_forward.1}
  #allocation0 [shape = 'u32[]', space=smem, size = 0x4, offset = 0x4, fixed_abs, tag = 'smem constant byte address 0x4 - core index']
  #allocation1 [shape = 'u32[144,128]{1,0:T(1,128)}', space=vmem, size = 0x12000, scoped, tag = 'internal scratch']
  %s0 = inlined_call_operand.vmem [shape: f32[2,28,28], index: 0, kind: input, shape index: {}]
  %s1 = inlined_call_operand.hbm [shape: f32[5,28,240], index: 1, kind: input, shape index: {}]
  %s2 = inlined_call_operand.hbm [shape: f32[1,240], index: 2, kind: input, shape index: {}]
  %s3 = inlined_call_operand.vmem [shape: f32[3,230,200], index: 3, kind: input, shape index: {}]
  %s4 = inlined_call_operand.hbm [shape: f32[1,200], index: 4, kind: input, shape index: {}]
  %s5 = inlined_call_operand.hbm [shape: f32[10,200,500], index: 5, kind: input, shape index: {}]
  %s6 = inlined_call_operand.hbm [shape: f32[1,500], index: 6, kind: input, shape index: {}]
  %s7 = inlined_call_operand.vmem [shape: f32[500,10], index: 7, kind: input, shape index: {}]
  %s8 = inlined_call_operand.hbm [shape: f32[1,10], index: 8, kind: input, shape index: {}]
  %s9 = inlined_call_operand.hbm [shape: f32[2,10], index: 9, kind: output, shape index: {}]
  %s10 = sld [smem:[#allocation0]]
  $region70: #{net_forward.1} parent=0
    _
  %s12 = ssub.s32 1, %s10
  %s13 = scalar_select 0, %s12, %s10
  $region1: #{net_forward.1} parent=0
    #allocation2 [shape = 'u8[163840]{0}', space=vmem, size = 0x28000, scoped, tag = 'input window, operand 1, single buffered']
    #allocation3 [shape = 's32[1]{0}', space=sflag, size = 0x4, scoped, tag = 'scoped memory for net_forward.1']
    #allocation4 [shape = 's32[1]{0}', space=sflag, size = 0x4, scoped, tag = 'scoped memory for net_forward.1']
    #allocation5 [shape = 'u8[1024]{0}', space=vmem, size = 0x400, scoped, tag = 'input window, operand 2, single buffered']
    #allocation6 [shape = 's32[1]{0}', space=sflag, size = 0x4, scoped, tag = 'scoped memory for net_forward.1']
    #allocation7 [shape = 'u8[1024]{0}', space=vmem, size = 0x400, scoped, tag = 'input window, operand 4, single buffered']
    #allocation8 [shape = 'u8[4096000]{0}', space=vmem, size = 0x3e8000, scoped, tag = 'input window, operand 5, single buffered']
    #allocation9 [shape = 's32[1]{0}', space=sflag, size = 0x4, scoped, tag = 'scoped memory for net_forward.1']
    #allocation10 [shape = 'u8[2048]{0}', space=vmem, size = 0x800, scoped, tag = 'input window, operand 6, single buffered']
    #allocation11 [shape = 'u8[512]{0}', space=vmem, size = 0x400, scoped, tag = 'input window, operand 8, single buffered']
    #allocation12 [shape = 's32[1]{0}', space=sflag, size = 0x4, scoped, tag = 'scoped memory for net_forward.1']
    #allocation13 [shape = 'u8[1024]{0}', space=vmem, size = 0x400, scoped, tag = 'output window, operand 0, single buffered']
    %14 = vsyncpa [#allocation3], 0
    %15 = vsyncpa [#allocation6], 0
    %16 = vsyncpa [#allocation9], 0
    %17 = vsyncpa [#allocation12], 0
    %18 = vsyncpa [#allocation4], 0
    // Predicated region
    $region2: #{net_forward.1} parent=1 // pred_check
      _
    $region3: #{net_forward.1} parent=1 // pred_check_branch
      %20 = sbr.rel (0) target = $region5
    $region4: #{net_forward.1} parent=1 // pred_region
      _
    $region5: #{net_forward.1} parent=1 // pred_fallthru
      _
    // Predicated region
    $region6: #{net_forward.1} parent=1 // pred_check
      _
    $region7: #{net_forward.1} parent=1 // pred_check_branch
      %22 = sbr.rel (0) target = $region9
    $region8: #{net_forward.1} parent=1 // pred_region
      %s24 = ssub.s32 5120, 5120
      %25 = vsyncadd [#allocation3], %s24
      %s26 = sshll.u32 [#allocation2], 4
      %s27 = int_to_ptr.vmem [resolvable:$true] %s26
      %32 = dma.hbm_to_vmem [thread:$0]  %s1, 5120, %s27, [#allocation3], 256, 256, 16
    $region9: #{net_forward.1} parent=1 // pred_fallthru
      _
    // Predicated region
    $region10: #{net_forward.1} parent=1 // pred_check
      _
    $region11: #{net_forward.1} parent=1 // pred_check_branch
      %34 = sbr.rel (0) target = $region13
    $region12: #{net_forward.1} parent=1 // pred_region
      %s36 = ssub.s32 32, 32
      %37 = vsyncadd [#allocation6], %s36
      %s39 = sshll.u32 [#allocation5], 4
      %s40 = int_to_ptr.vmem [resolvable:$true] %s39
      %42 = dma.hbm_to_vmem [thread:$0]  %s2, 32, %s40, [#allocation6]
    $region13: #{net_forward.1} parent=1 // pred_fallthru
      _
    // Predicated region
    $region14: #{net_forward.1} parent=1 // pred_check
      _
    $region15: #{net_forward.1} parent=1 // pred_check_branch
      %44 = sbr.rel (0) target = $region17
    $region16: #{net_forward.1} parent=1 // pred_region
      _
    $region17: #{net_forward.1} parent=1 // pred_fallthru
      _
    // Predicated region
    $region18: #{net_forward.1} parent=1 // pred_check
      _
    $region19: #{net_forward.1} parent=1 // pred_check_branch
      %46 = sbr.rel (0) target = $region21
    $region20: #{net_forward.1} parent=1 // pred_region
      %s48 = ssub.s32 32, 32
      %49 = vsyncadd [#allocation6], %s48
      %s51 = sshll.u32 [#allocation7], 4
      %s52 = int_to_ptr.vmem [resolvable:$true] %s51
      %54 = dma.hbm_to_vmem [thread:$0]  %s4, 32, %s52, [#allocation6]
    $region21: #{net_forward.1} parent=1 // pred_fallthru
      _
    // Predicated region
    $region22: #{net_forward.1} parent=1 // pred_check
      _
    $region23: #{net_forward.1} parent=1 // pred_check_branch
      %56 = sbr.rel (0) target = $region25
    $region24: #{net_forward.1} parent=1 // pred_region
      %s58 = ssub.s32 128000, 128000
      %59 = vsyncadd [#allocation9], %s58
      %s60 = sshll.u32 [#allocation8], 4
      %s61 = int_to_ptr.vmem [resolvable:$true] %s60
      %66 = dma.hbm_to_vmem [thread:$0]  %s5, 128000, %s61, [#allocation9], 512, 512, 32
    $region25: #{net_forward.1} parent=1 // pred_fallthru
      _
    // Predicated region
    $region26: #{net_forward.1} parent=1 // pred_check
      _
    $region27: #{net_forward.1} parent=1 // pred_check_branch
      %68 = sbr.rel (0) target = $region29
    $region28: #{net_forward.1} parent=1 // pred_region
      %s70 = ssub.s32 64, 64
      %71 = vsyncadd [#allocation9], %s70
      %s73 = sshll.u32 [#allocation10], 4
      %s74 = int_to_ptr.vmem [resolvable:$true] %s73
      %76 = dma.hbm_to_vmem [thread:$0]  %s6, 64, %s74, [#allocation9]
    $region29: #{net_forward.1} parent=1 // pred_fallthru
      _
    // Predicated region
    $region30: #{net_forward.1} parent=1 // pred_check
      _
    $region31: #{net_forward.1} parent=1 // pred_check_branch
      %78 = sbr.rel (0) target = $region33
    $region32: #{net_forward.1} parent=1 // pred_region
      _
    $region33: #{net_forward.1} parent=1 // pred_fallthru
      _
    // Predicated region
    $region34: #{net_forward.1} parent=1 // pred_check
      _
    $region35: #{net_forward.1} parent=1 // pred_check_branch
      %80 = sbr.rel (0) target = $region37
    $region36: #{net_forward.1} parent=1 // pred_region
      %s82 = ssub.s32 16, 16
      %83 = vsyncadd [#allocation12], %s82
      %s85 = sshll.u32 [#allocation11], 4
      %s86 = int_to_ptr.vmem [resolvable:$true] %s85
      %88 = dma.hbm_to_vmem [thread:$0]  %s8, 16, %s86, [#allocation12]
    $region37: #{net_forward.1} parent=1 // pred_fallthru
      _
    // Predicated region
    $region38: #{net_forward.1} parent=1 // pred_check
      _
    $region39: #{net_forward.1} parent=1 // pred_check_branch
      %90 = sbr.rel (0) target = $region41
    $region40: #{net_forward.1} parent=1 // pred_region
      %91 = dma.done [#allocation3], 5120
    $region41: #{net_forward.1} parent=1 // pred_fallthru
      _
    // Predicated region
    $region42: #{net_forward.1} parent=1 // pred_check
      _
    $region43: #{net_forward.1} parent=1 // pred_check_branch
      %93 = sbr.rel (0) target = $region45
    $region44: #{net_forward.1} parent=1 // pred_region
      %94 = dma.done [#allocation6], 32
    $region45: #{net_forward.1} parent=1 // pred_fallthru
      _
    // Predicated region
    $region46: #{net_forward.1} parent=1 // pred_check
      _
    $region47: #{net_forward.1} parent=1 // pred_check_branch
      %96 = sbr.rel (0) target = $region49
    $region48: #{net_forward.1} parent=1 // pred_region
      %97 = dma.done [#allocation6], 32
    $region49: #{net_forward.1} parent=1 // pred_fallthru
      _
    // Predicated region
    $region50: #{net_forward.1} parent=1 // pred_check
      _
    $region51: #{net_forward.1} parent=1 // pred_check_branch
      %99 = sbr.rel (0) target = $region53
    $region52: #{net_forward.1} parent=1 // pred_region
      %100 = dma.done [#allocation9], 128000
    $region53: #{net_forward.1} parent=1 // pred_fallthru
      _
    // Predicated region
    $region54: #{net_forward.1} parent=1 // pred_check
      _
    $region55: #{net_forward.1} parent=1 // pred_check_branch
      %102 = sbr.rel (0) target = $region57
    $region56: #{net_forward.1} parent=1 // pred_region
      %103 = dma.done [#allocation9], 64
    $region57: #{net_forward.1} parent=1 // pred_fallthru
      _
    // Predicated region
    $region58: #{net_forward.1} parent=1 // pred_check
      _
    $region59: #{net_forward.1} parent=1 // pred_check_branch
      %105 = sbr.rel (0) target = $region61
    $region60: #{net_forward.1} parent=1 // pred_region
      %106 = dma.done [#allocation12], 16
    $region61: #{net_forward.1} parent=1 // pred_fallthru
      _
    %v107 = vld [vmem:[%s0] sm:$0xff]
    %v108 = vld [vmem:[%s0 + $0x8] sm:$0xff]
    %v109 = vld [vmem:[%s0 + $0x10] sm:$0xff]
    %v110 = vld [vmem:[%s0 + $0x18] sm:$0xf]
    %v111 = vld [vmem:[%s0 + $0x20] sm:$0xff]
    %v112 = vld [vmem:[%s0 + $0x28] sm:$0xff]
    %v113 = vld [vmem:[%s0 + $0x30] sm:$0xff]
    %v114 = vld [vmem:[%s0 + $0x38] sm:$0xf]
    %v115 = vld [vmem:[#allocation2] sm:$0xff]
    %v116 = vld [vmem:[#allocation2 + $0x8] sm:$0xff]
    %v117 = vld [vmem:[#allocation2 + $0x10] sm:$0xff]
    %v118 = vld [vmem:[#allocation2 + $0x18] sm:$0xff]
    %v119 = vld [vmem:[#allocation2 + $0x20] sm:$0xff]
    %v120 = vld [vmem:[#allocation2 + $0x28] sm:$0xff]
    %v121 = vld [vmem:[#allocation2 + $0x30] sm:$0xf]
    %v122 = vld [vmem:[#allocation2 + $0x38] sm:$0xf]
    %vm131 = vcmask 1046528
    %v132 = vrot.slane %v107, 1
    %v133 = vrot.slane %v108, 1
    %v134 = vsel %vm131, %v132, %v133
    %v135 = vrot.slane %v109, 1
    %v136 = vsel %vm131, %v133, %v135
    %v137 = vrot.slane %v110, 1
    %v138 = vsel %vm131, %v135, %v137
    %v139 = vrot.slane %v111, 1
    %v140 = vrot.slane %v112, 1
    %v141 = vsel %vm131, %v139, %v140
    %v142 = vrot.slane %v113, 1
    %v143 = vsel %vm131, %v140, %v142
    %v144 = vrot.slane %v114, 1
    %v145 = vsel %vm131, %v142, %v144
    %s146 = scalar_lea.vmem [#allocation2], 64
    %v147 = vld [vmem:[%s146] sm:$0xff]
    %v148 = vld [vmem:[%s146 + $0x8] sm:$0xff]
    %v149 = vld [vmem:[%s146 + $0x10] sm:$0xff]
    %v150 = vld [vmem:[%s146 + $0x18] sm:$0xff]
    %v151 = vld [vmem:[%s146 + $0x20] sm:$0xff]
    %v152 = vld [vmem:[%s146 + $0x28] sm:$0xff]
    %v153 = vld [vmem:[%s146 + $0x30] sm:$0xf]
    %v154 = vld [vmem:[%s146 + $0x38] sm:$0xf]
    %vm155 = vcmask 228352
    %v156 = vsel %vm155, %v134, 0
    %v158 = vsel %vm155, %v136, 0
    %v160 = vsel %vm155, %v138, 0
    %v162 = vsel %vm155, %v141, 0
    %v164 = vsel %vm155, %v143, 0
    %v166 = vsel %vm155, %v145, 0
    %vm168 = vcmask 1043456
    %v170 = vsel %vm168, %v153, 0
    %v173 = vsel %vm168, %v154, 0
    %175 = vmatprep.subr.mxu0 %v148
    %176 = vmatpush1.msra.mxu0 %v147
    %177 = vmatprep.subr.mxu0 %v150
    %178 = vmatpush1.msra.mxu0 %v149
    %179 = vmatprep.subr.mxu0 %v152
    %180 = vmatpush1.msra.mxu0 %v151
    %181 = vmatprep.subr.mxu0 %v173
    %182 = vmatpush1.msra.mxu0 %v170
    %183 = vmatprep.subr.mxu0 0.0
    %184 = vmatpush1.msra.mxu0 0.0
    %185 = vmatprep.subr.mxu0 0.0
    %186 = vmatpush1.msra.mxu0 0.0
    %187 = vmatprep.subr.mxu0 0.0
    %188 = vmatpush1.msra.mxu0 0.0
    %189 = vmatprep.subr.mxu0 0.0
    %190 = vmatpush1.msra.mxu0 0.0
    %191 = vmatprep.subr.mxu0 0.0
    %192 = vmatpush1.msra.mxu0 0.0
    %193 = vmatprep.subr.mxu0 0.0
    %194 = vmatpush1.msra.mxu0 0.0
    %195 = vmatprep.subr.mxu0 0.0
    %196 = vmatpush1.msra.mxu0 0.0
    %197 = vmatprep.subr.mxu0 0.0
    %198 = vmatpush1.msra.mxu0 0.0
    %199 = vmatprep.subr.mxu0 0.0
    %200 = vmatpush1.msra.mxu0 0.0
    %201 = vmatprep.subr.mxu0 0.0
    %202 = vmatpush1.msra.mxu0 0.0
    %203 = vmatprep.subr.mxu0 0.0
    %204 = vmatpush1.msra.mxu0 0.0
    %205 = vmatprep.subr.mxu0 0.0
    %206 = vmatpush1.msra.mxu0 0.0
    %207 = vmatprep.subr.mxu0 0.0
    %208 = vmatpush1.msra.mxu0 0.0
    %209 = vmatprep.subr.mxu0 0.0
    %210 = vmatpush1.msra.mxu0 0.0
    %211 = vmatprep.subr.mxu0 0.0
    %212 = vmatpush1.msra.mxu0 0.0
    %213 = vmatprep.subr.mxu0 0.0
    %214 = vmatpush1.msra.mxu0 0.0
    %215 = vmatprep.subr.mxu0 0.0
    %216 = vmatpush1.msra.mxu0 0.0
    %217 = vmatprep.subr.mxu0 0.0
    %218 = vmatpush1.msra.mxu0 0.0
    %219 = vmatprep.subr.mxu0 0.0
    %220 = vmatpush1.msra.mxu0 0.0
    %221 = vmatprep.subr.mxu0 0.0
    %222 = vmatpush1.msra.mxu0 0.0
    %223 = vmatprep.subr.mxu0 0.0
    %224 = vmatpush1.msra.mxu0 0.0
    %225 = vmatprep.subr.mxu0 0.0
    %226 = vmatpush1.msra.mxu0 0.0
    %227 = vmatprep.subr.mxu0 0.0
    %228 = vmatpush1.msra.mxu0 0.0
    %229 = vmatprep.subr.mxu0 0.0
    %230 = vmatpush1.msra.mxu0 0.0
    %231 = vmatprep.subr.mxu0 0.0
    %232 = vmatpush1.msra.mxu0 0.0
    %233 = vmatprep.subr.mxu0 0.0
    %234 = vmatpush1.msra.mxu0 0.0
    %235 = vmatprep.subr.mxu0 0.0
    %236 = vmatpush1.msra.mxu0 0.0
    %237 = vmatprep.subr.mxu0 0.0
    %238 = vmatpush1.msra.mxu0 0.0
    %239 = vmatprep.mubr.f32.mxu0 0.0
    %240 = vmatmul.mubr.f32.gmra.mrb[0].mxu0 %v156
    %v241 = vpop.f32.mrb[0].mxu0
    %v242 = vadd.f32 0.0, %v241
    %v243 = vpop.f32.mrb[0].mxu0
    %v244 = vadd.f32 0.0, %v243
    %245 = vmatprep.mubr.f32.mxu0 0.0
    %246 = vmatmul.mubr.f32.gmra.mrb[0].mxu0 %v158
    %v247 = vpop.f32.mrb[0].mxu0
    %v248 = vadd.f32 0.0, %v247
    %v249 = vpop.f32.mrb[0].mxu0
    %v250 = vadd.f32 0.0, %v249
    %251 = vmatprep.mubr.f32.mxu0 0.0
    %252 = vmatmul.mubr.f32.gmra.mrb[0].mxu0 %v160
    %v253 = vpop.f32.mrb[0].mxu0
    %v254 = vadd.f32 0.0, %v253
    %v255 = vpop.f32.mrb[0].mxu0
    %v256 = vadd.f32 0.0, %v255
    %257 = vmatprep.mubr.f32.mxu0 0.0
    %258 = vmatmul.mubr.f32.gmra.mrb[0].mxu0 %v162
    %v259 = vpop.f32.mrb[0].mxu0
    %v260 = vadd.f32 0.0, %v259
    %v261 = vpop.f32.mrb[0].mxu0
    %v262 = vadd.f32 0.0, %v261
    %263 = vmatprep.mubr.f32.mxu0 0.0
    %264 = vmatmul.mubr.f32.gmra.mrb[0].mxu0 %v164
    %v265 = vpop.f32.mrb[0].mxu0
    %v266 = vadd.f32 0.0, %v265
    %v267 = vpop.f32.mrb[0].mxu0
    %v268 = vadd.f32 0.0, %v267
    %269 = vmatprep.mubr.f32.mxu0 0.0
    %270 = vmatmul.mubr.f32.gmra.mrb[0].mxu0 %v166
    %v271 = vpop.f32.mrb[0].mxu0
    %v272 = vadd.f32 0.0, %v271
    %v273 = vpop.f32.mrb[0].mxu0
    %v274 = vadd.f32 0.0, %v273
    %275 = vdwg.mxu0
    %v276 = vsel %vm155, %v107, 0
    %v278 = vsel %vm155, %v108, 0
    %v280 = vsel %vm155, %v109, 0
    %v282 = vsel %vm155, %v111, 0
    %v284 = vsel %vm155, %v112, 0
    %v286 = vsel %vm155, %v113, 0
    %v289 = vsel %vm168, %v121, 0
    %v292 = vsel %vm168, %v122, 0
    %294 = vmatprep.subr.mxu0 %v116
    %295 = vmatpush1.msra.mxu0 %v115
    %296 = vmatprep.subr.mxu0 %v118
    %297 = vmatpush1.msra.mxu0 %v117
    %298 = vmatprep.subr.mxu0 %v120
    %299 = vmatpush1.msra.mxu0 %v119
    %300 = vmatprep.subr.mxu0 %v292
    %301 = vmatpush1.msra.mxu0 %v289
    %302 = vmatprep.subr.mxu0 0.0
    %303 = vmatpush1.msra.mxu0 0.0
    %304 = vmatprep.subr.mxu0 0.0
    %305 = vmatpush1.msra.mxu0 0.0
    %306 = vmatprep.subr.mxu0 0.0
    %307 = vmatpush1.msra.mxu0 0.0
    %308 = vmatprep.subr.mxu0 0.0
    %309 = vmatpush1.msra.mxu0 0.0
    %310 = vmatprep.subr.mxu0 0.0
    %311 = vmatpush1.msra.mxu0 0.0
    %312 = vmatprep.subr.mxu0 0.0
    %313 = vmatpush1.msra.mxu0 0.0
    %314 = vmatprep.subr.mxu0 0.0
    %315 = vmatpush1.msra.mxu0 0.0
    %316 = vmatprep.subr.mxu0 0.0
    %317 = vmatpush1.msra.mxu0 0.0
    %318 = vmatprep.subr.mxu0 0.0
    %319 = vmatpush1.msra.mxu0 0.0
    %320 = vmatprep.subr.mxu0 0.0
    %321 = vmatpush1.msra.mxu0 0.0
    %322 = vmatprep.subr.mxu0 0.0
    %323 = vmatpush1.msra.mxu0 0.0
    %324 = vmatprep.subr.mxu0 0.0
    %325 = vmatpush1.msra.mxu0 0.0
    %326 = vmatprep.subr.mxu0 0.0
    %327 = vmatpush1.msra.mxu0 0.0
    %328 = vmatprep.subr.mxu0 0.0
    %329 = vmatpush1.msra.mxu0 0.0
    %330 = vmatprep.subr.mxu0 0.0
    %331 = vmatpush1.msra.mxu0 0.0
    %332 = vmatprep.subr.mxu0 0.0
    %333 = vmatpush1.msra.mxu0 0.0
    %334 = vmatprep.subr.mxu0 0.0
    %335 = vmatpush1.msra.mxu0 0.0
    %336 = vmatprep.subr.mxu0 0.0
    %337 = vmatpush1.msra.mxu0 0.0
    %338 = vmatprep.subr.mxu0 0.0
    %339 = vmatpush1.msra.mxu0 0.0
    %340 = vmatprep.subr.mxu0 0.0
    %341 = vmatpush1.msra.mxu0 0.0
    %342 = vmatprep.subr.mxu0 0.0
    %343 = vmatpush1.msra.mxu0 0.0
    %344 = vmatprep.subr.mxu0 0.0
    %345 = vmatpush1.msra.mxu0 0.0
    %346 = vmatprep.subr.mxu0 0.0
    %347 = vmatpush1.msra.mxu0 0.0
    %348 = vmatprep.subr.mxu0 0.0
    %349 = vmatpush1.msra.mxu0 0.0
    %350 = vmatprep.subr.mxu0 0.0
    %351 = vmatpush1.msra.mxu0 0.0
    %352 = vmatprep.subr.mxu0 0.0
    %353 = vmatpush1.msra.mxu0 0.0
    %354 = vmatprep.subr.mxu0 0.0
    %355 = vmatpush1.msra.mxu0 0.0
    %356 = vmatprep.subr.mxu0 0.0
    %357 = vmatpush1.msra.mxu0 0.0
    %358 = vmatprep.mubr.f32.mxu0 0.0
    %359 = vmatmul.mubr.f32.gmra.mrb[0].mxu0 %v276
    %v360 = vpop.f32.mrb[0].mxu0
    %v361 = vadd.f32 %v242, %v360
    %v362 = vpop.f32.mrb[0].mxu0
    %v363 = vadd.f32 %v244, %v362
    %364 = vmatprep.mubr.f32.mxu0 0.0
    %365 = vmatmul.mubr.f32.gmra.mrb[0].mxu0 %v278
    %v366 = vpop.f32.mrb[0].mxu0
    %v367 = vadd.f32 %v248, %v366
    %v368 = vpop.f32.mrb[0].mxu0
    %v369 = vadd.f32 %v250, %v368
    %370 = vmatprep.mubr.f32.mxu0 0.0
    %371 = vmatmul.mubr.f32.gmra.mrb[0].mxu0 %v280
    %v372 = vpop.f32.mrb[0].mxu0
    %v373 = vadd.f32 %v254, %v372
    %v374 = vpop.f32.mrb[0].mxu0
    %v375 = vadd.f32 %v256, %v374
    %376 = vmatprep.mubr.f32.mxu0 0.0
    %377 = vmatmul.mubr.f32.gmra.mrb[0].mxu0 %v282
    %v378 = vpop.f32.mrb[0].mxu0
    %v379 = vadd.f32 %v260, %v378
    %v380 = vpop.f32.mrb[0].mxu0
    %v381 = vadd.f32 %v262, %v380
    %382 = vmatprep.mubr.f32.mxu0 0.0
    %383 = vmatmul.mubr.f32.gmra.mrb[0].mxu0 %v284
    %v384 = vpop.f32.mrb[0].mxu0
    %v385 = vadd.f32 %v266, %v384
    %v386 = vpop.f32.mrb[0].mxu0
    %v387 = vadd.f32 %v268, %v386
    %388 = vmatprep.mubr.f32.mxu0 0.0
    %389 = vmatmul.mubr.f32.gmra.mrb[0].mxu0 %v286
    %v390 = vpop.f32.mrb[0].mxu0
    %v391 = vadd.f32 %v272, %v390
    %v392 = vpop.f32.mrb[0].mxu0
    %v393 = vadd.f32 %v274, %v392
    %394 = vdwg.mxu0
    %vm395 = vcmask 1045504
    %v396 = vrot.slane %v107, 2
    %v397 = vrot.slane %v108, 2
    %v398 = vsel %vm395, %v396, %v397
    %v399 = vrot.slane %v109, 2
    %v400 = vsel %vm395, %v397, %v399
    %v401 = vrot.slane %v110, 2
    %v402 = vsel %vm395, %v399, %v401
    %v403 = vrot.slane %v111, 2
    %v404 = vrot.slane %v112, 2
    %v405 = vsel %vm395, %v403, %v404
    %v406 = vrot.slane %v113, 2
    %v407 = vsel %vm395, %v404, %v406
    %v408 = vrot.slane %v114, 2
    %v409 = vsel %vm395, %v406, %v408
    %s410 = scalar_lea.vmem [#allocation2], 128
    %v411 = vld [vmem:[%s410] sm:$0xff]
    %v412 = vld [vmem:[%s410 + $0x8] sm:$0xff]
    %v413 = vld [vmem:[%s410 + $0x10] sm:$0xff]
    %v414 = vld [vmem:[%s410 + $0x18] sm:$0xff]
    %v415 = vld [vmem:[%s410 + $0x20] sm:$0xff]
    %v416 = vld [vmem:[%s410 + $0x28] sm:$0xff]
    %v417 = vld [vmem:[%s410 + $0x30] sm:$0xf]
    %v418 = vld [vmem:[%s410 + $0x38] sm:$0xf]
    %v419 = vsel %vm155, %v398, 0
    %v421 = vsel %vm155, %v400, 0
    %v423 = vsel %vm155, %v402, 0
    %v425 = vsel %vm155, %v405, 0
    %v427 = vsel %vm155, %v407, 0
    %v429 = vsel %vm155, %v409, 0
    %v432 = vsel %vm168, %v417, 0
    %v435 = vsel %vm168, %v418, 0
    %437 = vmatprep.subr.mxu0 %v412
    %438 = vmatpush1.msra.mxu0 %v411
    %439 = vmatprep.subr.mxu0 %v414
    %440 = vmatpush1.msra.mxu0 %v413
    %441 = vmatprep.subr.mxu0 %v416
    %442 = vmatpush1.msra.mxu0 %v415
    %443 = vmatprep.subr.mxu0 %v435
    %444 = vmatpush1.msra.mxu0 %v432
    %445 = vmatprep.subr.mxu0 0.0
    %446 = vmatpush1.msra.mxu0 0.0
    %447 = vmatprep.subr.mxu0 0.0
    %448 = vmatpush1.msra.mxu0 0.0
    %449 = vmatprep.subr.mxu0 0.0
    %450 = vmatpush1.msra.mxu0 0.0
    %451 = vmatprep.subr.mxu0 0.0
    %452 = vmatpush1.msra.mxu0 0.0
    %453 = vmatprep.subr.mxu0 0.0
    %454 = vmatpush1.msra.mxu0 0.0
    %455 = vmatprep.subr.mxu0 0.0
    %456 = vmatpush1.msra.mxu0 0.0
    %457 = vmatprep.subr.mxu0 0.0
    %458 = vmatpush1.msra.mxu0 0.0
    %459 = vmatprep.subr.mxu0 0.0
    %460 = vmatpush1.msra.mxu0 0.0
    %461 = vmatprep.subr.mxu0 0.0
    %462 = vmatpush1.msra.mxu0 0.0
    %463 = vmatprep.subr.mxu0 0.0
    %464 = vmatpush1.msra.mxu0 0.0
    %465 = vmatprep.subr.mxu0 0.0
    %466 = vmatpush1.msra.mxu0 0.0
    %467 = vmatprep.subr.mxu0 0.0
    %468 = vmatpush1.msra.mxu0 0.0
    %469 = vmatprep.subr.mxu0 0.0
    %470 = vmatpush1.msra.mxu0 0.0
    %471 = vmatprep.subr.mxu0 0.0
    %472 = vmatpush1.msra.mxu0 0.0
    %473 = vmatprep.subr.mxu0 0.0
    %474 = vmatpush1.msra.mxu0 0.0
    %475 = vmatprep.subr.mxu0 0.0
    %476 = vmatpush1.msra.mxu0 0.0
    %477 = vmatprep.subr.mxu0 0.0
    %478 = vmatpush1.msra.mxu0 0.0
    %479 = vmatprep.subr.mxu0 0.0
    %480 = vmatpush1.msra.mxu0 0.0
    %481 = vmatprep.subr.mxu0 0.0
    %482 = vmatpush1.msra.mxu0 0.0
    %483 = vmatprep.subr.mxu0 0.0
    %484 = vmatpush1.msra.mxu0 0.0
    %485 = vmatprep.subr.mxu0 0.0
    %486 = vmatpush1.msra.mxu0 0.0
    %487 = vmatprep.subr.mxu0 0.0
    %488 = vmatpush1.msra.mxu0 0.0
    %489 = vmatprep.subr.mxu0 0.0
    %490 = vmatpush1.msra.mxu0 0.0
    %491 = vmatprep.subr.mxu0 0.0
    %492 = vmatpush1.msra.mxu0 0.0
    %493 = vmatprep.subr.mxu0 0.0
    %494 = vmatpush1.msra.mxu0 0.0
    %495 = vmatprep.subr.mxu0 0.0
    %496 = vmatpush1.msra.mxu0 0.0
    %497 = vmatprep.subr.mxu0 0.0
    %498 = vmatpush1.msra.mxu0 0.0
    %499 = vmatprep.subr.mxu0 0.0
    %500 = vmatpush1.msra.mxu0 0.0
    %501 = vmatprep.mubr.f32.mxu0 0.0
    %502 = vmatmul.mubr.f32.gmra.mrb[0].mxu0 %v419
    %v503 = vpop.f32.mrb[0].mxu0
    %v504 = vadd.f32 0.0, %v503
    %v505 = vpop.f32.mrb[0].mxu0
    %v506 = vadd.f32 0.0, %v505
    %507 = vmatprep.mubr.f32.mxu0 0.0
    %508 = vmatmul.mubr.f32.gmra.mrb[0].mxu0 %v421
    %v509 = vpop.f32.mrb[0].mxu0
    %v510 = vadd.f32 0.0, %v509
    %v511 = vpop.f32.mrb[0].mxu0
    %v512 = vadd.f32 0.0, %v511
    %513 = vmatprep.mubr.f32.mxu0 0.0
    %514 = vmatmul.mubr.f32.gmra.mrb[0].mxu0 %v423
    %v515 = vpop.f32.mrb[0].mxu0
    %v516 = vadd.f32 0.0, %v515
    %v517 = vpop.f32.mrb[0].mxu0
    %v518 = vadd.f32 0.0, %v517
    %519 = vmatprep.mubr.f32.mxu0 0.0
    %520 = vmatmul.mubr.f32.gmra.mrb[0].mxu0 %v425
    %v521 = vpop.f32.mrb[0].mxu0
    %v522 = vadd.f32 0.0, %v521
    %v523 = vpop.f32.mrb[0].mxu0
    %v524 = vadd.f32 0.0, %v523
    %525 = vmatprep.mubr.f32.mxu0 0.0
    %526 = vmatmul.mubr.f32.gmra.mrb[0].mxu0 %v427
    %v527 = vpop.f32.mrb[0].mxu0
    %v528 = vadd.f32 0.0, %v527
    %v529 = vpop.f32.mrb[0].mxu0
    %v530 = vadd.f32 0.0, %v529
    %531 = vmatprep.mubr.f32.mxu0 0.0
    %532 = vmatmul.mubr.f32.gmra.mrb[0].mxu0 %v429
    %v533 = vpop.f32.mrb[0].mxu0
    %v534 = vadd.f32 0.0, %v533
    %v535 = vpop.f32.mrb[0].mxu0
    %v536 = vadd.f32 0.0, %v535
    %537 = vdwg.mxu0
    %v538 = vadd.f32 %v361, %v504
    %v539 = vadd.f32 %v363, %v506
    %v540 = vadd.f32 %v367, %v510
    %v541 = vadd.f32 %v369, %v512
    %v542 = vadd.f32 %v373, %v516
    %v543 = vadd.f32 %v375, %v518
    %v544 = vadd.f32 %v379, %v522
    %v545 = vadd.f32 %v381, %v524
    %v546 = vadd.f32 %v385, %v528
    %v547 = vadd.f32 %v387, %v530
    %v548 = vadd.f32 %v391, %v534
    %v549 = vadd.f32 %v393, %v536
    %vm550 = vcmask 1044480
    %v551 = vrot.slane %v107, 3
    %v552 = vrot.slane %v108, 3
    %v553 = vsel %vm550, %v551, %v552
    %v554 = vrot.slane %v109, 3
    %v555 = vsel %vm550, %v552, %v554
    %v556 = vrot.slane %v110, 3
    %v557 = vsel %vm550, %v554, %v556
    %v558 = vrot.slane %v111, 3
    %v559 = vrot.slane %v112, 3
    %v560 = vsel %vm550, %v558, %v559
    %v561 = vrot.slane %v113, 3
    %v562 = vsel %vm550, %v559, %v561
    %v563 = vrot.slane %v114, 3
    %v564 = vsel %vm550, %v561, %v563
    %s565 = scalar_lea.vmem [#allocation2], 192
    %v566 = vld [vmem:[%s565] sm:$0xff]
    %v567 = vld [vmem:[%s565 + $0x8] sm:$0xff]
    %v568 = vld [vmem:[%s565 + $0x10] sm:$0xff]
    %v569 = vld [vmem:[%s565 + $0x18] sm:$0xff]
    %v570 = vld [vmem:[%s565 + $0x20] sm:$0xff]
    %v571 = vld [vmem:[%s565 + $0x28] sm:$0xff]
    %v572 = vld [vmem:[%s565 + $0x30] sm:$0xf]
    %v573 = vld [vmem:[%s565 + $0x38] sm:$0xf]
    %v574 = vsel %vm155, %v553, 0
    %v576 = vsel %vm155, %v555, 0
    %v578 = vsel %vm155, %v557, 0
    %v580 = vsel %vm155, %v560, 0
    %v582 = vsel %vm155, %v562, 0
    %v584 = vsel %vm155, %v564, 0
    %v587 = vsel %vm168, %v572, 0
    %v590 = vsel %vm168, %v573, 0
    %592 = vmatprep.subr.mxu0 %v567
    %593 = vmatpush1.msra.mxu0 %v566
    %594 = vmatprep.subr.mxu0 %v569
    %595 = vmatpush1.msra.mxu0 %v568
    %596 = vmatprep.subr.mxu0 %v571
    %597 = vmatpush1.msra.mxu0 %v570
    %598 = vmatprep.subr.mxu0 %v590
    %599 = vmatpush1.msra.mxu0 %v587
    %600 = vmatprep.subr.mxu0 0.0
    %601 = vmatpush1.msra.mxu0 0.0
    %602 = vmatprep.subr.mxu0 0.0
    %603 = vmatpush1.msra.mxu0 0.0
    %604 = vmatprep.subr.mxu0 0.0
    %605 = vmatpush1.msra.mxu0 0.0
    %606 = vmatprep.subr.mxu0 0.0
    %607 = vmatpush1.msra.mxu0 0.0
    %608 = vmatprep.subr.mxu0 0.0
    %609 = vmatpush1.msra.mxu0 0.0
    %610 = vmatprep.subr.mxu0 0.0
    %611 = vmatpush1.msra.mxu0 0.0
    %612 = vmatprep.subr.mxu0 0.0
    %613 = vmatpush1.msra.mxu0 0.0
    %614 = vmatprep.subr.mxu0 0.0
    %615 = vmatpush1.msra.mxu0 0.0
    %616 = vmatprep.subr.mxu0 0.0
    %617 = vmatpush1.msra.mxu0 0.0
    %618 = vmatprep.subr.mxu0 0.0
    %619 = vmatpush1.msra.mxu0 0.0
    %620 = vmatprep.subr.mxu0 0.0
    %621 = vmatpush1.msra.mxu0 0.0
    %622 = vmatprep.subr.mxu0 0.0
    %623 = vmatpush1.msra.mxu0 0.0
    %624 = vmatprep.subr.mxu0 0.0
    %625 = vmatpush1.msra.mxu0 0.0
    %626 = vmatprep.subr.mxu0 0.0
    %627 = vmatpush1.msra.mxu0 0.0
    %628 = vmatprep.subr.mxu0 0.0
    %629 = vmatpush1.msra.mxu0 0.0
    %630 = vmatprep.subr.mxu0 0.0
    %631 = vmatpush1.msra.mxu0 0.0
    %632 = vmatprep.subr.mxu0 0.0
    %633 = vmatpush1.msra.mxu0 0.0
    %634 = vmatprep.subr.mxu0 0.0
    %635 = vmatpush1.msra.mxu0 0.0
    %636 = vmatprep.subr.mxu0 0.0
    %637 = vmatpush1.msra.mxu0 0.0
    %638 = vmatprep.subr.mxu0 0.0
    %639 = vmatpush1.msra.mxu0 0.0
    %640 = vmatprep.subr.mxu0 0.0
    %641 = vmatpush1.msra.mxu0 0.0
    %642 = vmatprep.subr.mxu0 0.0
    %643 = vmatpush1.msra.mxu0 0.0
    %644 = vmatprep.subr.mxu0 0.0
    %645 = vmatpush1.msra.mxu0 0.0
    %646 = vmatprep.subr.mxu0 0.0
    %647 = vmatpush1.msra.mxu0 0.0
    %648 = vmatprep.subr.mxu0 0.0
    %649 = vmatpush1.msra.mxu0 0.0
    %650 = vmatprep.subr.mxu0 0.0
    %651 = vmatpush1.msra.mxu0 0.0
    %652 = vmatprep.subr.mxu0 0.0
    %653 = vmatpush1.msra.mxu0 0.0
    %654 = vmatprep.subr.mxu0 0.0
    %655 = vmatpush1.msra.mxu0 0.0
    %656 = vmatprep.mubr.f32.mxu0 0.0
    %657 = vmatmul.mubr.f32.gmra.mrb[0].mxu0 %v574
    %v658 = vpop.f32.mrb[0].mxu0
    %v659 = vadd.f32 0.0, %v658
    %v660 = vpop.f32.mrb[0].mxu0
    %v661 = vadd.f32 0.0, %v660
    %662 = vmatprep.mubr.f32.mxu0 0.0
    %663 = vmatmul.mubr.f32.gmra.mrb[0].mxu0 %v576
    %v664 = vpop.f32.mrb[0].mxu0
    %v665 = vadd.f32 0.0, %v664
    %v666 = vpop.f32.mrb[0].mxu0
    %v667 = vadd.f32 0.0, %v666
    %668 = vmatprep.mubr.f32.mxu0 0.0
    %669 = vmatmul.mubr.f32.gmra.mrb[0].mxu0 %v578
    %v670 = vpop.f32.mrb[0].mxu0
    %v671 = vadd.f32 0.0, %v670
    %v672 = vpop.f32.mrb[0].mxu0
    %v673 = vadd.f32 0.0, %v672
    %674 = vmatprep.mubr.f32.mxu0 0.0
    %675 = vmatmul.mubr.f32.gmra.mrb[0].mxu0 %v580
    %v676 = vpop.f32.mrb[0].mxu0
    %v677 = vadd.f32 0.0, %v676
    %v678 = vpop.f32.mrb[0].mxu0
    %v679 = vadd.f32 0.0, %v678
    %680 = vmatprep.mubr.f32.mxu0 0.0
    %681 = vmatmul.mubr.f32.gmra.mrb[0].mxu0 %v582
    %v682 = vpop.f32.mrb[0].mxu0
    %v683 = vadd.f32 0.0, %v682
    %v684 = vpop.f32.mrb[0].mxu0
    %v685 = vadd.f32 0.0, %v684
    %686 = vmatprep.mubr.f32.mxu0 0.0
    %687 = vmatmul.mubr.f32.gmra.mrb[0].mxu0 %v584
    %v688 = vpop.f32.mrb[0].mxu0
    %v689 = vadd.f32 0.0, %v688
    %v690 = vpop.f32.mrb[0].mxu0
    %v691 = vadd.f32 0.0, %v690
    %692 = vdwg.mxu0
    %v693 = vadd.f32 %v538, %v659
    %v694 = vadd.f32 %v539, %v661
    %v695 = vadd.f32 %v540, %v665
    %v696 = vadd.f32 %v541, %v667
    %v697 = vadd.f32 %v542, %v671
    %v698 = vadd.f32 %v543, %v673
    %v699 = vadd.f32 %v544, %v677
    %v700 = vadd.f32 %v545, %v679
    %v701 = vadd.f32 %v546, %v683
    %v702 = vadd.f32 %v547, %v685
    %v703 = vadd.f32 %v548, %v689
    %v704 = vadd.f32 %v549, %v691
    %v705 = vrot.slane %v107, 4
    %v706 = vrot.slane %v108, 4
    %v707 = vsel %vm168, %v705, %v706
    %v708 = vrot.slane %v109, 4
    %v709 = vsel %vm168, %v706, %v708
    %v710 = vrot.slane %v110, 4
    %v711 = vsel %vm168, %v708, %v710
    %v712 = vrot.slane %v111, 4
    %v713 = vrot.slane %v112, 4
    %v714 = vsel %vm168, %v712, %v713
    %v715 = vrot.slane %v113, 4
    %v716 = vsel %vm168, %v713, %v715
    %v717 = vrot.slane %v114, 4
    %v718 = vsel %vm168, %v715, %v717
    %s719 = scalar_lea.vmem [#allocation2], 256
    %v720 = vld [vmem:[%s719] sm:$0xff]
    %v721 = vld [vmem:[%s719 + $0x8] sm:$0xff]
    %v722 = vld [vmem:[%s719 + $0x10] sm:$0xff]
    %v723 = vld [vmem:[%s719 + $0x18] sm:$0xff]
    %v724 = vld [vmem:[%s719 + $0x20] sm:$0xff]
    %v725 = vld [vmem:[%s719 + $0x28] sm:$0xff]
    %v726 = vld [vmem:[%s719 + $0x30] sm:$0xf]
    %v727 = vld [vmem:[%s719 + $0x38] sm:$0xf]
    %v728 = vsel %vm155, %v707, 0
    %v730 = vsel %vm155, %v709, 0
    %v732 = vsel %vm155, %v711, 0
    %v734 = vsel %vm155, %v714, 0
    %v736 = vsel %vm155, %v716, 0
    %v738 = vsel %vm155, %v718, 0
    %v741 = vsel %vm168, %v726, 0
    %v744 = vsel %vm168, %v727, 0
    %746 = vmatprep.subr.mxu0 %v721
    %747 = vmatpush1.msra.mxu0 %v720
    %748 = vmatprep.subr.mxu0 %v723
    %749 = vmatpush1.msra.mxu0 %v722
    %750 = vmatprep.subr.mxu0 %v725
    %751 = vmatpush1.msra.mxu0 %v724
    %752 = vmatprep.subr.mxu0 %v744
    %753 = vmatpush1.msra.mxu0 %v741
    %754 = vmatprep.subr.mxu0 0.0
    %755 = vmatpush1.msra.mxu0 0.0
    %756 = vmatprep.subr.mxu0 0.0
    %757 = vmatpush1.msra.mxu0 0.0
    %758 = vmatprep.subr.mxu0 0.0
    %759 = vmatpush1.msra.mxu0 0.0
    %760 = vmatprep.subr.mxu0 0.0
    %761 = vmatpush1.msra.mxu0 0.0
    %762 = vmatprep.subr.mxu0 0.0
    %763 = vmatpush1.msra.mxu0 0.0
    %764 = vmatprep.subr.mxu0 0.0
    %765 = vmatpush1.msra.mxu0 0.0
    %766 = vmatprep.subr.mxu0 0.0
    %767 = vmatpush1.msra.mxu0 0.0
    %768 = vmatprep.subr.mxu0 0.0
    %769 = vmatpush1.msra.mxu0 0.0
    %770 = vmatprep.subr.mxu0 0.0
    %771 = vmatpush1.msra.mxu0 0.0
    %772 = vmatprep.subr.mxu0 0.0
    %773 = vmatpush1.msra.mxu0 0.0
    %774 = vmatprep.subr.mxu0 0.0
    %775 = vmatpush1.msra.mxu0 0.0
    %776 = vmatprep.subr.mxu0 0.0
    %777 = vmatpush1.msra.mxu0 0.0
    %778 = vmatprep.subr.mxu0 0.0
    %779 = vmatpush1.msra.mxu0 0.0
    %780 = vmatprep.subr.mxu0 0.0
    %781 = vmatpush1.msra.mxu0 0.0
    %782 = vmatprep.subr.mxu0 0.0
    %783 = vmatpush1.msra.mxu0 0.0
    %784 = vmatprep.subr.mxu0 0.0
    %785 = vmatpush1.msra.mxu0 0.0
    %786 = vmatprep.subr.mxu0 0.0
    %787 = vmatpush1.msra.mxu0 0.0
    %788 = vmatprep.subr.mxu0 0.0
    %789 = vmatpush1.msra.mxu0 0.0
    %790 = vmatprep.subr.mxu0 0.0
    %791 = vmatpush1.msra.mxu0 0.0
    %792 = vmatprep.subr.mxu0 0.0
    %793 = vmatpush1.msra.mxu0 0.0
    %794 = vmatprep.subr.mxu0 0.0
    %795 = vmatpush1.msra.mxu0 0.0
    %796 = vmatprep.subr.mxu0 0.0
    %797 = vmatpush1.msra.mxu0 0.0
    %798 = vmatprep.subr.mxu0 0.0
    %799 = vmatpush1.msra.mxu0 0.0
    %800 = vmatprep.subr.mxu0 0.0
    %801 = vmatpush1.msra.mxu0 0.0
    %802 = vmatprep.subr.mxu0 0.0
    %803 = vmatpush1.msra.mxu0 0.0
    %804 = vmatprep.subr.mxu0 0.0
    %805 = vmatpush1.msra.mxu0 0.0
    %806 = vmatprep.subr.mxu0 0.0
    %807 = vmatpush1.msra.mxu0 0.0
    %808 = vmatprep.subr.mxu0 0.0
    %809 = vmatpush1.msra.mxu0 0.0
    %810 = vmatprep.mubr.f32.mxu0 0.0
    %811 = vmatmul.mubr.f32.gmra.mrb[0].mxu0 %v728
    %v812 = vpop.f32.mrb[0].mxu0
    %v813 = vadd.f32 0.0, %v812
    %v814 = vpop.f32.mrb[0].mxu0
    %v815 = vadd.f32 0.0, %v814
    %816 = vmatprep.mubr.f32.mxu0 0.0
    %817 = vmatmul.mubr.f32.gmra.mrb[0].mxu0 %v730
    %v818 = vpop.f32.mrb[0].mxu0
    %v819 = vadd.f32 0.0, %v818
    %v820 = vpop.f32.mrb[0].mxu0
    %v821 = vadd.f32 0.0, %v820
    %822 = vmatprep.mubr.f32.mxu0 0.0
    %823 = vmatmul.mubr.f32.gmra.mrb[0].mxu0 %v732
    %v824 = vpop.f32.mrb[0].mxu0
    %v825 = vadd.f32 0.0, %v824
    %v826 = vpop.f32.mrb[0].mxu0
    %v827 = vadd.f32 0.0, %v826
    %828 = vmatprep.mubr.f32.mxu0 0.0
    %829 = vmatmul.mubr.f32.gmra.mrb[0].mxu0 %v734
    %v830 = vpop.f32.mrb[0].mxu0
    %v831 = vadd.f32 0.0, %v830
    %v832 = vpop.f32.mrb[0].mxu0
    %v833 = vadd.f32 0.0, %v832
    %834 = vmatprep.mubr.f32.mxu0 0.0
    %835 = vmatmul.mubr.f32.gmra.mrb[0].mxu0 %v736
    %v836 = vpop.f32.mrb[0].mxu0
    %v837 = vadd.f32 0.0, %v836
    %v838 = vpop.f32.mrb[0].mxu0
    %v839 = vadd.f32 0.0, %v838
    %840 = vmatprep.mubr.f32.mxu0 0.0
    %841 = vmatmul.mubr.f32.gmra.mrb[0].mxu0 %v738
    %v842 = vpop.f32.mrb[0].mxu0
    %v843 = vadd.f32 0.0, %v842
    %v844 = vpop.f32.mrb[0].mxu0
    %v845 = vadd.f32 0.0, %v844
    %846 = vdwg.mxu0
    %v847 = vadd.f32 %v693, %v813
    %v848 = vadd.f32 %v694, %v815
    %v849 = vadd.f32 %v695, %v819
    %v850 = vadd.f32 %v696, %v821
    %v851 = vadd.f32 %v697, %v825
    %v852 = vadd.f32 %v698, %v827
    %v853 = vadd.f32 %v699, %v831
    %v854 = vadd.f32 %v700, %v833
    %v855 = vadd.f32 %v701, %v837
    %v856 = vadd.f32 %v702, %v839
    %v857 = vadd.f32 %v703, %v843
    %v858 = vadd.f32 %v704, %v845
    %v859 = vld [vmem:[#allocation5] sm:$0x3]
    %v861 = vlaneseq
    %v862 = vshrl.u32 %v861, 7
    %v863 = vsub.s32 0, %v862
    %v864 = vrot.slane %v859, %v863
    %v865 = vlaneseq
    %v866 = vshrl.u32 %v865, 7
    %v867 = vsub.s32 1, %v866
    %v868 = vrot.slane %v859, %v867
    %v871 = vadd.f32 %v847, %v864
    %v872 = vadd.f32 %v848, %v868
    %v873 = vadd.f32 %v849, %v864
    %v874 = vadd.f32 %v850, %v868
    %v875 = vadd.f32 %v851, %v864
    %v876 = vadd.f32 %v852, %v868
    %v877 = vadd.f32 %v853, %v864
    %v878 = vadd.f32 %v854, %v868
    %v879 = vadd.f32 %v855, %v864
    %v880 = vadd.f32 %v856, %v868
    %v881 = vadd.f32 %v857, %v864
    %v882 = vadd.f32 %v858, %v868
    %v883 = vmax.f32 %v871, 0.0
    %v884 = vmax.f32 %v872, 0.0
    %v885 = vmax.f32 %v873, 0.0
    %v886 = vmax.f32 %v874, 0.0
    %v887 = vmax.f32 %v875, 0.0
    %v888 = vmax.f32 %v876, 0.0
    %v889 = vmax.f32 %v877, 0.0
    %v890 = vmax.f32 %v878, 0.0
    %v891 = vmax.f32 %v879, 0.0
    %v892 = vmax.f32 %v880, 0.0
    %v893 = vmax.f32 %v881, 0.0
    %v894 = vmax.f32 %v882, 0.0
    %v907 = vcombine.low %v883, %v884
    %v908 = vcombine.high %v883, %v884
    %v910 = vunpack.c.l.s4 1983009808
    %v911 = vunpack.c.0.s8 %v910
    %v912 = vlaneseq
    %v913 = vshrl.u32 %v912, 7
    %v914 = vsub.s32 %v911, %v913
    %v915 = vrot.slane %v907, %v914
    %v917 = vunpack.c.l.s4 1983009808
    %v918 = vunpack.c.0.s8 %v917
    %v919 = vlaneseq
    %v920 = vshrl.u32 %v919, 7
    %v921 = vsub.s32 %v918, %v920
    %v922 = vrot.slane %v908, %v921
    %v923 = vcombine.high %v915, %v915
    %v924 = vcombine.high %v922, %v922
    %v925 = vcombine.low %v885, %v886
    %v926 = vcombine.high %v885, %v886
    %v928 = vunpack.c.l.s4 1983009808
    %v929 = vunpack.c.0.s8 %v928
    %v930 = vlaneseq
    %v931 = vshrl.u32 %v930, 7
    %v932 = vsub.s32 %v929, %v931
    %v933 = vrot.slane %v925, %v932
    %v935 = vunpack.c.l.s4 1983009808
    %v936 = vunpack.c.0.s8 %v935
    %v937 = vlaneseq
    %v938 = vshrl.u32 %v937, 7
    %v939 = vsub.s32 %v936, %v938
    %v940 = vrot.slane %v926, %v939
    %v941 = vcombine.high %v933, %v933
    %v942 = vcombine.high %v940, %v940
    %v943 = vcombine.low %v887, %v888
    %v944 = vcombine.high %v887, %v888
    %v946 = vunpack.c.l.s4 1983009808
    %v947 = vunpack.c.0.s8 %v946
    %v948 = vlaneseq
    %v949 = vshrl.u32 %v948, 7
    %v950 = vsub.s32 %v947, %v949
    %v951 = vrot.slane %v943, %v950
    %v953 = vunpack.c.l.s4 1983009808
    %v954 = vunpack.c.0.s8 %v953
    %v955 = vlaneseq
    %v956 = vshrl.u32 %v955, 7
    %v957 = vsub.s32 %v954, %v956
    %v958 = vrot.slane %v944, %v957
    %v959 = vcombine.high %v951, %v951
    %v960 = vcombine.high %v958, %v958
    %v961 = vcombine.low %v889, %v890
    %v962 = vcombine.high %v889, %v890
    %v964 = vunpack.c.l.s4 1983009808
    %v965 = vunpack.c.0.s8 %v964
    %v966 = vlaneseq
    %v967 = vshrl.u32 %v966, 7
    %v968 = vsub.s32 %v965, %v967
    %v969 = vrot.slane %v961, %v968
    %v971 = vunpack.c.l.s4 1983009808
    %v972 = vunpack.c.0.s8 %v971
    %v973 = vlaneseq
    %v974 = vshrl.u32 %v973, 7
    %v975 = vsub.s32 %v972, %v974
    %v976 = vrot.slane %v962, %v975
    %v977 = vcombine.high %v969, %v969
    %v978 = vcombine.high %v976, %v976
    %v979 = vcombine.low %v891, %v892
    %v980 = vcombine.high %v891, %v892
    %v982 = vunpack.c.l.s4 1983009808
    %v983 = vunpack.c.0.s8 %v982
    %v984 = vlaneseq
    %v985 = vshrl.u32 %v984, 7
    %v986 = vsub.s32 %v983, %v985
    %v987 = vrot.slane %v979, %v986
    %v989 = vunpack.c.l.s4 1983009808
    %v990 = vunpack.c.0.s8 %v989
    %v991 = vlaneseq
    %v992 = vshrl.u32 %v991, 7
    %v993 = vsub.s32 %v990, %v992
    %v994 = vrot.slane %v980, %v993
    %v995 = vcombine.high %v987, %v987
    %v996 = vcombine.high %v994, %v994
    %v997 = vcombine.low %v893, %v894
    %v998 = vcombine.high %v893, %v894
    %v1000 = vunpack.c.l.s4 1983009808
    %v1001 = vunpack.c.0.s8 %v1000
    %v1002 = vlaneseq
    %v1003 = vshrl.u32 %v1002, 7
    %v1004 = vsub.s32 %v1001, %v1003
    %v1005 = vrot.slane %v997, %v1004
    %v1007 = vunpack.c.l.s4 1983009808
    %v1008 = vunpack.c.0.s8 %v1007
    %v1009 = vlaneseq
    %v1010 = vshrl.u32 %v1009, 7
    %v1011 = vsub.s32 %v1008, %v1010
    %v1012 = vrot.slane %v998, %v1011
    %v1013 = vcombine.high %v1005, %v1005
    %v1014 = vcombine.high %v1012, %v1012
    %v1039 = vrot.slane %v915, 7
    %v1040 = vrot.slane %v1039, 2
    %v1041 = vrot.slane %v923, 7
    %v1042 = vrot.slane %v1041, 2
    %v1043 = vrot.slane %v922, 7
    %v1044 = vrot.slane %v1043, 2
    %v1045 = vrot.slane %v924, 7
    %v1046 = vrot.slane %v1045, 2
    %v1047 = vrot.slane %v933, 7
    %v1048 = vrot.slane %v1047, 2
    %v1049 = vrot.slane %v941, 7
    %v1050 = vrot.slane %v1049, 2
    %v1051 = vrot.slane %v940, 7
    %v1052 = vrot.slane %v1051, 2
    %v1053 = vrot.slane %v942, 7
    %v1054 = vrot.slane %v1053, 2
    %v1055 = vrot.slane %v951, 7
    %v1056 = vrot.slane %v1055, 2
    %v1057 = vrot.slane %v959, 7
    %v1058 = vrot.slane %v1057, 2
    %v1059 = vrot.slane %v958, 7
    %v1060 = vrot.slane %v1059, 2
    %v1061 = vrot.slane %v960, 7
    %v1062 = vrot.slane %v1061, 2
    %v1063 = vrot.slane %v969, 7
    %v1064 = vrot.slane %v1063, 2
    %v1065 = vrot.slane %v977, 7
    %v1066 = vrot.slane %v1065, 2
    %v1067 = vrot.slane %v976, 7
    %v1068 = vrot.slane %v1067, 2
    %v1069 = vrot.slane %v978, 7
    %v1070 = vrot.slane %v1069, 2
    %v1071 = vrot.slane %v987, 7
    %v1072 = vrot.slane %v1071, 2
    %v1073 = vrot.slane %v995, 7
    %v1074 = vrot.slane %v1073, 2
    %v1075 = vrot.slane %v994, 7
    %v1076 = vrot.slane %v1075, 2
    %v1077 = vrot.slane %v996, 7
    %v1078 = vrot.slane %v1077, 2
    %v1079 = vrot.slane %v1005, 7
    %v1080 = vrot.slane %v1079, 2
    %v1081 = vrot.slane %v1013, 7
    %v1082 = vrot.slane %v1081, 2
    %v1083 = vrot.slane %v1012, 7
    %v1084 = vrot.slane %v1083, 2
    %v1085 = vrot.slane %v1014, 7
    %v1086 = vrot.slane %v1085, 2
    %v1111 = vmax.f32 %v915, %v1040
    %v1112 = vmax.f32 %v923, %v1042
    %v1113 = vmax.f32 %v922, %v1044
    %v1114 = vmax.f32 %v924, %v1046
    %v1115 = vmax.f32 %v933, %v1048
    %v1116 = vmax.f32 %v941, %v1050
    %v1117 = vmax.f32 %v940, %v1052
    %v1118 = vmax.f32 %v942, %v1054
    %v1119 = vmax.f32 %v951, %v1056
    %v1120 = vmax.f32 %v959, %v1058
    %v1121 = vmax.f32 %v958, %v1060
    %v1122 = vmax.f32 %v960, %v1062
    %v1123 = vmax.f32 %v969, %v1064
    %v1124 = vmax.f32 %v977, %v1066
    %v1125 = vmax.f32 %v976, %v1068
    %v1126 = vmax.f32 %v978, %v1070
    %v1127 = vmax.f32 %v987, %v1072
    %v1128 = vmax.f32 %v995, %v1074
    %v1129 = vmax.f32 %v994, %v1076
    %v1130 = vmax.f32 %v996, %v1078
    %v1131 = vmax.f32 %v1005, %v1080
    %v1132 = vmax.f32 %v1013, %v1082
    %v1133 = vmax.f32 %v1012, %v1084
    %v1134 = vmax.f32 %v1014, %v1086
    %1159 = vrot.lane.b32.xlu0 %v1111, 118
    %v1160 = vpop.permute.xlu0 %1159
    %1161 = vrot.lane.b32.xlu0 %v1112, 118
    %v1162 = vpop.permute.xlu0 %1161
    %1163 = vrot.lane.b32.xlu0 %v1113, 118
    %v1164 = vpop.permute.xlu0 %1163
    %1165 = vrot.lane.b32.xlu0 %v1114, 118
    %v1166 = vpop.permute.xlu0 %1165
    %1167 = vrot.lane.b32.xlu0 %v1115, 118
    %v1168 = vpop.permute.xlu0 %1167
    %1169 = vrot.lane.b32.xlu0 %v1116, 118
    %v1170 = vpop.permute.xlu0 %1169
    %1171 = vrot.lane.b32.xlu0 %v1117, 118
    %v1172 = vpop.permute.xlu0 %1171
    %1173 = vrot.lane.b32.xlu0 %v1118, 118
    %v1174 = vpop.permute.xlu0 %1173
    %1175 = vrot.lane.b32.xlu0 %v1119, 118
    %v1176 = vpop.permute.xlu0 %1175
    %1177 = vrot.lane.b32.xlu0 %v1120, 118
    %v1178 = vpop.permute.xlu0 %1177
    %1179 = vrot.lane.b32.xlu0 %v1121, 118
    %v1180 = vpop.permute.xlu0 %1179
    %1181 = vrot.lane.b32.xlu0 %v1122, 118
    %v1182 = vpop.permute.xlu0 %1181
    %1183 = vrot.lane.b32.xlu0 %v1123, 118
    %v1184 = vpop.permute.xlu0 %1183
    %1185 = vrot.lane.b32.xlu0 %v1124, 118
    %v1186 = vpop.permute.xlu0 %1185
    %1187 = vrot.lane.b32.xlu0 %v1125, 118
    %v1188 = vpop.permute.xlu0 %1187
    %1189 = vrot.lane.b32.xlu0 %v1126, 118
    %v1190 = vpop.permute.xlu0 %1189
    %1191 = vrot.lane.b32.xlu0 %v1127, 118
    %v1192 = vpop.permute.xlu0 %1191
    %1193 = vrot.lane.b32.xlu0 %v1128, 118
    %v1194 = vpop.permute.xlu0 %1193
    %1195 = vrot.lane.b32.xlu0 %v1129, 118
    %v1196 = vpop.permute.xlu0 %1195
    %1197 = vrot.lane.b32.xlu0 %v1130, 118
    %v1198 = vpop.permute.xlu0 %1197
    %1199 = vrot.lane.b32.xlu0 %v1131, 118
    %v1200 = vpop.permute.xlu0 %1199
    %1201 = vrot.lane.b32.xlu0 %v1132, 118
    %v1202 = vpop.permute.xlu0 %1201
    %1203 = vrot.lane.b32.xlu0 %v1133, 118
    %v1204 = vpop.permute.xlu0 %1203
    %1205 = vrot.lane.b32.xlu0 %v1134, 118
    %v1206 = vpop.permute.xlu0 %1205
    %v1207 = vrot.slane %v1160, 2
    %v1208 = vrot.slane %v1162, 2
    %v1209 = vrot.slane %v1164, 2
    %v1210 = vrot.slane %v1166, 2
    %v1211 = vrot.slane %v1168, 2
    %v1212 = vrot.slane %v1170, 2
    %v1213 = vrot.slane %v1172, 2
    %v1214 = vrot.slane %v1174, 2
    %v1215 = vrot.slane %v1176, 2
    %v1216 = vrot.slane %v1178, 2
    %v1217 = vrot.slane %v1180, 2
    %v1218 = vrot.slane %v1182, 2
    %v1219 = vrot.slane %v1184, 2
    %v1220 = vrot.slane %v1186, 2
    %v1221 = vrot.slane %v1188, 2
    %v1222 = vrot.slane %v1190, 2
    %v1223 = vrot.slane %v1192, 2
    %v1224 = vrot.slane %v1194, 2
    %v1225 = vrot.slane %v1196, 2
    %v1226 = vrot.slane %v1198, 2
    %v1227 = vrot.slane %v1200, 2
    %v1228 = vrot.slane %v1202, 2
    %v1229 = vrot.slane %v1204, 2
    %v1230 = vrot.slane %v1206, 2
    %vm1231 = vcmask 965632
    %v1232 = vsel %vm1231, %v1160, %v1207
    %v1233 = vsel %vm1231, %v1162, %v1208
    %v1234 = vsel %vm1231, %v1164, %v1209
    %v1235 = vsel %vm1231, %v1166, %v1210
    %v1236 = vsel %vm1231, %v1168, %v1211
    %v1237 = vsel %vm1231, %v1170, %v1212
    %v1238 = vsel %vm1231, %v1172, %v1213
    %v1239 = vsel %vm1231, %v1174, %v1214
    %v1240 = vsel %vm1231, %v1176, %v1215
    %v1241 = vsel %vm1231, %v1178, %v1216
    %v1242 = vsel %vm1231, %v1180, %v1217
    %v1243 = vsel %vm1231, %v1182, %v1218
    %v1244 = vsel %vm1231, %v1184, %v1219
    %v1245 = vsel %vm1231, %v1186, %v1220
    %v1246 = vsel %vm1231, %v1188, %v1221
    %v1247 = vsel %vm1231, %v1190, %v1222
    %v1248 = vsel %vm1231, %v1192, %v1223
    %v1249 = vsel %vm1231, %v1194, %v1224
    %v1250 = vsel %vm1231, %v1196, %v1225
    %v1251 = vsel %vm1231, %v1198, %v1226
    %v1252 = vsel %vm1231, %v1200, %v1227
    %v1253 = vsel %vm1231, %v1202, %v1228
    %v1254 = vsel %vm1231, %v1204, %v1229
    %v1255 = vsel %vm1231, %v1206, %v1230
    %v1280 = vmax.f32 %v1111, %v1232
    %v1281 = vmax.f32 %v1112, %v1233
    %v1282 = vmax.f32 %v1113, %v1234
    %v1283 = vmax.f32 %v1114, %v1235
    %v1284 = vmax.f32 %v1115, %v1236
    %v1285 = vmax.f32 %v1116, %v1237
    %v1286 = vmax.f32 %v1117, %v1238
    %v1287 = vmax.f32 %v1118, %v1239
    %v1288 = vmax.f32 %v1119, %v1240
    %v1289 = vmax.f32 %v1120, %v1241
    %v1290 = vmax.f32 %v1121, %v1242
    %v1291 = vmax.f32 %v1122, %v1243
    %v1292 = vmax.f32 %v1123, %v1244
    %v1293 = vmax.f32 %v1124, %v1245
    %v1294 = vmax.f32 %v1125, %v1246
    %v1295 = vmax.f32 %v1126, %v1247
    %v1296 = vmax.f32 %v1127, %v1248
    %v1297 = vmax.f32 %v1128, %v1249
    %v1298 = vmax.f32 %v1129, %v1250
    %v1299 = vmax.f32 %v1130, %v1251
    %v1300 = vmax.f32 %v1131, %v1252
    %v1301 = vmax.f32 %v1132, %v1253
    %v1302 = vmax.f32 %v1133, %v1254
    %v1303 = vmax.f32 %v1134, %v1255
    %v1304 = vld [vmem:[%s3] sm:$0xff]
    %v1305 = vld [vmem:[%s3 + $0x8] sm:$0xff]
    %v1306 = vld [vmem:[%s3 + $0x10] sm:$0xff]
    %v1307 = vld [vmem:[%s3 + $0x18] sm:$0xff]
    %v1308 = vld [vmem:[%s3 + $0x20] sm:$0xff]
    %v1309 = vld [vmem:[%s3 + $0x28] sm:$0xff]
    %v1310 = vld [vmem:[%s3 + $0x30] sm:$0xff]
    %v1311 = vld [vmem:[%s3 + $0x38] sm:$0xff]
    %v1312 = vld [vmem:[%s3 + $0x40] sm:$0xff]
    %v1313 = vld [vmem:[%s3 + $0x48] sm:$0xff]
    %v1314 = vld [vmem:[%s3 + $0x50] sm:$0xff]
    %v1315 = vld [vmem:[%s3 + $0x58] sm:$0xff]
    %v1316 = vld [vmem:[%s3 + $0x60] sm:$0xff]
    %v1317 = vld [vmem:[%s3 + $0x68] sm:$0xff]
    %v1318 = vld [vmem:[%s3 + $0x70] sm:$0xff]
    %v1319 = vld [vmem:[%s3 + $0x78] sm:$0xff]
    %v1320 = vld [vmem:[%s3 + $0x80] sm:$0xff]
    %v1321 = vld [vmem:[%s3 + $0x88] sm:$0xff]
    %v1322 = vld [vmem:[%s3 + $0x90] sm:$0xff]
    %v1323 = vld [vmem:[%s3 + $0x98] sm:$0xff]
    %v1324 = vld [vmem:[%s3 + $0xa0] sm:$0xff]
    %v1325 = vld [vmem:[%s3 + $0xa8] sm:$0xff]
    %v1326 = vld [vmem:[%s3 + $0xb0] sm:$0xff]
    %v1327 = vld [vmem:[%s3 + $0xb8] sm:$0xff]
    %v1328 = vld [vmem:[%s3 + $0xc0] sm:$0xff]
    %v1329 = vld [vmem:[%s3 + $0xc8] sm:$0xff]
    %v1330 = vld [vmem:[%s3 + $0xd0] sm:$0xff]
    %v1331 = vld [vmem:[%s3 + $0xd8] sm:$0xff]
    %v1332 = vld [vmem:[%s3 + $0xe0] sm:$0xff]
    %v1333 = vld [vmem:[%s3 + $0xe8] sm:$0xff]
    %v1334 = vld [vmem:[%s3 + $0xf0] sm:$0xff]
    %v1335 = vld [vmem:[%s3 + $0xf8] sm:$0xff]
    %v1336 = vld [vmem:[%s3 + $0x100] sm:$0xff]
    %v1337 = vld [vmem:[%s3 + $0x108] sm:$0xff]
    %v1338 = vld [vmem:[%s3 + $0x110] sm:$0xff]
    %v1339 = vld [vmem:[%s3 + $0x118] sm:$0xff]
    %v1340 = vld [vmem:[%s3 + $0x120] sm:$0xff]
    %v1341 = vld [vmem:[%s3 + $0x128] sm:$0xff]
    %v1342 = vld [vmem:[%s3 + $0x130] sm:$0xff]
    %v1343 = vld [vmem:[%s3 + $0x138] sm:$0xff]
    %v1344 = vld [vmem:[%s3 + $0x140] sm:$0xff]
    %v1345 = vld [vmem:[%s3 + $0x148] sm:$0xff]
    %v1346 = vld [vmem:[%s3 + $0x150] sm:$0xff]
    %v1347 = vld [vmem:[%s3 + $0x158] sm:$0xff]
    %v1348 = vld [vmem:[%s3 + $0x160] sm:$0xff]
    %v1349 = vld [vmem:[%s3 + $0x168] sm:$0xff]
    %v1350 = vld [vmem:[%s3 + $0x170] sm:$0xff]
    %v1351 = vld [vmem:[%s3 + $0x178] sm:$0xff]
    %v1352 = vld [vmem:[%s3 + $0x180] sm:$0xff]
    %v1353 = vld [vmem:[%s3 + $0x188] sm:$0xff]
    %v1354 = vld [vmem:[%s3 + $0x190] sm:$0xff]
    %v1355 = vld [vmem:[%s3 + $0x198] sm:$0xff]
    %v1356 = vld [vmem:[%s3 + $0x1a0] sm:$0xff]
    %v1357 = vld [vmem:[%s3 + $0x1a8] sm:$0xff]
    %v1358 = vld [vmem:[%s3 + $0x1b0] sm:$0xff]
    %v1359 = vld [vmem:[%s3 + $0x1b8] sm:$0xff]
    %v1360 = vld [vmem:[%s3 + $0x1c0] sm:$0x3f]
    %v1361 = vld [vmem:[%s3 + $0x1c8] sm:$0x3f]
    %s1362 = scalar_lea.vmem %s3, 464
    %v1363 = vld [vmem:[%s1362] sm:$0xff]
    %v1364 = vld [vmem:[%s1362 + $0x8] sm:$0xff]
    %v1365 = vld [vmem:[%s1362 + $0x10] sm:$0xff]
    %v1366 = vld [vmem:[%s1362 + $0x18] sm:$0xff]
    %v1367 = vld [vmem:[%s1362 + $0x20] sm:$0xff]
    %v1368 = vld [vmem:[%s1362 + $0x28] sm:$0xff]
    %v1369 = vld [vmem:[%s1362 + $0x30] sm:$0xff]
    %v1370 = vld [vmem:[%s1362 + $0x38] sm:$0xff]
    %v1371 = vld [vmem:[%s1362 + $0x40] sm:$0xff]
    %v1372 = vld [vmem:[%s1362 + $0x48] sm:$0xff]
    %v1373 = vld [vmem:[%s1362 + $0x50] sm:$0xff]
    %v1374 = vld [vmem:[%s1362 + $0x58] sm:$0xff]
    %v1375 = vld [vmem:[%s1362 + $0x60] sm:$0xff]
    %v1376 = vld [vmem:[%s1362 + $0x68] sm:$0xff]
    %v1377 = vld [vmem:[%s1362 + $0x70] sm:$0xff]
    %v1378 = vld [vmem:[%s1362 + $0x78] sm:$0xff]
    %v1379 = vld [vmem:[%s1362 + $0x80] sm:$0xff]
    %v1380 = vld [vmem:[%s1362 + $0x88] sm:$0xff]
    %v1381 = vld [vmem:[%s1362 + $0x90] sm:$0xff]
    %v1382 = vld [vmem:[%s1362 + $0x98] sm:$0xff]
    %v1383 = vld [vmem:[%s1362 + $0xa0] sm:$0xff]
    %v1384 = vld [vmem:[%s1362 + $0xa8] sm:$0xff]
    %v1385 = vld [vmem:[%s1362 + $0xb0] sm:$0xff]
    %v1386 = vld [vmem:[%s1362 + $0xb8] sm:$0xff]
    %v1387 = vld [vmem:[%s1362 + $0xc0] sm:$0xff]
    %v1388 = vld [vmem:[%s1362 + $0xc8] sm:$0xff]
    %v1389 = vld [vmem:[%s1362 + $0xd0] sm:$0xff]
    %v1390 = vld [vmem:[%s1362 + $0xd8] sm:$0xff]
    %v1391 = vld [vmem:[%s1362 + $0xe0] sm:$0xff]
    %v1392 = vld [vmem:[%s1362 + $0xe8] sm:$0xff]
    %v1393 = vld [vmem:[%s1362 + $0xf0] sm:$0xff]
    %v1394 = vld [vmem:[%s1362 + $0xf8] sm:$0xff]
    %v1395 = vld [vmem:[%s1362 + $0x100] sm:$0xff]
    %v1396 = vld [vmem:[%s1362 + $0x108] sm:$0xff]
    %v1397 = vld [vmem:[%s1362 + $0x110] sm:$0xff]
    %v1398 = vld [vmem:[%s1362 + $0x118] sm:$0xff]
    %v1399 = vld [vmem:[%s1362 + $0x120] sm:$0xff]
    %v1400 = vld [vmem:[%s1362 + $0x128] sm:$0xff]
    %v1401 = vld [vmem:[%s1362 + $0x130] sm:$0xff]
    %v1402 = vld [vmem:[%s1362 + $0x138] sm:$0xff]
    %v1403 = vld [vmem:[%s1362 + $0x140] sm:$0xff]
    %v1404 = vld [vmem:[%s1362 + $0x148] sm:$0xff]
    %v1405 = vld [vmem:[%s1362 + $0x150] sm:$0xff]
    %v1406 = vld [vmem:[%s1362 + $0x158] sm:$0xff]
    %v1407 = vld [vmem:[%s1362 + $0x160] sm:$0xff]
    %v1408 = vld [vmem:[%s1362 + $0x168] sm:$0xff]
    %v1409 = vld [vmem:[%s1362 + $0x170] sm:$0xff]
    %v1410 = vld [vmem:[%s1362 + $0x178] sm:$0xff]
    %v1411 = vld [vmem:[%s1362 + $0x180] sm:$0xff]
    %v1412 = vld [vmem:[%s1362 + $0x188] sm:$0xff]
    %v1413 = vld [vmem:[%s1362 + $0x190] sm:$0xff]
    %v1414 = vld [vmem:[%s1362 + $0x198] sm:$0xff]
    %v1415 = vld [vmem:[%s1362 + $0x1a0] sm:$0xff]
    %v1416 = vld [vmem:[%s1362 + $0x1a8] sm:$0xff]
    %v1417 = vld [vmem:[%s1362 + $0x1b0] sm:$0xff]
    %v1418 = vld [vmem:[%s1362 + $0x1b8] sm:$0xff]
    %v1419 = vld [vmem:[%s1362 + $0x1c0] sm:$0x3f]
    %v1420 = vld [vmem:[%s1362 + $0x1c8] sm:$0x3f]
    %v1441 = vlaneseq
    %v1442 = vshrl.u32 %v1441, 7
    %v1443 = vsub.s32 0, %v1442
    %v1444 = vrot.slane %v1281, %v1443
    %v1445 = vlaneseq
    %v1446 = vshrl.u32 %v1445, 7
    %v1447 = vsub.s32 2, %v1446
    %v1448 = vrot.slane %v1281, %v1447
    %v1449 = vlaneseq
    %v1450 = vshrl.u32 %v1449, 7
    %v1451 = vsub.s32 0, %v1450
    %v1452 = vrot.slane %v1282, %v1451
    %v1453 = vlaneseq
    %v1454 = vshrl.u32 %v1453, 7
    %v1455 = vsub.s32 2, %v1454
    %v1456 = vrot.slane %v1282, %v1455
    %v1457 = vlaneseq
    %v1458 = vshrl.u32 %v1457, 7
    %v1459 = vsub.s32 0, %v1458
    %v1460 = vrot.slane %v1283, %v1459
    %v1461 = vlaneseq
    %v1462 = vshrl.u32 %v1461, 7
    %v1463 = vsub.s32 2, %v1462
    %v1464 = vrot.slane %v1283, %v1463
    %v1465 = vlaneseq
    %v1466 = vshrl.u32 %v1465, 7
    %v1467 = vsub.s32 0, %v1466
    %v1468 = vrot.slane %v1284, %v1467
    %v1469 = vlaneseq
    %v1470 = vshrl.u32 %v1469, 7
    %v1471 = vsub.s32 2, %v1470
    %v1472 = vrot.slane %v1284, %v1471
    %v1473 = vlaneseq
    %v1474 = vshrl.u32 %v1473, 7
    %v1475 = vsub.s32 0, %v1474
    %v1476 = vrot.slane %v1285, %v1475
    %v1477 = vlaneseq
    %v1478 = vshrl.u32 %v1477, 7
    %v1479 = vsub.s32 2, %v1478
    %v1480 = vrot.slane %v1285, %v1479
    %v1481 = vlaneseq
    %v1482 = vshrl.u32 %v1481, 7
    %v1483 = vsub.s32 0, %v1482
    %v1484 = vrot.slane %v1286, %v1483
    %v1485 = vlaneseq
    %v1486 = vshrl.u32 %v1485, 7
    %v1487 = vsub.s32 2, %v1486
    %v1488 = vrot.slane %v1286, %v1487
    %v1489 = vlaneseq
    %v1490 = vshrl.u32 %v1489, 7
    %v1491 = vsub.s32 0, %v1490
    %v1492 = vrot.slane %v1287, %v1491
    %v1493 = vlaneseq
    %v1494 = vshrl.u32 %v1493, 7
    %v1495 = vsub.s32 2, %v1494
    %v1496 = vrot.slane %v1287, %v1495
    %v1497 = vlaneseq
    %v1498 = vshrl.u32 %v1497, 7
    %v1499 = vsub.s32 0, %v1498
    %v1500 = vrot.slane %v1288, %v1499
    %v1501 = vlaneseq
    %v1502 = vshrl.u32 %v1501, 7
    %v1503 = vsub.s32 2, %v1502
    %v1504 = vrot.slane %v1288, %v1503
    %v1505 = vlaneseq
    %v1506 = vshrl.u32 %v1505, 7
    %v1507 = vsub.s32 0, %v1506
    %v1508 = vrot.slane %v1289, %v1507
    %v1509 = vlaneseq
    %v1510 = vshrl.u32 %v1509, 7
    %v1511 = vsub.s32 2, %v1510
    %v1512 = vrot.slane %v1289, %v1511
    %v1513 = vlaneseq
    %v1514 = vshrl.u32 %v1513, 7
    %v1515 = vsub.s32 0, %v1514
    %v1516 = vrot.slane %v1290, %v1515
    %v1517 = vlaneseq
    %v1518 = vshrl.u32 %v1517, 7
    %v1519 = vsub.s32 2, %v1518
    %v1520 = vrot.slane %v1290, %v1519
    %v1521 = vlaneseq
    %v1522 = vshrl.u32 %v1521, 7
    %v1523 = vsub.s32 0, %v1522
    %v1524 = vrot.slane %v1293, %v1523
    %v1525 = vlaneseq
    %v1526 = vshrl.u32 %v1525, 7
    %v1527 = vsub.s32 2, %v1526
    %v1528 = vrot.slane %v1293, %v1527
    %v1529 = vlaneseq
    %v1530 = vshrl.u32 %v1529, 7
    %v1531 = vsub.s32 0, %v1530
    %v1532 = vrot.slane %v1294, %v1531
    %v1533 = vlaneseq
    %v1534 = vshrl.u32 %v1533, 7
    %v1535 = vsub.s32 2, %v1534
    %v1536 = vrot.slane %v1294, %v1535
    %v1537 = vlaneseq
    %v1538 = vshrl.u32 %v1537, 7
    %v1539 = vsub.s32 0, %v1538
    %v1540 = vrot.slane %v1295, %v1539
    %v1541 = vlaneseq
    %v1542 = vshrl.u32 %v1541, 7
    %v1543 = vsub.s32 2, %v1542
    %v1544 = vrot.slane %v1295, %v1543
    %v1545 = vlaneseq
    %v1546 = vshrl.u32 %v1545, 7
    %v1547 = vsub.s32 0, %v1546
    %v1548 = vrot.slane %v1296, %v1547
    %v1549 = vlaneseq
    %v1550 = vshrl.u32 %v1549, 7
    %v1551 = vsub.s32 2, %v1550
    %v1552 = vrot.slane %v1296, %v1551
    %v1553 = vlaneseq
    %v1554 = vshrl.u32 %v1553, 7
    %v1555 = vsub.s32 0, %v1554
    %v1556 = vrot.slane %v1297, %v1555
    %v1557 = vlaneseq
    %v1558 = vshrl.u32 %v1557, 7
    %v1559 = vsub.s32 2, %v1558
    %v1560 = vrot.slane %v1297, %v1559
    %v1561 = vlaneseq
    %v1562 = vshrl.u32 %v1561, 7
    %v1563 = vsub.s32 0, %v1562
    %v1564 = vrot.slane %v1298, %v1563
    %v1565 = vlaneseq
    %v1566 = vshrl.u32 %v1565, 7
    %v1567 = vsub.s32 2, %v1566
    %v1568 = vrot.slane %v1298, %v1567
    %v1569 = vlaneseq
    %v1570 = vshrl.u32 %v1569, 7
    %v1571 = vsub.s32 0, %v1570
    %v1572 = vrot.slane %v1299, %v1571
    %v1573 = vlaneseq
    %v1574 = vshrl.u32 %v1573, 7
    %v1575 = vsub.s32 2, %v1574
    %v1576 = vrot.slane %v1299, %v1575
    %v1577 = vlaneseq
    %v1578 = vshrl.u32 %v1577, 7
    %v1579 = vsub.s32 0, %v1578
    %v1580 = vrot.slane %v1300, %v1579
    %v1581 = vlaneseq
    %v1582 = vshrl.u32 %v1581, 7
    %v1583 = vsub.s32 2, %v1582
    %v1584 = vrot.slane %v1300, %v1583
    %v1585 = vlaneseq
    %v1586 = vshrl.u32 %v1585, 7
    %v1587 = vsub.s32 0, %v1586
    %v1588 = vrot.slane %v1301, %v1587
    %v1589 = vlaneseq
    %v1590 = vshrl.u32 %v1589, 7
    %v1591 = vsub.s32 2, %v1590
    %v1592 = vrot.slane %v1301, %v1591
    %v1593 = vlaneseq
    %v1594 = vshrl.u32 %v1593, 7
    %v1595 = vsub.s32 0, %v1594
    %v1596 = vrot.slane %v1302, %v1595
    %v1597 = vlaneseq
    %v1598 = vshrl.u32 %v1597, 7
    %v1599 = vsub.s32 2, %v1598
    %v1600 = vrot.slane %v1302, %v1599
    %vm1601 = vcmask 1041409
    %v1602 = vsel %vm1601, %v1452, %v1444
    %vm1603 = vcmask 1042434
    %v1604 = vsel %vm1603, %v1460, %v1602
    %vm1605 = vcmask 1043459
    %v1606 = vsel %vm1605, %v1468, %v1604
    %vm1607 = vcmask 1044484
    %v1608 = vsel %vm1607, %v1476, %v1606
    %vm1609 = vcmask 1045509
    %v1610 = vsel %vm1609, %v1484, %v1608
    %vm1611 = vcmask 1046534
    %v1612 = vsel %vm1611, %v1492, %v1610
    %vm1613 = vcmask 1047559
    %v1614 = vsel %vm1613, %v1500, %v1612
    %v1615 = vsel %vm1601, %v1456, %v1448
    %v1616 = vsel %vm1603, %v1464, %v1615
    %v1617 = vsel %vm1605, %v1472, %v1616
    %v1618 = vsel %vm1607, %v1480, %v1617
    %v1619 = vsel %vm1609, %v1488, %v1618
    %v1620 = vsel %vm1611, %v1496, %v1619
    %v1621 = vsel %vm1613, %v1504, %v1620
    %v1622 = vsel %vm1601, %v1516, %v1508
    %v1623 = vsel %vm1603, %v1524, %v1622
    %v1624 = vsel %vm1605, %v1532, %v1623
    %v1625 = vsel %vm1607, %v1540, %v1624
    %v1626 = vsel %vm1609, %v1548, %v1625
    %v1627 = vsel %vm1611, %v1556, %v1626
    %v1628 = vsel %vm1613, %v1564, %v1627
    %v1629 = vsel %vm1601, %v1520, %v1512
    %v1630 = vsel %vm1603, %v1528, %v1629
    %v1631 = vsel %vm1605, %v1536, %v1630
    %v1632 = vsel %vm1607, %v1544, %v1631
    %v1633 = vsel %vm1609, %v1552, %v1632
    %v1634 = vsel %vm1611, %v1560, %v1633
    %v1635 = vsel %vm1613, %v1568, %v1634
    %v1636 = vsel %vm1601, %v1580, %v1572
    %v1637 = vsel %vm1603, %v1588, %v1636
    %v1638 = vsel %vm1605, %v1596, %v1637
    %v1639 = vsel %vm1601, %v1584, %v1576
    %v1640 = vsel %vm1603, %v1592, %v1639
    %v1641 = vsel %vm1605, %v1600, %v1640
    %vm1645 = vcmask 834560
    %v1646 = vsel %vm1645, %v1621, 0
    %v1648 = vsel %vm1645, %v1635, 0
    %v1650 = vsel %vm1645, %v1641, 0
    %v1653 = vsel %vm395, %v1419, 0
    %v1656 = vsel %vm395, %v1420, 0
    %1658 = vmatprep.subr.mxu0 %v1364
    %1659 = vmatpush1.msra.mxu0 %v1363
    %1660 = vmatprep.subr.mxu0 %v1366
    %1661 = vmatpush1.msra.mxu0 %v1365
    %1662 = vmatprep.subr.mxu0 %v1368
    %1663 = vmatpush1.msra.mxu0 %v1367
    %1664 = vmatprep.subr.mxu0 %v1370
    %1665 = vmatpush1.msra.mxu0 %v1369
    %1666 = vmatprep.subr.mxu0 %v1372
    %1667 = vmatpush1.msra.mxu0 %v1371
    %1668 = vmatprep.subr.mxu0 %v1374
    %1669 = vmatpush1.msra.mxu0 %v1373
    %1670 = vmatprep.subr.mxu0 %v1376
    %1671 = vmatpush1.msra.mxu0 %v1375
    %1672 = vmatprep.subr.mxu0 %v1378
    %1673 = vmatpush1.msra.mxu0 %v1377
    %1674 = vmatprep.subr.mxu0 %v1380
    %1675 = vmatpush1.msra.mxu0 %v1379
    %1676 = vmatprep.subr.mxu0 %v1382
    %1677 = vmatpush1.msra.mxu0 %v1381
    %1678 = vmatprep.subr.mxu0 %v1384
    %1679 = vmatpush1.msra.mxu0 %v1383
    %1680 = vmatprep.subr.mxu0 %v1386
    %1681 = vmatpush1.msra.mxu0 %v1385
    %1682 = vmatprep.subr.mxu0 %v1388
    %1683 = vmatpush1.msra.mxu0 %v1387
    %1684 = vmatprep.subr.mxu0 %v1390
    %1685 = vmatpush1.msra.mxu0 %v1389
    %1686 = vmatprep.subr.mxu0 %v1392
    %1687 = vmatpush1.msra.mxu0 %v1391
    %1688 = vmatprep.subr.mxu0 %v1394
    %1689 = vmatpush1.msra.mxu0 %v1393
    %1690 = vmatprep.subr.mxu0 %v1396
    %1691 = vmatpush1.msra.mxu0 %v1395
    %1692 = vmatprep.subr.mxu0 %v1398
    %1693 = vmatpush1.msra.mxu0 %v1397
    %1694 = vmatprep.subr.mxu0 %v1400
    %1695 = vmatpush1.msra.mxu0 %v1399
    %1696 = vmatprep.subr.mxu0 %v1402
    %1697 = vmatpush1.msra.mxu0 %v1401
    %1698 = vmatprep.subr.mxu0 %v1404
    %1699 = vmatpush1.msra.mxu0 %v1403
    %1700 = vmatprep.subr.mxu0 %v1406
    %1701 = vmatpush1.msra.mxu0 %v1405
    %1702 = vmatprep.subr.mxu0 %v1408
    %1703 = vmatpush1.msra.mxu0 %v1407
    %1704 = vmatprep.subr.mxu0 %v1410
    %1705 = vmatpush1.msra.mxu0 %v1409
    %1706 = vmatprep.subr.mxu0 %v1412
    %1707 = vmatpush1.msra.mxu0 %v1411
    %1708 = vmatprep.subr.mxu0 %v1414
    %1709 = vmatpush1.msra.mxu0 %v1413
    %1710 = vmatprep.subr.mxu0 %v1416
    %1711 = vmatpush1.msra.mxu0 %v1415
    %1712 = vmatprep.subr.mxu0 %v1418
    %1713 = vmatpush1.msra.mxu0 %v1417
    %1714 = vmatprep.subr.mxu0 %v1656
    %1715 = vmatpush1.msra.mxu0 %v1653
    %1716 = vmatprep.subr.mxu0 0.0
    %1717 = vmatpush1.msra.mxu0 0.0
    %1718 = vmatprep.subr.mxu0 0.0
    %1719 = vmatpush1.msra.mxu0 0.0
    %1720 = vmatprep.subr.mxu0 0.0
    %1721 = vmatpush1.msra.mxu0 0.0
    %1722 = vmatprep.mubr.f32.mxu0 %v1646
    %1723 = vmatmul.mubr.f32.gmra.mrb[0].mxu0 %v1614
    %v1724 = vpop.f32.mrb[0].mxu0
    %v1725 = vadd.f32 0.0, %v1724
    %v1726 = vpop.f32.mrb[0].mxu0
    %v1727 = vadd.f32 0.0, %v1726
    %1728 = vmatprep.mubr.f32.mxu0 %v1648
    %1729 = vmatmul.mubr.f32.gmra.mrb[0].mxu0 %v1628
    %v1730 = vpop.f32.mrb[0].mxu0
    %v1731 = vadd.f32 0.0, %v1730
    %v1732 = vpop.f32.mrb[0].mxu0
    %v1733 = vadd.f32 0.0, %v1732
    %1734 = vmatprep.mubr.f32.mxu0 %v1650
    %1735 = vmatmul.mubr.f32.gmra.mrb[0].mxu0 %v1638
    %v1736 = vpop.f32.mrb[0].mxu0
    %v1737 = vadd.f32 0.0, %v1736
    %v1738 = vpop.f32.mrb[0].mxu0
    %v1739 = vadd.f32 0.0, %v1738
    %1740 = vdwg.mxu0
    %v1743 = vlaneseq
    %v1744 = vshrl.u32 %v1743, 7
    %v1745 = vsub.s32 0, %v1744
    %v1746 = vrot.slane %v1280, %v1745
    %v1747 = vlaneseq
    %v1748 = vshrl.u32 %v1747, 7
    %v1749 = vsub.s32 2, %v1748
    %v1750 = vrot.slane %v1280, %v1749
    %v1751 = vlaneseq
    %v1752 = vshrl.u32 %v1751, 7
    %v1753 = vsub.s32 0, %v1752
    %v1754 = vrot.slane %v1292, %v1753
    %v1755 = vlaneseq
    %v1756 = vshrl.u32 %v1755, 7
    %v1757 = vsub.s32 2, %v1756
    %v1758 = vrot.slane %v1292, %v1757
    %v1759 = vsel %vm1601, %v1444, %v1746
    %v1760 = vsel %vm1603, %v1452, %v1759
    %v1761 = vsel %vm1605, %v1460, %v1760
    %v1762 = vsel %vm1607, %v1468, %v1761
    %v1763 = vsel %vm1609, %v1476, %v1762
    %v1764 = vsel %vm1611, %v1484, %v1763
    %v1765 = vsel %vm1613, %v1492, %v1764
    %v1766 = vsel %vm1601, %v1448, %v1750
    %v1767 = vsel %vm1603, %v1456, %v1766
    %v1768 = vsel %vm1605, %v1464, %v1767
    %v1769 = vsel %vm1607, %v1472, %v1768
    %v1770 = vsel %vm1609, %v1480, %v1769
    %v1771 = vsel %vm1611, %v1488, %v1770
    %v1772 = vsel %vm1613, %v1496, %v1771
    %v1773 = vsel %vm1601, %v1508, %v1500
    %v1774 = vsel %vm1603, %v1754, %v1773
    %v1775 = vsel %vm1605, %v1524, %v1774
    %v1776 = vsel %vm1607, %v1532, %v1775
    %v1777 = vsel %vm1609, %v1540, %v1776
    %v1778 = vsel %vm1611, %v1548, %v1777
    %v1779 = vsel %vm1613, %v1556, %v1778
    %v1780 = vsel %vm1601, %v1512, %v1504
    %v1781 = vsel %vm1603, %v1758, %v1780
    %v1782 = vsel %vm1605, %v1528, %v1781
    %v1783 = vsel %vm1607, %v1536, %v1782
    %v1784 = vsel %vm1609, %v1544, %v1783
    %v1785 = vsel %vm1611, %v1552, %v1784
    %v1786 = vsel %vm1613, %v1560, %v1785
    %v1787 = vsel %vm1601, %v1572, %v1564
    %v1788 = vsel %vm1603, %v1580, %v1787
    %v1789 = vsel %vm1605, %v1588, %v1788
    %v1790 = vsel %vm1601, %v1576, %v1568
    %v1791 = vsel %vm1603, %v1584, %v1790
    %v1792 = vsel %vm1605, %v1592, %v1791
    %v1796 = vsel %vm1645, %v1772, 0
    %v1798 = vsel %vm1645, %v1786, 0
    %v1800 = vsel %vm1645, %v1792, 0
    %v1803 = vsel %vm395, %v1360, 0
    %v1806 = vsel %vm395, %v1361, 0
    %1808 = vmatprep.subr.mxu0 %v1305
    %1809 = vmatpush1.msra.mxu0 %v1304
    %1810 = vmatprep.subr.mxu0 %v1307
    %1811 = vmatpush1.msra.mxu0 %v1306
    %1812 = vmatprep.subr.mxu0 %v1309
    %1813 = vmatpush1.msra.mxu0 %v1308
    %1814 = vmatprep.subr.mxu0 %v1311
    %1815 = vmatpush1.msra.mxu0 %v1310
    %1816 = vmatprep.subr.mxu0 %v1313
    %1817 = vmatpush1.msra.mxu0 %v1312
    %1818 = vmatprep.subr.mxu0 %v1315
    %1819 = vmatpush1.msra.mxu0 %v1314
    %1820 = vmatprep.subr.mxu0 %v1317
    %1821 = vmatpush1.msra.mxu0 %v1316
    %1822 = vmatprep.subr.mxu0 %v1319
    %1823 = vmatpush1.msra.mxu0 %v1318
    %1824 = vmatprep.subr.mxu0 %v1321
    %1825 = vmatpush1.msra.mxu0 %v1320
    %1826 = vmatprep.subr.mxu0 %v1323
    %1827 = vmatpush1.msra.mxu0 %v1322
    %1828 = vmatprep.subr.mxu0 %v1325
    %1829 = vmatpush1.msra.mxu0 %v1324
    %1830 = vmatprep.subr.mxu0 %v1327
    %1831 = vmatpush1.msra.mxu0 %v1326
    %1832 = vmatprep.subr.mxu0 %v1329
    %1833 = vmatpush1.msra.mxu0 %v1328
    %1834 = vmatprep.subr.mxu0 %v1331
    %1835 = vmatpush1.msra.mxu0 %v1330
    %1836 = vmatprep.subr.mxu0 %v1333
    %1837 = vmatpush1.msra.mxu0 %v1332
    %1838 = vmatprep.subr.mxu0 %v1335
    %1839 = vmatpush1.msra.mxu0 %v1334
    %1840 = vmatprep.subr.mxu0 %v1337
    %1841 = vmatpush1.msra.mxu0 %v1336
    %1842 = vmatprep.subr.mxu0 %v1339
    %1843 = vmatpush1.msra.mxu0 %v1338
    %1844 = vmatprep.subr.mxu0 %v1341
    %1845 = vmatpush1.msra.mxu0 %v1340
    %1846 = vmatprep.subr.mxu0 %v1343
    %1847 = vmatpush1.msra.mxu0 %v1342
    %1848 = vmatprep.subr.mxu0 %v1345
    %1849 = vmatpush1.msra.mxu0 %v1344
    %1850 = vmatprep.subr.mxu0 %v1347
    %1851 = vmatpush1.msra.mxu0 %v1346
    %1852 = vmatprep.subr.mxu0 %v1349
    %1853 = vmatpush1.msra.mxu0 %v1348
    %1854 = vmatprep.subr.mxu0 %v1351
    %1855 = vmatpush1.msra.mxu0 %v1350
    %1856 = vmatprep.subr.mxu0 %v1353
    %1857 = vmatpush1.msra.mxu0 %v1352
    %1858 = vmatprep.subr.mxu0 %v1355
    %1859 = vmatpush1.msra.mxu0 %v1354
    %1860 = vmatprep.subr.mxu0 %v1357
    %1861 = vmatpush1.msra.mxu0 %v1356
    %1862 = vmatprep.subr.mxu0 %v1359
    %1863 = vmatpush1.msra.mxu0 %v1358
    %1864 = vmatprep.subr.mxu0 %v1806
    %1865 = vmatpush1.msra.mxu0 %v1803
    %1866 = vmatprep.subr.mxu0 0.0
    %1867 = vmatpush1.msra.mxu0 0.0
    %1868 = vmatprep.subr.mxu0 0.0
    %1869 = vmatpush1.msra.mxu0 0.0
    %1870 = vmatprep.subr.mxu0 0.0
    %1871 = vmatpush1.msra.mxu0 0.0
    %1872 = vmatprep.mubr.f32.mxu0 %v1796
    %1873 = vmatmul.mubr.f32.gmra.mrb[0].mxu0 %v1765
    %v1874 = vpop.f32.mrb[0].mxu0
    %v1875 = vadd.f32 %v1725, %v1874
    %v1876 = vpop.f32.mrb[0].mxu0
    %v1877 = vadd.f32 %v1727, %v1876
    %1878 = vmatprep.mubr.f32.mxu0 %v1798
    %1879 = vmatmul.mubr.f32.gmra.mrb[0].mxu0 %v1779
    %v1880 = vpop.f32.mrb[0].mxu0
    %v1881 = vadd.f32 %v1731, %v1880
    %v1882 = vpop.f32.mrb[0].mxu0
    %v1883 = vadd.f32 %v1733, %v1882
    %1884 = vmatprep.mubr.f32.mxu0 %v1800
    %1885 = vmatmul.mubr.f32.gmra.mrb[0].mxu0 %v1789
    %v1886 = vpop.f32.mrb[0].mxu0
    %v1887 = vadd.f32 %v1737, %v1886
    %v1888 = vpop.f32.mrb[0].mxu0
    %v1889 = vadd.f32 %v1739, %v1888
    %1890 = vdwg.mxu0
    %s1891 = scalar_lea.vmem %s3, 928
    %v1892 = vld [vmem:[%s1891] sm:$0xff]
    %v1893 = vld [vmem:[%s1891 + $0x8] sm:$0xff]
    %v1894 = vld [vmem:[%s1891 + $0x10] sm:$0xff]
    %v1895 = vld [vmem:[%s1891 + $0x18] sm:$0xff]
    %v1896 = vld [vmem:[%s1891 + $0x20] sm:$0xff]
    %v1897 = vld [vmem:[%s1891 + $0x28] sm:$0xff]
    %v1898 = vld [vmem:[%s1891 + $0x30] sm:$0xff]
    %v1899 = vld [vmem:[%s1891 + $0x38] sm:$0xff]
    %v1900 = vld [vmem:[%s1891 + $0x40] sm:$0xff]
    %v1901 = vld [vmem:[%s1891 + $0x48] sm:$0xff]
    %v1902 = vld [vmem:[%s1891 + $0x50] sm:$0xff]
    %v1903 = vld [vmem:[%s1891 + $0x58] sm:$0xff]
    %v1904 = vld [vmem:[%s1891 + $0x60] sm:$0xff]
    %v1905 = vld [vmem:[%s1891 + $0x68] sm:$0xff]
    %v1906 = vld [vmem:[%s1891 + $0x70] sm:$0xff]
    %v1907 = vld [vmem:[%s1891 + $0x78] sm:$0xff]
    %v1908 = vld [vmem:[%s1891 + $0x80] sm:$0xff]
    %v1909 = vld [vmem:[%s1891 + $0x88] sm:$0xff]
    %v1910 = vld [vmem:[%s1891 + $0x90] sm:$0xff]
    %v1911 = vld [vmem:[%s1891 + $0x98] sm:$0xff]
    %v1912 = vld [vmem:[%s1891 + $0xa0] sm:$0xff]
    %v1913 = vld [vmem:[%s1891 + $0xa8] sm:$0xff]
    %v1914 = vld [vmem:[%s1891 + $0xb0] sm:$0xff]
    %v1915 = vld [vmem:[%s1891 + $0xb8] sm:$0xff]
    %v1916 = vld [vmem:[%s1891 + $0xc0] sm:$0xff]
    %v1917 = vld [vmem:[%s1891 + $0xc8] sm:$0xff]
    %v1918 = vld [vmem:[%s1891 + $0xd0] sm:$0xff]
    %v1919 = vld [vmem:[%s1891 + $0xd8] sm:$0xff]
    %v1920 = vld [vmem:[%s1891 + $0xe0] sm:$0xff]
    %v1921 = vld [vmem:[%s1891 + $0xe8] sm:$0xff]
    %v1922 = vld [vmem:[%s1891 + $0xf0] sm:$0xff]
    %v1923 = vld [vmem:[%s1891 + $0xf8] sm:$0xff]
    %v1924 = vld [vmem:[%s1891 + $0x100] sm:$0xff]
    %v1925 = vld [vmem:[%s1891 + $0x108] sm:$0xff]
    %v1926 = vld [vmem:[%s1891 + $0x110] sm:$0xff]
    %v1927 = vld [vmem:[%s1891 + $0x118] sm:$0xff]
    %v1928 = vld [vmem:[%s1891 + $0x120] sm:$0xff]
    %v1929 = vld [vmem:[%s1891 + $0x128] sm:$0xff]
    %v1930 = vld [vmem:[%s1891 + $0x130] sm:$0xff]
    %v1931 = vld [vmem:[%s1891 + $0x138] sm:$0xff]
    %v1932 = vld [vmem:[%s1891 + $0x140] sm:$0xff]
    %v1933 = vld [vmem:[%s1891 + $0x148] sm:$0xff]
    %v1934 = vld [vmem:[%s1891 + $0x150] sm:$0xff]
    %v1935 = vld [vmem:[%s1891 + $0x158] sm:$0xff]
    %v1936 = vld [vmem:[%s1891 + $0x160] sm:$0xff]
    %v1937 = vld [vmem:[%s1891 + $0x168] sm:$0xff]
    %v1938 = vld [vmem:[%s1891 + $0x170] sm:$0xff]
    %v1939 = vld [vmem:[%s1891 + $0x178] sm:$0xff]
    %v1940 = vld [vmem:[%s1891 + $0x180] sm:$0xff]
    %v1941 = vld [vmem:[%s1891 + $0x188] sm:$0xff]
    %v1942 = vld [vmem:[%s1891 + $0x190] sm:$0xff]
    %v1943 = vld [vmem:[%s1891 + $0x198] sm:$0xff]
    %v1944 = vld [vmem:[%s1891 + $0x1a0] sm:$0xff]
    %v1945 = vld [vmem:[%s1891 + $0x1a8] sm:$0xff]
    %v1946 = vld [vmem:[%s1891 + $0x1b0] sm:$0xff]
    %v1947 = vld [vmem:[%s1891 + $0x1b8] sm:$0xff]
    %v1948 = vld [vmem:[%s1891 + $0x1c0] sm:$0x3f]
    %v1949 = vld [vmem:[%s1891 + $0x1c8] sm:$0x3f]
    %v1952 = vlaneseq
    %v1953 = vshrl.u32 %v1952, 7
    %v1954 = vsub.s32 0, %v1953
    %v1955 = vrot.slane %v1291, %v1954
    %v1956 = vlaneseq
    %v1957 = vshrl.u32 %v1956, 7
    %v1958 = vsub.s32 2, %v1957
    %v1959 = vrot.slane %v1291, %v1958
    %v1960 = vlaneseq
    %v1961 = vshrl.u32 %v1960, 7
    %v1962 = vsub.s32 0, %v1961
    %v1963 = vrot.slane %v1303, %v1962
    %v1964 = vlaneseq
    %v1965 = vshrl.u32 %v1964, 7
    %v1966 = vsub.s32 2, %v1965
    %v1967 = vrot.slane %v1303, %v1966
    %v1968 = vsel %vm1601, %v1460, %v1452
    %v1969 = vsel %vm1603, %v1468, %v1968
    %v1970 = vsel %vm1605, %v1476, %v1969
    %v1971 = vsel %vm1607, %v1484, %v1970
    %v1972 = vsel %vm1609, %v1492, %v1971
    %v1973 = vsel %vm1611, %v1500, %v1972
    %v1974 = vsel %vm1613, %v1508, %v1973
    %v1975 = vsel %vm1601, %v1464, %v1456
    %v1976 = vsel %vm1603, %v1472, %v1975
    %v1977 = vsel %vm1605, %v1480, %v1976
    %v1978 = vsel %vm1607, %v1488, %v1977
    %v1979 = vsel %vm1609, %v1496, %v1978
    %v1980 = vsel %vm1611, %v1504, %v1979
    %v1981 = vsel %vm1613, %v1512, %v1980
    %v1982 = vsel %vm1601, %v1955, %v1516
    %v1983 = vsel %vm1603, %v1532, %v1982
    %v1984 = vsel %vm1605, %v1540, %v1983
    %v1985 = vsel %vm1607, %v1548, %v1984
    %v1986 = vsel %vm1609, %v1556, %v1985
    %v1987 = vsel %vm1611, %v1564, %v1986
    %v1988 = vsel %vm1613, %v1572, %v1987
    %v1989 = vsel %vm1601, %v1959, %v1520
    %v1990 = vsel %vm1603, %v1536, %v1989
    %v1991 = vsel %vm1605, %v1544, %v1990
    %v1992 = vsel %vm1607, %v1552, %v1991
    %v1993 = vsel %vm1609, %v1560, %v1992
    %v1994 = vsel %vm1611, %v1568, %v1993
    %v1995 = vsel %vm1613, %v1576, %v1994
    %v1996 = vsel %vm1601, %v1588, %v1580
    %v1997 = vsel %vm1603, %v1596, %v1996
    %v1998 = vsel %vm1605, %v1963, %v1997
    %v1999 = vsel %vm1601, %v1592, %v1584
    %v2000 = vsel %vm1603, %v1600, %v1999
    %v2001 = vsel %vm1605, %v1967, %v2000
    %v2005 = vsel %vm1645, %v1981, 0
    %v2007 = vsel %vm1645, %v1995, 0
    %v2009 = vsel %vm1645, %v2001, 0
    %v2012 = vsel %vm395, %v1948, 0
    %v2015 = vsel %vm395, %v1949, 0
    %2017 = vmatprep.subr.mxu0 %v1893
    %2018 = vmatpush1.msra.mxu0 %v1892
    %2019 = vmatprep.subr.mxu0 %v1895
    %2020 = vmatpush1.msra.mxu0 %v1894
    %2021 = vmatprep.subr.mxu0 %v1897
    %2022 = vmatpush1.msra.mxu0 %v1896
    %2023 = vmatprep.subr.mxu0 %v1899
    %2024 = vmatpush1.msra.mxu0 %v1898
    %2025 = vmatprep.subr.mxu0 %v1901
    %2026 = vmatpush1.msra.mxu0 %v1900
    %2027 = vmatprep.subr.mxu0 %v1903
    %2028 = vmatpush1.msra.mxu0 %v1902
    %2029 = vmatprep.subr.mxu0 %v1905
    %2030 = vmatpush1.msra.mxu0 %v1904
    %2031 = vmatprep.subr.mxu0 %v1907
    %2032 = vmatpush1.msra.mxu0 %v1906
    %2033 = vmatprep.subr.mxu0 %v1909
    %2034 = vmatpush1.msra.mxu0 %v1908
    %2035 = vmatprep.subr.mxu0 %v1911
    %2036 = vmatpush1.msra.mxu0 %v1910
    %2037 = vmatprep.subr.mxu0 %v1913
    %2038 = vmatpush1.msra.mxu0 %v1912
    %2039 = vmatprep.subr.mxu0 %v1915
    %2040 = vmatpush1.msra.mxu0 %v1914
    %2041 = vmatprep.subr.mxu0 %v1917
    %2042 = vmatpush1.msra.mxu0 %v1916
    %2043 = vmatprep.subr.mxu0 %v1919
    %2044 = vmatpush1.msra.mxu0 %v1918
    %2045 = vmatprep.subr.mxu0 %v1921
    %2046 = vmatpush1.msra.mxu0 %v1920
    %2047 = vmatprep.subr.mxu0 %v1923
    %2048 = vmatpush1.msra.mxu0 %v1922
    %2049 = vmatprep.subr.mxu0 %v1925
    %2050 = vmatpush1.msra.mxu0 %v1924
    %2051 = vmatprep.subr.mxu0 %v1927
    %2052 = vmatpush1.msra.mxu0 %v1926
    %2053 = vmatprep.subr.mxu0 %v1929
    %2054 = vmatpush1.msra.mxu0 %v1928
    %2055 = vmatprep.subr.mxu0 %v1931
    %2056 = vmatpush1.msra.mxu0 %v1930
    %2057 = vmatprep.subr.mxu0 %v1933
    %2058 = vmatpush1.msra.mxu0 %v1932
    %2059 = vmatprep.subr.mxu0 %v1935
    %2060 = vmatpush1.msra.mxu0 %v1934
    %2061 = vmatprep.subr.mxu0 %v1937
    %2062 = vmatpush1.msra.mxu0 %v1936
    %2063 = vmatprep.subr.mxu0 %v1939
    %2064 = vmatpush1.msra.mxu0 %v1938
    %2065 = vmatprep.subr.mxu0 %v1941
    %2066 = vmatpush1.msra.mxu0 %v1940
    %2067 = vmatprep.subr.mxu0 %v1943
    %2068 = vmatpush1.msra.mxu0 %v1942
    %2069 = vmatprep.subr.mxu0 %v1945
    %2070 = vmatpush1.msra.mxu0 %v1944
    %2071 = vmatprep.subr.mxu0 %v1947
    %2072 = vmatpush1.msra.mxu0 %v1946
    %2073 = vmatprep.subr.mxu0 %v2015
    %2074 = vmatpush1.msra.mxu0 %v2012
    %2075 = vmatprep.subr.mxu0 0.0
    %2076 = vmatpush1.msra.mxu0 0.0
    %2077 = vmatprep.subr.mxu0 0.0
    %2078 = vmatpush1.msra.mxu0 0.0
    %2079 = vmatprep.subr.mxu0 0.0
    %2080 = vmatpush1.msra.mxu0 0.0
    %2081 = vmatprep.mubr.f32.mxu0 %v2005
    %2082 = vmatmul.mubr.f32.gmra.mrb[0].mxu0 %v1974
    %v2083 = vpop.f32.mrb[0].mxu0
    %v2084 = vadd.f32 0.0, %v2083
    %v2085 = vpop.f32.mrb[0].mxu0
    %v2086 = vadd.f32 0.0, %v2085
    %2087 = vmatprep.mubr.f32.mxu0 %v2007
    %2088 = vmatmul.mubr.f32.gmra.mrb[0].mxu0 %v1988
    %v2089 = vpop.f32.mrb[0].mxu0
    %v2090 = vadd.f32 0.0, %v2089
    %v2091 = vpop.f32.mrb[0].mxu0
    %v2092 = vadd.f32 0.0, %v2091
    %2093 = vmatprep.mubr.f32.mxu0 %v2009
    %2094 = vmatmul.mubr.f32.gmra.mrb[0].mxu0 %v1998
    %v2095 = vpop.f32.mrb[0].mxu0
    %v2096 = vadd.f32 0.0, %v2095
    %v2097 = vpop.f32.mrb[0].mxu0
    %v2098 = vadd.f32 0.0, %v2097
    %2099 = vdwg.mxu0
    %v2100 = vadd.f32 %v1875, %v2084
    %v2101 = vadd.f32 %v1877, %v2086
    %v2102 = vadd.f32 %v1881, %v2090
    %v2103 = vadd.f32 %v1883, %v2092
    %v2104 = vadd.f32 %v1887, %v2096
    %v2105 = vadd.f32 %v1889, %v2098
    %v2106 = vld [vmem:[#allocation7] sm:$0x3]
    %v2108 = vlaneseq
    %v2109 = vshrl.u32 %v2108, 7
    %v2110 = vsub.s32 0, %v2109
    %v2111 = vrot.slane %v2106, %v2110
    %v2112 = vlaneseq
    %v2113 = vshrl.u32 %v2112, 7
    %v2114 = vsub.s32 1, %v2113
    %v2115 = vrot.slane %v2106, %v2114
    %v2118 = vadd.f32 %v2100, %v2111
    %v2119 = vadd.f32 %v2101, %v2115
    %v2120 = vadd.f32 %v2102, %v2111
    %v2121 = vadd.f32 %v2103, %v2115
    %v2122 = vadd.f32 %v2104, %v2111
    %v2123 = vadd.f32 %v2105, %v2115
    %v2124 = vmax.f32 %v2118, 0.0
    %v2125 = vmax.f32 %v2119, 0.0
    %v2126 = vmax.f32 %v2120, 0.0
    %v2127 = vmax.f32 %v2121, 0.0
    %v2128 = vmax.f32 %v2122, 0.0
    %v2129 = vmax.f32 %v2123, 0.0
    %v2136 = vcombine.low %v2124, %v2125
    %v2137 = vcombine.high %v2124, %v2125
    %v2139 = vunpack.c.l.s4 1983009808
    %v2140 = vunpack.c.0.s8 %v2139
    %v2141 = vlaneseq
    %v2142 = vshrl.u32 %v2141, 7
    %v2143 = vsub.s32 %v2140, %v2142
    %v2144 = vrot.slane %v2136, %v2143
    %v2146 = vunpack.c.l.s4 1983009808
    %v2147 = vunpack.c.0.s8 %v2146
    %v2148 = vlaneseq
    %v2149 = vshrl.u32 %v2148, 7
    %v2150 = vsub.s32 %v2147, %v2149
    %v2151 = vrot.slane %v2137, %v2150
    %v2152 = vcombine.high %v2144, %v2144
    %v2153 = vcombine.high %v2151, %v2151
    %v2154 = vcombine.low %v2126, %v2127
    %v2155 = vcombine.high %v2126, %v2127
    %v2157 = vunpack.c.l.s4 1983009808
    %v2158 = vunpack.c.0.s8 %v2157
    %v2159 = vlaneseq
    %v2160 = vshrl.u32 %v2159, 7
    %v2161 = vsub.s32 %v2158, %v2160
    %v2162 = vrot.slane %v2154, %v2161
    %v2164 = vunpack.c.l.s4 1983009808
    %v2165 = vunpack.c.0.s8 %v2164
    %v2166 = vlaneseq
    %v2167 = vshrl.u32 %v2166, 7
    %v2168 = vsub.s32 %v2165, %v2167
    %v2169 = vrot.slane %v2155, %v2168
    %v2170 = vcombine.high %v2162, %v2162
    %v2171 = vcombine.high %v2169, %v2169
    %v2172 = vcombine.low %v2128, %v2129
    %v2174 = vunpack.c.l.s4 1983009808
    %v2175 = vunpack.c.0.s8 %v2174
    %v2176 = vlaneseq
    %v2177 = vshrl.u32 %v2176, 7
    %v2178 = vsub.s32 %v2175, %v2177
    %v2179 = vrot.slane %v2172, %v2178
    %v2180 = vcombine.high %v2179, %v2179
    %v2181 = vld [vmem:[#allocation8] sm:$0xff]
    %v2182 = vld [vmem:[#allocation8 + $0x8] sm:$0xff]
    %v2183 = vld [vmem:[#allocation8 + $0x10] sm:$0xff]
    %v2184 = vld [vmem:[#allocation8 + $0x18] sm:$0xff]
    %v2185 = vld [vmem:[#allocation8 + $0x20] sm:$0xff]
    %v2186 = vld [vmem:[#allocation8 + $0x28] sm:$0xff]
    %v2187 = vld [vmem:[#allocation8 + $0x30] sm:$0xff]
    %v2188 = vld [vmem:[#allocation8 + $0x38] sm:$0xff]
    %v2189 = vld [vmem:[#allocation8 + $0x40] sm:$0xff]
    %v2190 = vld [vmem:[#allocation8 + $0x48] sm:$0xff]
    %v2191 = vld [vmem:[#allocation8 + $0x50] sm:$0xff]
    %v2192 = vld [vmem:[#allocation8 + $0x58] sm:$0xff]
    %v2193 = vld [vmem:[#allocation8 + $0x60] sm:$0xff]
    %v2194 = vld [vmem:[#allocation8 + $0x68] sm:$0xff]
    %v2195 = vld [vmem:[#allocation8 + $0x70] sm:$0xff]
    %v2196 = vld [vmem:[#allocation8 + $0x78] sm:$0xff]
    %v2197 = vld [vmem:[#allocation8 + $0x80] sm:$0xff]
    %v2198 = vld [vmem:[#allocation8 + $0x88] sm:$0xff]
    %v2199 = vld [vmem:[#allocation8 + $0x90] sm:$0xff]
    %v2200 = vld [vmem:[#allocation8 + $0x98] sm:$0xff]
    %v2201 = vld [vmem:[#allocation8 + $0xa0] sm:$0xff]
    %v2202 = vld [vmem:[#allocation8 + $0xa8] sm:$0xff]
    %v2203 = vld [vmem:[#allocation8 + $0xb0] sm:$0xff]
    %v2204 = vld [vmem:[#allocation8 + $0xb8] sm:$0xff]
    %v2205 = vld [vmem:[#allocation8 + $0xc0] sm:$0xff]
    %v2206 = vld [vmem:[#allocation8 + $0xc8] sm:$0xff]
    %v2207 = vld [vmem:[#allocation8 + $0xd0] sm:$0xff]
    %v2208 = vld [vmem:[#allocation8 + $0xd8] sm:$0xff]
    %v2209 = vld [vmem:[#allocation8 + $0xe0] sm:$0xff]
    %v2210 = vld [vmem:[#allocation8 + $0xe8] sm:$0xff]
    %v2211 = vld [vmem:[#allocation8 + $0xf0] sm:$0xff]
    %v2212 = vld [vmem:[#allocation8 + $0xf8] sm:$0xff]
    %v2213 = vld [vmem:[#allocation8 + $0x100] sm:$0xff]
    %v2214 = vld [vmem:[#allocation8 + $0x108] sm:$0xff]
    %v2215 = vld [vmem:[#allocation8 + $0x110] sm:$0xff]
    %v2216 = vld [vmem:[#allocation8 + $0x118] sm:$0xff]
    %v2217 = vld [vmem:[#allocation8 + $0x120] sm:$0xff]
    %v2218 = vld [vmem:[#allocation8 + $0x128] sm:$0xff]
    %v2219 = vld [vmem:[#allocation8 + $0x130] sm:$0xff]
    %v2220 = vld [vmem:[#allocation8 + $0x138] sm:$0xff]
    %v2221 = vld [vmem:[#allocation8 + $0x140] sm:$0xff]
    %v2222 = vld [vmem:[#allocation8 + $0x148] sm:$0xff]
    %v2223 = vld [vmem:[#allocation8 + $0x150] sm:$0xff]
    %v2224 = vld [vmem:[#allocation8 + $0x158] sm:$0xff]
    %v2225 = vld [vmem:[#allocation8 + $0x160] sm:$0xff]
    %v2226 = vld [vmem:[#allocation8 + $0x168] sm:$0xff]
    %v2227 = vld [vmem:[#allocation8 + $0x170] sm:$0xff]
    %v2228 = vld [vmem:[#allocation8 + $0x178] sm:$0xff]
    %v2229 = vld [vmem:[#allocation8 + $0x180] sm:$0xff]
    %v2230 = vld [vmem:[#allocation8 + $0x188] sm:$0xff]
    %v2231 = vld [vmem:[#allocation8 + $0x190] sm:$0xff]
    %v2232 = vld [vmem:[#allocation8 + $0x198] sm:$0xff]
    %v2233 = vld [vmem:[#allocation8 + $0x1a0] sm:$0xff]
    %v2234 = vld [vmem:[#allocation8 + $0x1a8] sm:$0xff]
    %v2235 = vld [vmem:[#allocation8 + $0x1b0] sm:$0xff]
    %v2236 = vld [vmem:[#allocation8 + $0x1b8] sm:$0xff]
    %v2237 = vld [vmem:[#allocation8 + $0x1c0] sm:$0xff]
    %v2238 = vld [vmem:[#allocation8 + $0x1c8] sm:$0xff]
    %v2239 = vld [vmem:[#allocation8 + $0x1d0] sm:$0xff]
    %v2240 = vld [vmem:[#allocation8 + $0x1d8] sm:$0xff]
    %v2241 = vld [vmem:[#allocation8 + $0x1e0] sm:$0xff]
    %v2242 = vld [vmem:[#allocation8 + $0x1e8] sm:$0xff]
    %v2243 = vld [vmem:[#allocation8 + $0x1f0] sm:$0xff]
    %v2244 = vld [vmem:[#allocation8 + $0x1f8] sm:$0xff]
    %v2245 = vld [vmem:[#allocation8 + $0x200] sm:$0xff]
    %v2246 = vld [vmem:[#allocation8 + $0x208] sm:$0xff]
    %v2247 = vld [vmem:[#allocation8 + $0x210] sm:$0xff]
    %v2248 = vld [vmem:[#allocation8 + $0x218] sm:$0xff]
    %v2249 = vld [vmem:[#allocation8 + $0x220] sm:$0xff]
    %v2250 = vld [vmem:[#allocation8 + $0x228] sm:$0xff]
    %v2251 = vld [vmem:[#allocation8 + $0x230] sm:$0xff]
    %v2252 = vld [vmem:[#allocation8 + $0x238] sm:$0xff]
    %v2253 = vld [vmem:[#allocation8 + $0x240] sm:$0xff]
    %v2254 = vld [vmem:[#allocation8 + $0x248] sm:$0xff]
    %v2255 = vld [vmem:[#allocation8 + $0x250] sm:$0xff]
    %v2256 = vld [vmem:[#allocation8 + $0x258] sm:$0xff]
    %v2257 = vld [vmem:[#allocation8 + $0x260] sm:$0xff]
    %v2258 = vld [vmem:[#allocation8 + $0x268] sm:$0xff]
    %v2259 = vld [vmem:[#allocation8 + $0x270] sm:$0xff]
    %v2260 = vld [vmem:[#allocation8 + $0x278] sm:$0xff]
    %v2261 = vld [vmem:[#allocation8 + $0x280] sm:$0xff]
    %v2262 = vld [vmem:[#allocation8 + $0x288] sm:$0xff]
    %v2263 = vld [vmem:[#allocation8 + $0x290] sm:$0xff]
    %v2264 = vld [vmem:[#allocation8 + $0x298] sm:$0xff]
    %v2265 = vld [vmem:[#allocation8 + $0x2a0] sm:$0xff]
    %v2266 = vld [vmem:[#allocation8 + $0x2a8] sm:$0xff]
    %v2267 = vld [vmem:[#allocation8 + $0x2b0] sm:$0xff]
    %v2268 = vld [vmem:[#allocation8 + $0x2b8] sm:$0xff]
    %v2269 = vld [vmem:[#allocation8 + $0x2c0] sm:$0xff]
    %v2270 = vld [vmem:[#allocation8 + $0x2c8] sm:$0xff]
    %v2271 = vld [vmem:[#allocation8 + $0x2d0] sm:$0xff]
    %v2272 = vld [vmem:[#allocation8 + $0x2d8] sm:$0xff]
    %v2273 = vld [vmem:[#allocation8 + $0x2e0] sm:$0xff]
    %v2274 = vld [vmem:[#allocation8 + $0x2e8] sm:$0xff]
    %v2275 = vld [vmem:[#allocation8 + $0x2f0] sm:$0xff]
    %v2276 = vld [vmem:[#allocation8 + $0x2f8] sm:$0xff]
    %v2277 = vld [vmem:[#allocation8 + $0x300] sm:$0xff]
    %v2278 = vld [vmem:[#allocation8 + $0x308] sm:$0xff]
    %v2279 = vld [vmem:[#allocation8 + $0x310] sm:$0xff]
    %v2280 = vld [vmem:[#allocation8 + $0x318] sm:$0xff]
    %s2281 = scalar_lea.vmem [#allocation8], 800
    %v2282 = vld [vmem:[%s2281] sm:$0xff]
    %v2283 = vld [vmem:[%s2281 + $0x8] sm:$0xff]
    %v2284 = vld [vmem:[%s2281 + $0x10] sm:$0xff]
    %v2285 = vld [vmem:[%s2281 + $0x18] sm:$0xff]
    %v2286 = vld [vmem:[%s2281 + $0x20] sm:$0xff]
    %v2287 = vld [vmem:[%s2281 + $0x28] sm:$0xff]
    %v2288 = vld [vmem:[%s2281 + $0x30] sm:$0xff]
    %v2289 = vld [vmem:[%s2281 + $0x38] sm:$0xff]
    %v2290 = vld [vmem:[%s2281 + $0x40] sm:$0xff]
    %v2291 = vld [vmem:[%s2281 + $0x48] sm:$0xff]
    %v2292 = vld [vmem:[%s2281 + $0x50] sm:$0xff]
    %v2293 = vld [vmem:[%s2281 + $0x58] sm:$0xff]
    %v2294 = vld [vmem:[%s2281 + $0x60] sm:$0xff]
    %v2295 = vld [vmem:[%s2281 + $0x68] sm:$0xff]
    %v2296 = vld [vmem:[%s2281 + $0x70] sm:$0xff]
    %v2297 = vld [vmem:[%s2281 + $0x78] sm:$0xff]
    %v2298 = vld [vmem:[%s2281 + $0x80] sm:$0xff]
    %v2299 = vld [vmem:[%s2281 + $0x88] sm:$0xff]
    %v2300 = vld [vmem:[%s2281 + $0x90] sm:$0xff]
    %v2301 = vld [vmem:[%s2281 + $0x98] sm:$0xff]
    %v2302 = vld [vmem:[%s2281 + $0xa0] sm:$0xff]
    %v2303 = vld [vmem:[%s2281 + $0xa8] sm:$0xff]
    %v2304 = vld [vmem:[%s2281 + $0xb0] sm:$0xff]
    %v2305 = vld [vmem:[%s2281 + $0xb8] sm:$0xff]
    %v2306 = vld [vmem:[%s2281 + $0xc0] sm:$0xff]
    %v2307 = vld [vmem:[%s2281 + $0xc8] sm:$0xff]
    %v2308 = vld [vmem:[%s2281 + $0xd0] sm:$0xff]
    %v2309 = vld [vmem:[%s2281 + $0xd8] sm:$0xff]
    %v2310 = vld [vmem:[%s2281 + $0xe0] sm:$0xff]
    %v2311 = vld [vmem:[%s2281 + $0xe8] sm:$0xff]
    %v2312 = vld [vmem:[%s2281 + $0xf0] sm:$0xff]
    %v2313 = vld [vmem:[%s2281 + $0xf8] sm:$0xff]
    %v2314 = vld [vmem:[%s2281 + $0x100] sm:$0xff]
    %v2315 = vld [vmem:[%s2281 + $0x108] sm:$0xff]
    %v2316 = vld [vmem:[%s2281 + $0x110] sm:$0xff]
    %v2317 = vld [vmem:[%s2281 + $0x118] sm:$0xff]
    %v2318 = vld [vmem:[%s2281 + $0x120] sm:$0xff]
    %v2319 = vld [vmem:[%s2281 + $0x128] sm:$0xff]
    %v2320 = vld [vmem:[%s2281 + $0x130] sm:$0xff]
    %v2321 = vld [vmem:[%s2281 + $0x138] sm:$0xff]
    %v2322 = vld [vmem:[%s2281 + $0x140] sm:$0xff]
    %v2323 = vld [vmem:[%s2281 + $0x148] sm:$0xff]
    %v2324 = vld [vmem:[%s2281 + $0x150] sm:$0xff]
    %v2325 = vld [vmem:[%s2281 + $0x158] sm:$0xff]
    %v2326 = vld [vmem:[%s2281 + $0x160] sm:$0xff]
    %v2327 = vld [vmem:[%s2281 + $0x168] sm:$0xff]
    %v2328 = vld [vmem:[%s2281 + $0x170] sm:$0xff]
    %v2329 = vld [vmem:[%s2281 + $0x178] sm:$0xff]
    %v2330 = vld [vmem:[%s2281 + $0x180] sm:$0xff]
    %v2331 = vld [vmem:[%s2281 + $0x188] sm:$0xff]
    %v2332 = vld [vmem:[%s2281 + $0x190] sm:$0xff]
    %v2333 = vld [vmem:[%s2281 + $0x198] sm:$0xff]
    %v2334 = vld [vmem:[%s2281 + $0x1a0] sm:$0xff]
    %v2335 = vld [vmem:[%s2281 + $0x1a8] sm:$0xff]
    %v2336 = vld [vmem:[%s2281 + $0x1b0] sm:$0xff]
    %v2337 = vld [vmem:[%s2281 + $0x1b8] sm:$0xff]
    %v2338 = vld [vmem:[%s2281 + $0x1c0] sm:$0xff]
    %v2339 = vld [vmem:[%s2281 + $0x1c8] sm:$0xff]
    %v2340 = vld [vmem:[%s2281 + $0x1d0] sm:$0xff]
    %v2341 = vld [vmem:[%s2281 + $0x1d8] sm:$0xff]
    %v2342 = vld [vmem:[%s2281 + $0x1e0] sm:$0xff]
    %v2343 = vld [vmem:[%s2281 + $0x1e8] sm:$0xff]
    %v2344 = vld [vmem:[%s2281 + $0x1f0] sm:$0xff]
    %v2345 = vld [vmem:[%s2281 + $0x1f8] sm:$0xff]
    %v2346 = vld [vmem:[%s2281 + $0x200] sm:$0xff]
    %v2347 = vld [vmem:[%s2281 + $0x208] sm:$0xff]
    %v2348 = vld [vmem:[%s2281 + $0x210] sm:$0xff]
    %v2349 = vld [vmem:[%s2281 + $0x218] sm:$0xff]
    %v2350 = vld [vmem:[%s2281 + $0x220] sm:$0xff]
    %v2351 = vld [vmem:[%s2281 + $0x228] sm:$0xff]
    %v2352 = vld [vmem:[%s2281 + $0x230] sm:$0xff]
    %v2353 = vld [vmem:[%s2281 + $0x238] sm:$0xff]
    %v2354 = vld [vmem:[%s2281 + $0x240] sm:$0xff]
    %v2355 = vld [vmem:[%s2281 + $0x248] sm:$0xff]
    %v2356 = vld [vmem:[%s2281 + $0x250] sm:$0xff]
    %v2357 = vld [vmem:[%s2281 + $0x258] sm:$0xff]
    %v2358 = vld [vmem:[%s2281 + $0x260] sm:$0xff]
    %v2359 = vld [vmem:[%s2281 + $0x268] sm:$0xff]
    %v2360 = vld [vmem:[%s2281 + $0x270] sm:$0xff]
    %v2361 = vld [vmem:[%s2281 + $0x278] sm:$0xff]
    %v2362 = vld [vmem:[%s2281 + $0x280] sm:$0xff]
    %v2363 = vld [vmem:[%s2281 + $0x288] sm:$0xff]
    %v2364 = vld [vmem:[%s2281 + $0x290] sm:$0xff]
    %v2365 = vld [vmem:[%s2281 + $0x298] sm:$0xff]
    %v2366 = vld [vmem:[%s2281 + $0x2a0] sm:$0xff]
    %v2367 = vld [vmem:[%s2281 + $0x2a8] sm:$0xff]
    %v2368 = vld [vmem:[%s2281 + $0x2b0] sm:$0xff]
    %v2369 = vld [vmem:[%s2281 + $0x2b8] sm:$0xff]
    %v2370 = vld [vmem:[%s2281 + $0x2c0] sm:$0xff]
    %v2371 = vld [vmem:[%s2281 + $0x2c8] sm:$0xff]
    %v2372 = vld [vmem:[%s2281 + $0x2d0] sm:$0xff]
    %v2373 = vld [vmem:[%s2281 + $0x2d8] sm:$0xff]
    %v2374 = vld [vmem:[%s2281 + $0x2e0] sm:$0xff]
    %v2375 = vld [vmem:[%s2281 + $0x2e8] sm:$0xff]
    %v2376 = vld [vmem:[%s2281 + $0x2f0] sm:$0xff]
    %v2377 = vld [vmem:[%s2281 + $0x2f8] sm:$0xff]
    %v2378 = vld [vmem:[%s2281 + $0x300] sm:$0xff]
    %v2379 = vld [vmem:[%s2281 + $0x308] sm:$0xff]
    %v2380 = vld [vmem:[%s2281 + $0x310] sm:$0xff]
    %v2381 = vld [vmem:[%s2281 + $0x318] sm:$0xff]
    %v2382 = vlaneseq
    %v2383 = vshrl.u32 %v2382, 7
    %v2384 = vsub.s32 1, %v2383
    %v2385 = vrot.slane %v2144, %v2384
    %v2386 = vlaneseq
    %v2387 = vshrl.u32 %v2386, 7
    %v2388 = vsub.s32 3, %v2387
    %v2389 = vrot.slane %v2144, %v2388
    %v2390 = vlaneseq
    %v2391 = vshrl.u32 %v2390, 7
    %v2392 = vsub.s32 1, %v2391
    %v2393 = vrot.slane %v2170, %v2392
    %v2394 = vlaneseq
    %v2395 = vshrl.u32 %v2394, 7
    %v2396 = vsub.s32 3, %v2395
    %v2397 = vrot.slane %v2170, %v2396
    %v2398 = vsel %vm1601, %v2393, %v2385
    %v2399 = vsel %vm1601, %v2397, %v2389
    %vm2401 = vcmask 588800
    %v2402 = vsel %vm2401, %v2399, 0
    %2404 = vmatprep.subr.mxu0 %v2283
    %2405 = vmatpush1.msra.mxu0 %v2282
    %2406 = vmatprep.subr.mxu0 %v2287
    %2407 = vmatpush1.msra.mxu0 %v2286
    %2408 = vmatprep.subr.mxu0 %v2291
    %2409 = vmatpush1.msra.mxu0 %v2290
    %2410 = vmatprep.subr.mxu0 %v2295
    %2411 = vmatpush1.msra.mxu0 %v2294
    %2412 = vmatprep.subr.mxu0 %v2299
    %2413 = vmatpush1.msra.mxu0 %v2298
    %2414 = vmatprep.subr.mxu0 %v2303
    %2415 = vmatpush1.msra.mxu0 %v2302
    %2416 = vmatprep.subr.mxu0 %v2307
    %2417 = vmatpush1.msra.mxu0 %v2306
    %2418 = vmatprep.subr.mxu0 %v2311
    %2419 = vmatpush1.msra.mxu0 %v2310
    %2420 = vmatprep.subr.mxu0 %v2315
    %2421 = vmatpush1.msra.mxu0 %v2314
    %2422 = vmatprep.subr.mxu0 %v2319
    %2423 = vmatpush1.msra.mxu0 %v2318
    %2424 = vmatprep.subr.mxu0 %v2323
    %2425 = vmatpush1.msra.mxu0 %v2322
    %2426 = vmatprep.subr.mxu0 %v2327
    %2427 = vmatpush1.msra.mxu0 %v2326
    %2428 = vmatprep.subr.mxu0 %v2331
    %2429 = vmatpush1.msra.mxu0 %v2330
    %2430 = vmatprep.subr.mxu0 %v2335
    %2431 = vmatpush1.msra.mxu0 %v2334
    %2432 = vmatprep.subr.mxu0 %v2339
    %2433 = vmatpush1.msra.mxu0 %v2338
    %2434 = vmatprep.subr.mxu0 %v2343
    %2435 = vmatpush1.msra.mxu0 %v2342
    %2436 = vmatprep.subr.mxu0 %v2347
    %2437 = vmatpush1.msra.mxu0 %v2346
    %2438 = vmatprep.subr.mxu0 %v2351
    %2439 = vmatpush1.msra.mxu0 %v2350
    %2440 = vmatprep.subr.mxu0 %v2355
    %2441 = vmatpush1.msra.mxu0 %v2354
    %2442 = vmatprep.subr.mxu0 %v2359
    %2443 = vmatpush1.msra.mxu0 %v2358
    %2444 = vmatprep.subr.mxu0 %v2363
    %2445 = vmatpush1.msra.mxu0 %v2362
    %2446 = vmatprep.subr.mxu0 %v2367
    %2447 = vmatpush1.msra.mxu0 %v2366
    %2448 = vmatprep.subr.mxu0 %v2371
    %2449 = vmatpush1.msra.mxu0 %v2370
    %2450 = vmatprep.subr.mxu0 %v2375
    %2451 = vmatpush1.msra.mxu0 %v2374
    %2452 = vmatprep.subr.mxu0 %v2379
    %2453 = vmatpush1.msra.mxu0 %v2378
    %2454 = vmatprep.subr.mxu0 0.0
    %2455 = vmatpush1.msra.mxu0 0.0
    %2456 = vmatprep.subr.mxu0 0.0
    %2457 = vmatpush1.msra.mxu0 0.0
    %2458 = vmatprep.subr.mxu0 0.0
    %2459 = vmatpush1.msra.mxu0 0.0
    %2460 = vmatprep.subr.mxu0 0.0
    %2461 = vmatpush1.msra.mxu0 0.0
    %2462 = vmatprep.subr.mxu0 0.0
    %2463 = vmatpush1.msra.mxu0 0.0
    %2464 = vmatprep.subr.mxu0 0.0
    %2465 = vmatpush1.msra.mxu0 0.0
    %2466 = vmatprep.subr.mxu0 0.0
    %2467 = vmatpush1.msra.mxu0 0.0
    %2468 = vmatprep.mubr.f32.mxu0 %v2402
    %2469 = vmatmul.mubr.f32.gmra.mrb[0].mxu0 %v2398
    %v2470 = vpop.f32.mrb[0].mxu0
    %v2471 = vadd.f32 0.0, %v2470
    %v2472 = vpop.f32.mrb[0].mxu0
    %v2473 = vadd.f32 0.0, %v2472
    %2474 = vdwg.mxu0
    %2475 = vmatprep.subr.mxu0 %v2285
    %2476 = vmatpush1.msra.mxu0 %v2284
    %2477 = vmatprep.subr.mxu0 %v2289
    %2478 = vmatpush1.msra.mxu0 %v2288
    %2479 = vmatprep.subr.mxu0 %v2293
    %2480 = vmatpush1.msra.mxu0 %v2292
    %2481 = vmatprep.subr.mxu0 %v2297
    %2482 = vmatpush1.msra.mxu0 %v2296
    %2483 = vmatprep.subr.mxu0 %v2301
    %2484 = vmatpush1.msra.mxu0 %v2300
    %2485 = vmatprep.subr.mxu0 %v2305
    %2486 = vmatpush1.msra.mxu0 %v2304
    %2487 = vmatprep.subr.mxu0 %v2309
    %2488 = vmatpush1.msra.mxu0 %v2308
    %2489 = vmatprep.subr.mxu0 %v2313
    %2490 = vmatpush1.msra.mxu0 %v2312
    %2491 = vmatprep.subr.mxu0 %v2317
    %2492 = vmatpush1.msra.mxu0 %v2316
    %2493 = vmatprep.subr.mxu0 %v2321
    %2494 = vmatpush1.msra.mxu0 %v2320
    %2495 = vmatprep.subr.mxu0 %v2325
    %2496 = vmatpush1.msra.mxu0 %v2324
    %2497 = vmatprep.subr.mxu0 %v2329
    %2498 = vmatpush1.msra.mxu0 %v2328
    %2499 = vmatprep.subr.mxu0 %v2333
    %2500 = vmatpush1.msra.mxu0 %v2332
    %2501 = vmatprep.subr.mxu0 %v2337
    %2502 = vmatpush1.msra.mxu0 %v2336
    %2503 = vmatprep.subr.mxu0 %v2341
    %2504 = vmatpush1.msra.mxu0 %v2340
    %2505 = vmatprep.subr.mxu0 %v2345
    %2506 = vmatpush1.msra.mxu0 %v2344
    %2507 = vmatprep.subr.mxu0 %v2349
    %2508 = vmatpush1.msra.mxu0 %v2348
    %2509 = vmatprep.subr.mxu0 %v2353
    %2510 = vmatpush1.msra.mxu0 %v2352
    %2511 = vmatprep.subr.mxu0 %v2357
    %2512 = vmatpush1.msra.mxu0 %v2356
    %2513 = vmatprep.subr.mxu0 %v2361
    %2514 = vmatpush1.msra.mxu0 %v2360
    %2515 = vmatprep.subr.mxu0 %v2365
    %2516 = vmatpush1.msra.mxu0 %v2364
    %2517 = vmatprep.subr.mxu0 %v2369
    %2518 = vmatpush1.msra.mxu0 %v2368
    %2519 = vmatprep.subr.mxu0 %v2373
    %2520 = vmatpush1.msra.mxu0 %v2372
    %2521 = vmatprep.subr.mxu0 %v2377
    %2522 = vmatpush1.msra.mxu0 %v2376
    %2523 = vmatprep.subr.mxu0 %v2381
    %2524 = vmatpush1.msra.mxu0 %v2380
    %2525 = vmatprep.subr.mxu0 0.0
    %2526 = vmatpush1.msra.mxu0 0.0
    %2527 = vmatprep.subr.mxu0 0.0
    %2528 = vmatpush1.msra.mxu0 0.0
    %2529 = vmatprep.subr.mxu0 0.0
    %2530 = vmatpush1.msra.mxu0 0.0
    %2531 = vmatprep.subr.mxu0 0.0
    %2532 = vmatpush1.msra.mxu0 0.0
    %2533 = vmatprep.subr.mxu0 0.0
    %2534 = vmatpush1.msra.mxu0 0.0
    %2535 = vmatprep.subr.mxu0 0.0
    %2536 = vmatpush1.msra.mxu0 0.0
    %2537 = vmatprep.subr.mxu0 0.0
    %2538 = vmatpush1.msra.mxu0 0.0
    %2539 = vmatprep.mubr.f32.mxu0 %v2402
    %2540 = vmatmul.mubr.f32.gmra.mrb[0].mxu0 %v2398
    %v2541 = vpop.f32.mrb[0].mxu0
    %v2542 = vadd.f32 0.0, %v2541
    %v2543 = vpop.f32.mrb[0].mxu0
    %v2544 = vadd.f32 0.0, %v2543
    %2545 = vdwg.mxu0
    %v2546 = vlaneseq
    %v2547 = vshrl.u32 %v2546, 7
    %v2548 = vsub.s32 0, %v2547
    %v2549 = vrot.slane %v2144, %v2548
    %v2550 = vlaneseq
    %v2551 = vshrl.u32 %v2550, 7
    %v2552 = vsub.s32 2, %v2551
    %v2553 = vrot.slane %v2144, %v2552
    %v2554 = vlaneseq
    %v2555 = vshrl.u32 %v2554, 7
    %v2556 = vsub.s32 0, %v2555
    %v2557 = vrot.slane %v2170, %v2556
    %v2558 = vlaneseq
    %v2559 = vshrl.u32 %v2558, 7
    %v2560 = vsub.s32 2, %v2559
    %v2561 = vrot.slane %v2170, %v2560
    %v2562 = vsel %vm1601, %v2557, %v2549
    %v2563 = vsel %vm1601, %v2561, %v2553
    %v2565 = vsel %vm2401, %v2563, 0
    %2567 = vmatprep.subr.mxu0 %v2182
    %2568 = vmatpush1.msra.mxu0 %v2181
    %2569 = vmatprep.subr.mxu0 %v2186
    %2570 = vmatpush1.msra.mxu0 %v2185
    %2571 = vmatprep.subr.mxu0 %v2190
    %2572 = vmatpush1.msra.mxu0 %v2189
    %2573 = vmatprep.subr.mxu0 %v2194
    %2574 = vmatpush1.msra.mxu0 %v2193
    %2575 = vmatprep.subr.mxu0 %v2198
    %2576 = vmatpush1.msra.mxu0 %v2197
    %2577 = vmatprep.subr.mxu0 %v2202
    %2578 = vmatpush1.msra.mxu0 %v2201
    %2579 = vmatprep.subr.mxu0 %v2206
    %2580 = vmatpush1.msra.mxu0 %v2205
    %2581 = vmatprep.subr.mxu0 %v2210
    %2582 = vmatpush1.msra.mxu0 %v2209
    %2583 = vmatprep.subr.mxu0 %v2214
    %2584 = vmatpush1.msra.mxu0 %v2213
    %2585 = vmatprep.subr.mxu0 %v2218
    %2586 = vmatpush1.msra.mxu0 %v2217
    %2587 = vmatprep.subr.mxu0 %v2222
    %2588 = vmatpush1.msra.mxu0 %v2221
    %2589 = vmatprep.subr.mxu0 %v2226
    %2590 = vmatpush1.msra.mxu0 %v2225
    %2591 = vmatprep.subr.mxu0 %v2230
    %2592 = vmatpush1.msra.mxu0 %v2229
    %2593 = vmatprep.subr.mxu0 %v2234
    %2594 = vmatpush1.msra.mxu0 %v2233
    %2595 = vmatprep.subr.mxu0 %v2238
    %2596 = vmatpush1.msra.mxu0 %v2237
    %2597 = vmatprep.subr.mxu0 %v2242
    %2598 = vmatpush1.msra.mxu0 %v2241
    %2599 = vmatprep.subr.mxu0 %v2246
    %2600 = vmatpush1.msra.mxu0 %v2245
    %2601 = vmatprep.subr.mxu0 %v2250
    %2602 = vmatpush1.msra.mxu0 %v2249
    %2603 = vmatprep.subr.mxu0 %v2254
    %2604 = vmatpush1.msra.mxu0 %v2253
    %2605 = vmatprep.subr.mxu0 %v2258
    %2606 = vmatpush1.msra.mxu0 %v2257
    %2607 = vmatprep.subr.mxu0 %v2262
    %2608 = vmatpush1.msra.mxu0 %v2261
    %2609 = vmatprep.subr.mxu0 %v2266
    %2610 = vmatpush1.msra.mxu0 %v2265
    %2611 = vmatprep.subr.mxu0 %v2270
    %2612 = vmatpush1.msra.mxu0 %v2269
    %2613 = vmatprep.subr.mxu0 %v2274
    %2614 = vmatpush1.msra.mxu0 %v2273
    %2615 = vmatprep.subr.mxu0 %v2278
    %2616 = vmatpush1.msra.mxu0 %v2277
    %2617 = vmatprep.subr.mxu0 0.0
    %2618 = vmatpush1.msra.mxu0 0.0
    %2619 = vmatprep.subr.mxu0 0.0
    %2620 = vmatpush1.msra.mxu0 0.0
    %2621 = vmatprep.subr.mxu0 0.0
    %2622 = vmatpush1.msra.mxu0 0.0
    %2623 = vmatprep.subr.mxu0 0.0
    %2624 = vmatpush1.msra.mxu0 0.0
    %2625 = vmatprep.subr.mxu0 0.0
    %2626 = vmatpush1.msra.mxu0 0.0
    %2627 = vmatprep.subr.mxu0 0.0
    %2628 = vmatpush1.msra.mxu0 0.0
    %2629 = vmatprep.subr.mxu0 0.0
    %2630 = vmatpush1.msra.mxu0 0.0
    %2631 = vmatprep.mubr.f32.mxu0 %v2565
    %2632 = vmatmul.mubr.f32.gmra.mrb[0].mxu0 %v2562
    %v2633 = vpop.f32.mrb[0].mxu0
    %v2634 = vadd.f32 %v2471, %v2633
    %v2635 = vpop.f32.mrb[0].mxu0
    %v2636 = vadd.f32 %v2473, %v2635
    %2637 = vdwg.mxu0
    %2638 = vmatprep.subr.mxu0 %v2184
    %2639 = vmatpush1.msra.mxu0 %v2183
    %2640 = vmatprep.subr.mxu0 %v2188
    %2641 = vmatpush1.msra.mxu0 %v2187
    %2642 = vmatprep.subr.mxu0 %v2192
    %2643 = vmatpush1.msra.mxu0 %v2191
    %2644 = vmatprep.subr.mxu0 %v2196
    %2645 = vmatpush1.msra.mxu0 %v2195
    %2646 = vmatprep.subr.mxu0 %v2200
    %2647 = vmatpush1.msra.mxu0 %v2199
    %2648 = vmatprep.subr.mxu0 %v2204
    %2649 = vmatpush1.msra.mxu0 %v2203
    %2650 = vmatprep.subr.mxu0 %v2208
    %2651 = vmatpush1.msra.mxu0 %v2207
    %2652 = vmatprep.subr.mxu0 %v2212
    %2653 = vmatpush1.msra.mxu0 %v2211
    %2654 = vmatprep.subr.mxu0 %v2216
    %2655 = vmatpush1.msra.mxu0 %v2215
    %2656 = vmatprep.subr.mxu0 %v2220
    %2657 = vmatpush1.msra.mxu0 %v2219
    %2658 = vmatprep.subr.mxu0 %v2224
    %2659 = vmatpush1.msra.mxu0 %v2223
    %2660 = vmatprep.subr.mxu0 %v2228
    %2661 = vmatpush1.msra.mxu0 %v2227
    %2662 = vmatprep.subr.mxu0 %v2232
    %2663 = vmatpush1.msra.mxu0 %v2231
    %2664 = vmatprep.subr.mxu0 %v2236
    %2665 = vmatpush1.msra.mxu0 %v2235
    %2666 = vmatprep.subr.mxu0 %v2240
    %2667 = vmatpush1.msra.mxu0 %v2239
    %2668 = vmatprep.subr.mxu0 %v2244
    %2669 = vmatpush1.msra.mxu0 %v2243
    %2670 = vmatprep.subr.mxu0 %v2248
    %2671 = vmatpush1.msra.mxu0 %v2247
    %2672 = vmatprep.subr.mxu0 %v2252
    %2673 = vmatpush1.msra.mxu0 %v2251
    %2674 = vmatprep.subr.mxu0 %v2256
    %2675 = vmatpush1.msra.mxu0 %v2255
    %2676 = vmatprep.subr.mxu0 %v2260
    %2677 = vmatpush1.msra.mxu0 %v2259
    %2678 = vmatprep.subr.mxu0 %v2264
    %2679 = vmatpush1.msra.mxu0 %v2263
    %2680 = vmatprep.subr.mxu0 %v2268
    %2681 = vmatpush1.msra.mxu0 %v2267
    %2682 = vmatprep.subr.mxu0 %v2272
    %2683 = vmatpush1.msra.mxu0 %v2271
    %2684 = vmatprep.subr.mxu0 %v2276
    %2685 = vmatpush1.msra.mxu0 %v2275
    %2686 = vmatprep.subr.mxu0 %v2280
    %2687 = vmatpush1.msra.mxu0 %v2279
    %2688 = vmatprep.subr.mxu0 0.0
    %2689 = vmatpush1.msra.mxu0 0.0
    %2690 = vmatprep.subr.mxu0 0.0
    %2691 = vmatpush1.msra.mxu0 0.0
    %2692 = vmatprep.subr.mxu0 0.0
    %2693 = vmatpush1.msra.mxu0 0.0
    %2694 = vmatprep.subr.mxu0 0.0
    %2695 = vmatpush1.msra.mxu0 0.0
    %2696 = vmatprep.subr.mxu0 0.0
    %2697 = vmatpush1.msra.mxu0 0.0
    %2698 = vmatprep.subr.mxu0 0.0
    %2699 = vmatpush1.msra.mxu0 0.0
    %2700 = vmatprep.subr.mxu0 0.0
    %2701 = vmatpush1.msra.mxu0 0.0
    %2702 = vmatprep.mubr.f32.mxu0 %v2565
    %2703 = vmatmul.mubr.f32.gmra.mrb[0].mxu0 %v2562
    %v2704 = vpop.f32.mrb[0].mxu0
    %v2705 = vadd.f32 %v2542, %v2704
    %v2706 = vpop.f32.mrb[0].mxu0
    %v2707 = vadd.f32 %v2544, %v2706
    %2708 = vdwg.mxu0
    %s2709 = scalar_lea.vmem [#allocation8], 1600
    %v2710 = vld [vmem:[%s2709] sm:$0xff]
    %v2711 = vld [vmem:[%s2709 + $0x8] sm:$0xff]
    %v2712 = vld [vmem:[%s2709 + $0x10] sm:$0xff]
    %v2713 = vld [vmem:[%s2709 + $0x18] sm:$0xff]
    %v2714 = vld [vmem:[%s2709 + $0x20] sm:$0xff]
    %v2715 = vld [vmem:[%s2709 + $0x28] sm:$0xff]
    %v2716 = vld [vmem:[%s2709 + $0x30] sm:$0xff]
    %v2717 = vld [vmem:[%s2709 + $0x38] sm:$0xff]
    %v2718 = vld [vmem:[%s2709 + $0x40] sm:$0xff]
    %v2719 = vld [vmem:[%s2709 + $0x48] sm:$0xff]
    %v2720 = vld [vmem:[%s2709 + $0x50] sm:$0xff]
    %v2721 = vld [vmem:[%s2709 + $0x58] sm:$0xff]
    %v2722 = vld [vmem:[%s2709 + $0x60] sm:$0xff]
    %v2723 = vld [vmem:[%s2709 + $0x68] sm:$0xff]
    %v2724 = vld [vmem:[%s2709 + $0x70] sm:$0xff]
    %v2725 = vld [vmem:[%s2709 + $0x78] sm:$0xff]
    %v2726 = vld [vmem:[%s2709 + $0x80] sm:$0xff]
    %v2727 = vld [vmem:[%s2709 + $0x88] sm:$0xff]
    %v2728 = vld [vmem:[%s2709 + $0x90] sm:$0xff]
    %v2729 = vld [vmem:[%s2709 + $0x98] sm:$0xff]
    %v2730 = vld [vmem:[%s2709 + $0xa0] sm:$0xff]
    %v2731 = vld [vmem:[%s2709 + $0xa8] sm:$0xff]
    %v2732 = vld [vmem:[%s2709 + $0xb0] sm:$0xff]
    %v2733 = vld [vmem:[%s2709 + $0xb8] sm:$0xff]
    %v2734 = vld [vmem:[%s2709 + $0xc0] sm:$0xff]
    %v2735 = vld [vmem:[%s2709 + $0xc8] sm:$0xff]
    %v2736 = vld [vmem:[%s2709 + $0xd0] sm:$0xff]
    %v2737 = vld [vmem:[%s2709 + $0xd8] sm:$0xff]
    %v2738 = vld [vmem:[%s2709 + $0xe0] sm:$0xff]
    %v2739 = vld [vmem:[%s2709 + $0xe8] sm:$0xff]
    %v2740 = vld [vmem:[%s2709 + $0xf0] sm:$0xff]
    %v2741 = vld [vmem:[%s2709 + $0xf8] sm:$0xff]
    %v2742 = vld [vmem:[%s2709 + $0x100] sm:$0xff]
    %v2743 = vld [vmem:[%s2709 + $0x108] sm:$0xff]
    %v2744 = vld [vmem:[%s2709 + $0x110] sm:$0xff]
    %v2745 = vld [vmem:[%s2709 + $0x118] sm:$0xff]
    %v2746 = vld [vmem:[%s2709 + $0x120] sm:$0xff]
    %v2747 = vld [vmem:[%s2709 + $0x128] sm:$0xff]
    %v2748 = vld [vmem:[%s2709 + $0x130] sm:$0xff]
    %v2749 = vld [vmem:[%s2709 + $0x138] sm:$0xff]
    %v2750 = vld [vmem:[%s2709 + $0x140] sm:$0xff]
    %v2751 = vld [vmem:[%s2709 + $0x148] sm:$0xff]
    %v2752 = vld [vmem:[%s2709 + $0x150] sm:$0xff]
    %v2753 = vld [vmem:[%s2709 + $0x158] sm:$0xff]
    %v2754 = vld [vmem:[%s2709 + $0x160] sm:$0xff]
    %v2755 = vld [vmem:[%s2709 + $0x168] sm:$0xff]
    %v2756 = vld [vmem:[%s2709 + $0x170] sm:$0xff]
    %v2757 = vld [vmem:[%s2709 + $0x178] sm:$0xff]
    %v2758 = vld [vmem:[%s2709 + $0x180] sm:$0xff]
    %v2759 = vld [vmem:[%s2709 + $0x188] sm:$0xff]
    %v2760 = vld [vmem:[%s2709 + $0x190] sm:$0xff]
    %v2761 = vld [vmem:[%s2709 + $0x198] sm:$0xff]
    %v2762 = vld [vmem:[%s2709 + $0x1a0] sm:$0xff]
    %v2763 = vld [vmem:[%s2709 + $0x1a8] sm:$0xff]
    %v2764 = vld [vmem:[%s2709 + $0x1b0] sm:$0xff]
    %v2765 = vld [vmem:[%s2709 + $0x1b8] sm:$0xff]
    %v2766 = vld [vmem:[%s2709 + $0x1c0] sm:$0xff]
    %v2767 = vld [vmem:[%s2709 + $0x1c8] sm:$0xff]
    %v2768 = vld [vmem:[%s2709 + $0x1d0] sm:$0xff]
    %v2769 = vld [vmem:[%s2709 + $0x1d8] sm:$0xff]
    %v2770 = vld [vmem:[%s2709 + $0x1e0] sm:$0xff]
    %v2771 = vld [vmem:[%s2709 + $0x1e8] sm:$0xff]
    %v2772 = vld [vmem:[%s2709 + $0x1f0] sm:$0xff]
    %v2773 = vld [vmem:[%s2709 + $0x1f8] sm:$0xff]
    %v2774 = vld [vmem:[%s2709 + $0x200] sm:$0xff]
    %v2775 = vld [vmem:[%s2709 + $0x208] sm:$0xff]
    %v2776 = vld [vmem:[%s2709 + $0x210] sm:$0xff]
    %v2777 = vld [vmem:[%s2709 + $0x218] sm:$0xff]
    %v2778 = vld [vmem:[%s2709 + $0x220] sm:$0xff]
    %v2779 = vld [vmem:[%s2709 + $0x228] sm:$0xff]
    %v2780 = vld [vmem:[%s2709 + $0x230] sm:$0xff]
    %v2781 = vld [vmem:[%s2709 + $0x238] sm:$0xff]
    %v2782 = vld [vmem:[%s2709 + $0x240] sm:$0xff]
    %v2783 = vld [vmem:[%s2709 + $0x248] sm:$0xff]
    %v2784 = vld [vmem:[%s2709 + $0x250] sm:$0xff]
    %v2785 = vld [vmem:[%s2709 + $0x258] sm:$0xff]
    %v2786 = vld [vmem:[%s2709 + $0x260] sm:$0xff]
    %v2787 = vld [vmem:[%s2709 + $0x268] sm:$0xff]
    %v2788 = vld [vmem:[%s2709 + $0x270] sm:$0xff]
    %v2789 = vld [vmem:[%s2709 + $0x278] sm:$0xff]
    %v2790 = vld [vmem:[%s2709 + $0x280] sm:$0xff]
    %v2791 = vld [vmem:[%s2709 + $0x288] sm:$0xff]
    %v2792 = vld [vmem:[%s2709 + $0x290] sm:$0xff]
    %v2793 = vld [vmem:[%s2709 + $0x298] sm:$0xff]
    %v2794 = vld [vmem:[%s2709 + $0x2a0] sm:$0xff]
    %v2795 = vld [vmem:[%s2709 + $0x2a8] sm:$0xff]
    %v2796 = vld [vmem:[%s2709 + $0x2b0] sm:$0xff]
    %v2797 = vld [vmem:[%s2709 + $0x2b8] sm:$0xff]
    %v2798 = vld [vmem:[%s2709 + $0x2c0] sm:$0xff]
    %v2799 = vld [vmem:[%s2709 + $0x2c8] sm:$0xff]
    %v2800 = vld [vmem:[%s2709 + $0x2d0] sm:$0xff]
    %v2801 = vld [vmem:[%s2709 + $0x2d8] sm:$0xff]
    %v2802 = vld [vmem:[%s2709 + $0x2e0] sm:$0xff]
    %v2803 = vld [vmem:[%s2709 + $0x2e8] sm:$0xff]
    %v2804 = vld [vmem:[%s2709 + $0x2f0] sm:$0xff]
    %v2805 = vld [vmem:[%s2709 + $0x2f8] sm:$0xff]
    %v2806 = vld [vmem:[%s2709 + $0x300] sm:$0xff]
    %v2807 = vld [vmem:[%s2709 + $0x308] sm:$0xff]
    %v2808 = vld [vmem:[%s2709 + $0x310] sm:$0xff]
    %v2809 = vld [vmem:[%s2709 + $0x318] sm:$0xff]
    %v2810 = vlaneseq
    %v2811 = vshrl.u32 %v2810, 7
    %v2812 = vsub.s32 0, %v2811
    %v2813 = vrot.slane %v2152, %v2812
    %v2814 = vlaneseq
    %v2815 = vshrl.u32 %v2814, 7
    %v2816 = vsub.s32 2, %v2815
    %v2817 = vrot.slane %v2152, %v2816
    %v2818 = vlaneseq
    %v2819 = vshrl.u32 %v2818, 7
    %v2820 = vsub.s32 0, %v2819
    %v2821 = vrot.slane %v2169, %v2820
    %v2822 = vlaneseq
    %v2823 = vshrl.u32 %v2822, 7
    %v2824 = vsub.s32 2, %v2823
    %v2825 = vrot.slane %v2169, %v2824
    %v2826 = vsel %vm1601, %v2821, %v2813
    %v2827 = vsel %vm1601, %v2825, %v2817
    %v2829 = vsel %vm2401, %v2827, 0
    %2831 = vmatprep.subr.mxu0 %v2711
    %2832 = vmatpush1.msra.mxu0 %v2710
    %2833 = vmatprep.subr.mxu0 %v2715
    %2834 = vmatpush1.msra.mxu0 %v2714
    %2835 = vmatprep.subr.mxu0 %v2719
    %2836 = vmatpush1.msra.mxu0 %v2718
    %2837 = vmatprep.subr.mxu0 %v2723
    %2838 = vmatpush1.msra.mxu0 %v2722
    %2839 = vmatprep.subr.mxu0 %v2727
    %2840 = vmatpush1.msra.mxu0 %v2726
    %2841 = vmatprep.subr.mxu0 %v2731
    %2842 = vmatpush1.msra.mxu0 %v2730
    %2843 = vmatprep.subr.mxu0 %v2735
    %2844 = vmatpush1.msra.mxu0 %v2734
    %2845 = vmatprep.subr.mxu0 %v2739
    %2846 = vmatpush1.msra.mxu0 %v2738
    %2847 = vmatprep.subr.mxu0 %v2743
    %2848 = vmatpush1.msra.mxu0 %v2742
    %2849 = vmatprep.subr.mxu0 %v2747
    %2850 = vmatpush1.msra.mxu0 %v2746
    %2851 = vmatprep.subr.mxu0 %v2751
    %2852 = vmatpush1.msra.mxu0 %v2750
    %2853 = vmatprep.subr.mxu0 %v2755
    %2854 = vmatpush1.msra.mxu0 %v2754
    %2855 = vmatprep.subr.mxu0 %v2759
    %2856 = vmatpush1.msra.mxu0 %v2758
    %2857 = vmatprep.subr.mxu0 %v2763
    %2858 = vmatpush1.msra.mxu0 %v2762
    %2859 = vmatprep.subr.mxu0 %v2767
    %2860 = vmatpush1.msra.mxu0 %v2766
    %2861 = vmatprep.subr.mxu0 %v2771
    %2862 = vmatpush1.msra.mxu0 %v2770
    %2863 = vmatprep.subr.mxu0 %v2775
    %2864 = vmatpush1.msra.mxu0 %v2774
    %2865 = vmatprep.subr.mxu0 %v2779
    %2866 = vmatpush1.msra.mxu0 %v2778
    %2867 = vmatprep.subr.mxu0 %v2783
    %2868 = vmatpush1.msra.mxu0 %v2782
    %2869 = vmatprep.subr.mxu0 %v2787
    %2870 = vmatpush1.msra.mxu0 %v2786
    %2871 = vmatprep.subr.mxu0 %v2791
    %2872 = vmatpush1.msra.mxu0 %v2790
    %2873 = vmatprep.subr.mxu0 %v2795
    %2874 = vmatpush1.msra.mxu0 %v2794
    %2875 = vmatprep.subr.mxu0 %v2799
    %2876 = vmatpush1.msra.mxu0 %v2798
    %2877 = vmatprep.subr.mxu0 %v2803
    %2878 = vmatpush1.msra.mxu0 %v2802
    %2879 = vmatprep.subr.mxu0 %v2807
    %2880 = vmatpush1.msra.mxu0 %v2806
    %2881 = vmatprep.subr.mxu0 0.0
    %2882 = vmatpush1.msra.mxu0 0.0
    %2883 = vmatprep.subr.mxu0 0.0
    %2884 = vmatpush1.msra.mxu0 0.0
    %2885 = vmatprep.subr.mxu0 0.0
    %2886 = vmatpush1.msra.mxu0 0.0
    %2887 = vmatprep.subr.mxu0 0.0
    %2888 = vmatpush1.msra.mxu0 0.0
    %2889 = vmatprep.subr.mxu0 0.0
    %2890 = vmatpush1.msra.mxu0 0.0
    %2891 = vmatprep.subr.mxu0 0.0
    %2892 = vmatpush1.msra.mxu0 0.0
    %2893 = vmatprep.subr.mxu0 0.0
    %2894 = vmatpush1.msra.mxu0 0.0
    %2895 = vmatprep.mubr.f32.mxu0 %v2829
    %2896 = vmatmul.mubr.f32.gmra.mrb[0].mxu0 %v2826
    %v2897 = vpop.f32.mrb[0].mxu0
    %v2898 = vadd.f32 0.0, %v2897
    %v2899 = vpop.f32.mrb[0].mxu0
    %v2900 = vadd.f32 0.0, %v2899
    %2901 = vdwg.mxu0
    %2902 = vmatprep.subr.mxu0 %v2713
    %2903 = vmatpush1.msra.mxu0 %v2712
    %2904 = vmatprep.subr.mxu0 %v2717
    %2905 = vmatpush1.msra.mxu0 %v2716
    %2906 = vmatprep.subr.mxu0 %v2721
    %2907 = vmatpush1.msra.mxu0 %v2720
    %2908 = vmatprep.subr.mxu0 %v2725
    %2909 = vmatpush1.msra.mxu0 %v2724
    %2910 = vmatprep.subr.mxu0 %v2729
    %2911 = vmatpush1.msra.mxu0 %v2728
    %2912 = vmatprep.subr.mxu0 %v2733
    %2913 = vmatpush1.msra.mxu0 %v2732
    %2914 = vmatprep.subr.mxu0 %v2737
    %2915 = vmatpush1.msra.mxu0 %v2736
    %2916 = vmatprep.subr.mxu0 %v2741
    %2917 = vmatpush1.msra.mxu0 %v2740
    %2918 = vmatprep.subr.mxu0 %v2745
    %2919 = vmatpush1.msra.mxu0 %v2744
    %2920 = vmatprep.subr.mxu0 %v2749
    %2921 = vmatpush1.msra.mxu0 %v2748
    %2922 = vmatprep.subr.mxu0 %v2753
    %2923 = vmatpush1.msra.mxu0 %v2752
    %2924 = vmatprep.subr.mxu0 %v2757
    %2925 = vmatpush1.msra.mxu0 %v2756
    %2926 = vmatprep.subr.mxu0 %v2761
    %2927 = vmatpush1.msra.mxu0 %v2760
    %2928 = vmatprep.subr.mxu0 %v2765
    %2929 = vmatpush1.msra.mxu0 %v2764
    %2930 = vmatprep.subr.mxu0 %v2769
    %2931 = vmatpush1.msra.mxu0 %v2768
    %2932 = vmatprep.subr.mxu0 %v2773
    %2933 = vmatpush1.msra.mxu0 %v2772
    %2934 = vmatprep.subr.mxu0 %v2777
    %2935 = vmatpush1.msra.mxu0 %v2776
    %2936 = vmatprep.subr.mxu0 %v2781
    %2937 = vmatpush1.msra.mxu0 %v2780
    %2938 = vmatprep.subr.mxu0 %v2785
    %2939 = vmatpush1.msra.mxu0 %v2784
    %2940 = vmatprep.subr.mxu0 %v2789
    %2941 = vmatpush1.msra.mxu0 %v2788
    %2942 = vmatprep.subr.mxu0 %v2793
    %2943 = vmatpush1.msra.mxu0 %v2792
    %2944 = vmatprep.subr.mxu0 %v2797
    %2945 = vmatpush1.msra.mxu0 %v2796
    %2946 = vmatprep.subr.mxu0 %v2801
    %2947 = vmatpush1.msra.mxu0 %v2800
    %2948 = vmatprep.subr.mxu0 %v2805
    %2949 = vmatpush1.msra.mxu0 %v2804
    %2950 = vmatprep.subr.mxu0 %v2809
    %2951 = vmatpush1.msra.mxu0 %v2808
    %2952 = vmatprep.subr.mxu0 0.0
    %2953 = vmatpush1.msra.mxu0 0.0
    %2954 = vmatprep.subr.mxu0 0.0
    %2955 = vmatpush1.msra.mxu0 0.0
    %2956 = vmatprep.subr.mxu0 0.0
    %2957 = vmatpush1.msra.mxu0 0.0
    %2958 = vmatprep.subr.mxu0 0.0
    %2959 = vmatpush1.msra.mxu0 0.0
    %2960 = vmatprep.subr.mxu0 0.0
    %2961 = vmatpush1.msra.mxu0 0.0
    %2962 = vmatprep.subr.mxu0 0.0
    %2963 = vmatpush1.msra.mxu0 0.0
    %2964 = vmatprep.subr.mxu0 0.0
    %2965 = vmatpush1.msra.mxu0 0.0
    %2966 = vmatprep.mubr.f32.mxu0 %v2829
    %2967 = vmatmul.mubr.f32.gmra.mrb[0].mxu0 %v2826
    %v2968 = vpop.f32.mrb[0].mxu0
    %v2969 = vadd.f32 0.0, %v2968
    %v2970 = vpop.f32.mrb[0].mxu0
    %v2971 = vadd.f32 0.0, %v2970
    %2972 = vdwg.mxu0
    %v2973 = vadd.f32 %v2634, %v2898
    %v2974 = vadd.f32 %v2636, %v2900
    %v2975 = vadd.f32 %v2705, %v2969
    %v2976 = vadd.f32 %v2707, %v2971
    %s2977 = scalar_lea.vmem [#allocation8], 2400
    %v2978 = vld [vmem:[%s2977] sm:$0xff]
    %v2979 = vld [vmem:[%s2977 + $0x8] sm:$0xff]
    %v2980 = vld [vmem:[%s2977 + $0x10] sm:$0xff]
    %v2981 = vld [vmem:[%s2977 + $0x18] sm:$0xff]
    %v2982 = vld [vmem:[%s2977 + $0x20] sm:$0xff]
    %v2983 = vld [vmem:[%s2977 + $0x28] sm:$0xff]
    %v2984 = vld [vmem:[%s2977 + $0x30] sm:$0xff]
    %v2985 = vld [vmem:[%s2977 + $0x38] sm:$0xff]
    %v2986 = vld [vmem:[%s2977 + $0x40] sm:$0xff]
    %v2987 = vld [vmem:[%s2977 + $0x48] sm:$0xff]
    %v2988 = vld [vmem:[%s2977 + $0x50] sm:$0xff]
    %v2989 = vld [vmem:[%s2977 + $0x58] sm:$0xff]
    %v2990 = vld [vmem:[%s2977 + $0x60] sm:$0xff]
    %v2991 = vld [vmem:[%s2977 + $0x68] sm:$0xff]
    %v2992 = vld [vmem:[%s2977 + $0x70] sm:$0xff]
    %v2993 = vld [vmem:[%s2977 + $0x78] sm:$0xff]
    %v2994 = vld [vmem:[%s2977 + $0x80] sm:$0xff]
    %v2995 = vld [vmem:[%s2977 + $0x88] sm:$0xff]
    %v2996 = vld [vmem:[%s2977 + $0x90] sm:$0xff]
    %v2997 = vld [vmem:[%s2977 + $0x98] sm:$0xff]
    %v2998 = vld [vmem:[%s2977 + $0xa0] sm:$0xff]
    %v2999 = vld [vmem:[%s2977 + $0xa8] sm:$0xff]
    %v3000 = vld [vmem:[%s2977 + $0xb0] sm:$0xff]
    %v3001 = vld [vmem:[%s2977 + $0xb8] sm:$0xff]
    %v3002 = vld [vmem:[%s2977 + $0xc0] sm:$0xff]
    %v3003 = vld [vmem:[%s2977 + $0xc8] sm:$0xff]
    %v3004 = vld [vmem:[%s2977 + $0xd0] sm:$0xff]
    %v3005 = vld [vmem:[%s2977 + $0xd8] sm:$0xff]
    %v3006 = vld [vmem:[%s2977 + $0xe0] sm:$0xff]
    %v3007 = vld [vmem:[%s2977 + $0xe8] sm:$0xff]
    %v3008 = vld [vmem:[%s2977 + $0xf0] sm:$0xff]
    %v3009 = vld [vmem:[%s2977 + $0xf8] sm:$0xff]
    %v3010 = vld [vmem:[%s2977 + $0x100] sm:$0xff]
    %v3011 = vld [vmem:[%s2977 + $0x108] sm:$0xff]
    %v3012 = vld [vmem:[%s2977 + $0x110] sm:$0xff]
    %v3013 = vld [vmem:[%s2977 + $0x118] sm:$0xff]
    %v3014 = vld [vmem:[%s2977 + $0x120] sm:$0xff]
    %v3015 = vld [vmem:[%s2977 + $0x128] sm:$0xff]
    %v3016 = vld [vmem:[%s2977 + $0x130] sm:$0xff]
    %v3017 = vld [vmem:[%s2977 + $0x138] sm:$0xff]
    %v3018 = vld [vmem:[%s2977 + $0x140] sm:$0xff]
    %v3019 = vld [vmem:[%s2977 + $0x148] sm:$0xff]
    %v3020 = vld [vmem:[%s2977 + $0x150] sm:$0xff]
    %v3021 = vld [vmem:[%s2977 + $0x158] sm:$0xff]
    %v3022 = vld [vmem:[%s2977 + $0x160] sm:$0xff]
    %v3023 = vld [vmem:[%s2977 + $0x168] sm:$0xff]
    %v3024 = vld [vmem:[%s2977 + $0x170] sm:$0xff]
    %v3025 = vld [vmem:[%s2977 + $0x178] sm:$0xff]
    %v3026 = vld [vmem:[%s2977 + $0x180] sm:$0xff]
    %v3027 = vld [vmem:[%s2977 + $0x188] sm:$0xff]
    %v3028 = vld [vmem:[%s2977 + $0x190] sm:$0xff]
    %v3029 = vld [vmem:[%s2977 + $0x198] sm:$0xff]
    %v3030 = vld [vmem:[%s2977 + $0x1a0] sm:$0xff]
    %v3031 = vld [vmem:[%s2977 + $0x1a8] sm:$0xff]
    %v3032 = vld [vmem:[%s2977 + $0x1b0] sm:$0xff]
    %v3033 = vld [vmem:[%s2977 + $0x1b8] sm:$0xff]
    %v3034 = vld [vmem:[%s2977 + $0x1c0] sm:$0xff]
    %v3035 = vld [vmem:[%s2977 + $0x1c8] sm:$0xff]
    %v3036 = vld [vmem:[%s2977 + $0x1d0] sm:$0xff]
    %v3037 = vld [vmem:[%s2977 + $0x1d8] sm:$0xff]
    %v3038 = vld [vmem:[%s2977 + $0x1e0] sm:$0xff]
    %v3039 = vld [vmem:[%s2977 + $0x1e8] sm:$0xff]
    %v3040 = vld [vmem:[%s2977 + $0x1f0] sm:$0xff]
    %v3041 = vld [vmem:[%s2977 + $0x1f8] sm:$0xff]
    %v3042 = vld [vmem:[%s2977 + $0x200] sm:$0xff]
    %v3043 = vld [vmem:[%s2977 + $0x208] sm:$0xff]
    %v3044 = vld [vmem:[%s2977 + $0x210] sm:$0xff]
    %v3045 = vld [vmem:[%s2977 + $0x218] sm:$0xff]
    %v3046 = vld [vmem:[%s2977 + $0x220] sm:$0xff]
    %v3047 = vld [vmem:[%s2977 + $0x228] sm:$0xff]
    %v3048 = vld [vmem:[%s2977 + $0x230] sm:$0xff]
    %v3049 = vld [vmem:[%s2977 + $0x238] sm:$0xff]
    %v3050 = vld [vmem:[%s2977 + $0x240] sm:$0xff]
    %v3051 = vld [vmem:[%s2977 + $0x248] sm:$0xff]
    %v3052 = vld [vmem:[%s2977 + $0x250] sm:$0xff]
    %v3053 = vld [vmem:[%s2977 + $0x258] sm:$0xff]
    %v3054 = vld [vmem:[%s2977 + $0x260] sm:$0xff]
    %v3055 = vld [vmem:[%s2977 + $0x268] sm:$0xff]
    %v3056 = vld [vmem:[%s2977 + $0x270] sm:$0xff]
    %v3057 = vld [vmem:[%s2977 + $0x278] sm:$0xff]
    %v3058 = vld [vmem:[%s2977 + $0x280] sm:$0xff]
    %v3059 = vld [vmem:[%s2977 + $0x288] sm:$0xff]
    %v3060 = vld [vmem:[%s2977 + $0x290] sm:$0xff]
    %v3061 = vld [vmem:[%s2977 + $0x298] sm:$0xff]
    %v3062 = vld [vmem:[%s2977 + $0x2a0] sm:$0xff]
    %v3063 = vld [vmem:[%s2977 + $0x2a8] sm:$0xff]
    %v3064 = vld [vmem:[%s2977 + $0x2b0] sm:$0xff]
    %v3065 = vld [vmem:[%s2977 + $0x2b8] sm:$0xff]
    %v3066 = vld [vmem:[%s2977 + $0x2c0] sm:$0xff]
    %v3067 = vld [vmem:[%s2977 + $0x2c8] sm:$0xff]
    %v3068 = vld [vmem:[%s2977 + $0x2d0] sm:$0xff]
    %v3069 = vld [vmem:[%s2977 + $0x2d8] sm:$0xff]
    %v3070 = vld [vmem:[%s2977 + $0x2e0] sm:$0xff]
    %v3071 = vld [vmem:[%s2977 + $0x2e8] sm:$0xff]
    %v3072 = vld [vmem:[%s2977 + $0x2f0] sm:$0xff]
    %v3073 = vld [vmem:[%s2977 + $0x2f8] sm:$0xff]
    %v3074 = vld [vmem:[%s2977 + $0x300] sm:$0xff]
    %v3075 = vld [vmem:[%s2977 + $0x308] sm:$0xff]
    %v3076 = vld [vmem:[%s2977 + $0x310] sm:$0xff]
    %v3077 = vld [vmem:[%s2977 + $0x318] sm:$0xff]
    %v3078 = vlaneseq
    %v3079 = vshrl.u32 %v3078, 7
    %v3080 = vsub.s32 1, %v3079
    %v3081 = vrot.slane %v2152, %v3080
    %v3082 = vlaneseq
    %v3083 = vshrl.u32 %v3082, 7
    %v3084 = vsub.s32 3, %v3083
    %v3085 = vrot.slane %v2152, %v3084
    %v3086 = vlaneseq
    %v3087 = vshrl.u32 %v3086, 7
    %v3088 = vsub.s32 1, %v3087
    %v3089 = vrot.slane %v2169, %v3088
    %v3090 = vlaneseq
    %v3091 = vshrl.u32 %v3090, 7
    %v3092 = vsub.s32 3, %v3091
    %v3093 = vrot.slane %v2169, %v3092
    %v3094 = vsel %vm1601, %v3089, %v3081
    %v3095 = vsel %vm1601, %v3093, %v3085
    %v3097 = vsel %vm2401, %v3095, 0
    %3099 = vmatprep.subr.mxu0 %v2979
    %3100 = vmatpush1.msra.mxu0 %v2978
    %3101 = vmatprep.subr.mxu0 %v2983
    %3102 = vmatpush1.msra.mxu0 %v2982
    %3103 = vmatprep.subr.mxu0 %v2987
    %3104 = vmatpush1.msra.mxu0 %v2986
    %3105 = vmatprep.subr.mxu0 %v2991
    %3106 = vmatpush1.msra.mxu0 %v2990
    %3107 = vmatprep.subr.mxu0 %v2995
    %3108 = vmatpush1.msra.mxu0 %v2994
    %3109 = vmatprep.subr.mxu0 %v2999
    %3110 = vmatpush1.msra.mxu0 %v2998
    %3111 = vmatprep.subr.mxu0 %v3003
    %3112 = vmatpush1.msra.mxu0 %v3002
    %3113 = vmatprep.subr.mxu0 %v3007
    %3114 = vmatpush1.msra.mxu0 %v3006
    %3115 = vmatprep.subr.mxu0 %v3011
    %3116 = vmatpush1.msra.mxu0 %v3010
    %3117 = vmatprep.subr.mxu0 %v3015
    %3118 = vmatpush1.msra.mxu0 %v3014
    %3119 = vmatprep.subr.mxu0 %v3019
    %3120 = vmatpush1.msra.mxu0 %v3018
    %3121 = vmatprep.subr.mxu0 %v3023
    %3122 = vmatpush1.msra.mxu0 %v3022
    %3123 = vmatprep.subr.mxu0 %v3027
    %3124 = vmatpush1.msra.mxu0 %v3026
    %3125 = vmatprep.subr.mxu0 %v3031
    %3126 = vmatpush1.msra.mxu0 %v3030
    %3127 = vmatprep.subr.mxu0 %v3035
    %3128 = vmatpush1.msra.mxu0 %v3034
    %3129 = vmatprep.subr.mxu0 %v3039
    %3130 = vmatpush1.msra.mxu0 %v3038
    %3131 = vmatprep.subr.mxu0 %v3043
    %3132 = vmatpush1.msra.mxu0 %v3042
    %3133 = vmatprep.subr.mxu0 %v3047
    %3134 = vmatpush1.msra.mxu0 %v3046
    %3135 = vmatprep.subr.mxu0 %v3051
    %3136 = vmatpush1.msra.mxu0 %v3050
    %3137 = vmatprep.subr.mxu0 %v3055
    %3138 = vmatpush1.msra.mxu0 %v3054
    %3139 = vmatprep.subr.mxu0 %v3059
    %3140 = vmatpush1.msra.mxu0 %v3058
    %3141 = vmatprep.subr.mxu0 %v3063
    %3142 = vmatpush1.msra.mxu0 %v3062
    %3143 = vmatprep.subr.mxu0 %v3067
    %3144 = vmatpush1.msra.mxu0 %v3066
    %3145 = vmatprep.subr.mxu0 %v3071
    %3146 = vmatpush1.msra.mxu0 %v3070
    %3147 = vmatprep.subr.mxu0 %v3075
    %3148 = vmatpush1.msra.mxu0 %v3074
    %3149 = vmatprep.subr.mxu0 0.0
    %3150 = vmatpush1.msra.mxu0 0.0
    %3151 = vmatprep.subr.mxu0 0.0
    %3152 = vmatpush1.msra.mxu0 0.0
    %3153 = vmatprep.subr.mxu0 0.0
    %3154 = vmatpush1.msra.mxu0 0.0
    %3155 = vmatprep.subr.mxu0 0.0
    %3156 = vmatpush1.msra.mxu0 0.0
    %3157 = vmatprep.subr.mxu0 0.0
    %3158 = vmatpush1.msra.mxu0 0.0
    %3159 = vmatprep.subr.mxu0 0.0
    %3160 = vmatpush1.msra.mxu0 0.0
    %3161 = vmatprep.subr.mxu0 0.0
    %3162 = vmatpush1.msra.mxu0 0.0
    %3163 = vmatprep.mubr.f32.mxu0 %v3097
    %3164 = vmatmul.mubr.f32.gmra.mrb[0].mxu0 %v3094
    %v3165 = vpop.f32.mrb[0].mxu0
    %v3166 = vadd.f32 0.0, %v3165
    %v3167 = vpop.f32.mrb[0].mxu0
    %v3168 = vadd.f32 0.0, %v3167
    %3169 = vdwg.mxu0
    %3170 = vmatprep.subr.mxu0 %v2981
    %3171 = vmatpush1.msra.mxu0 %v2980
    %3172 = vmatprep.subr.mxu0 %v2985
    %3173 = vmatpush1.msra.mxu0 %v2984
    %3174 = vmatprep.subr.mxu0 %v2989
    %3175 = vmatpush1.msra.mxu0 %v2988
    %3176 = vmatprep.subr.mxu0 %v2993
    %3177 = vmatpush1.msra.mxu0 %v2992
    %3178 = vmatprep.subr.mxu0 %v2997
    %3179 = vmatpush1.msra.mxu0 %v2996
    %3180 = vmatprep.subr.mxu0 %v3001
    %3181 = vmatpush1.msra.mxu0 %v3000
    %3182 = vmatprep.subr.mxu0 %v3005
    %3183 = vmatpush1.msra.mxu0 %v3004
    %3184 = vmatprep.subr.mxu0 %v3009
    %3185 = vmatpush1.msra.mxu0 %v3008
    %3186 = vmatprep.subr.mxu0 %v3013
    %3187 = vmatpush1.msra.mxu0 %v3012
    %3188 = vmatprep.subr.mxu0 %v3017
    %3189 = vmatpush1.msra.mxu0 %v3016
    %3190 = vmatprep.subr.mxu0 %v3021
    %3191 = vmatpush1.msra.mxu0 %v3020
    %3192 = vmatprep.subr.mxu0 %v3025
    %3193 = vmatpush1.msra.mxu0 %v3024
    %3194 = vmatprep.subr.mxu0 %v3029
    %3195 = vmatpush1.msra.mxu0 %v3028
    %3196 = vmatprep.subr.mxu0 %v3033
    %3197 = vmatpush1.msra.mxu0 %v3032
    %3198 = vmatprep.subr.mxu0 %v3037
    %3199 = vmatpush1.msra.mxu0 %v3036
    %3200 = vmatprep.subr.mxu0 %v3041
    %3201 = vmatpush1.msra.mxu0 %v3040
    %3202 = vmatprep.subr.mxu0 %v3045
    %3203 = vmatpush1.msra.mxu0 %v3044
    %3204 = vmatprep.subr.mxu0 %v3049
    %3205 = vmatpush1.msra.mxu0 %v3048
    %3206 = vmatprep.subr.mxu0 %v3053
    %3207 = vmatpush1.msra.mxu0 %v3052
    %3208 = vmatprep.subr.mxu0 %v3057
    %3209 = vmatpush1.msra.mxu0 %v3056
    %3210 = vmatprep.subr.mxu0 %v3061
    %3211 = vmatpush1.msra.mxu0 %v3060
    %3212 = vmatprep.subr.mxu0 %v3065
    %3213 = vmatpush1.msra.mxu0 %v3064
    %3214 = vmatprep.subr.mxu0 %v3069
    %3215 = vmatpush1.msra.mxu0 %v3068
    %3216 = vmatprep.subr.mxu0 %v3073
    %3217 = vmatpush1.msra.mxu0 %v3072
    %3218 = vmatprep.subr.mxu0 %v3077
    %3219 = vmatpush1.msra.mxu0 %v3076
    %3220 = vmatprep.subr.mxu0 0.0
    %3221 = vmatpush1.msra.mxu0 0.0
    %3222 = vmatprep.subr.mxu0 0.0
    %3223 = vmatpush1.msra.mxu0 0.0
    %3224 = vmatprep.subr.mxu0 0.0
    %3225 = vmatpush1.msra.mxu0 0.0
    %3226 = vmatprep.subr.mxu0 0.0
    %3227 = vmatpush1.msra.mxu0 0.0
    %3228 = vmatprep.subr.mxu0 0.0
    %3229 = vmatpush1.msra.mxu0 0.0
    %3230 = vmatprep.subr.mxu0 0.0
    %3231 = vmatpush1.msra.mxu0 0.0
    %3232 = vmatprep.subr.mxu0 0.0
    %3233 = vmatpush1.msra.mxu0 0.0
    %3234 = vmatprep.mubr.f32.mxu0 %v3097
    %3235 = vmatmul.mubr.f32.gmra.mrb[0].mxu0 %v3094
    %v3236 = vpop.f32.mrb[0].mxu0
    %v3237 = vadd.f32 0.0, %v3236
    %v3238 = vpop.f32.mrb[0].mxu0
    %v3239 = vadd.f32 0.0, %v3238
    %3240 = vdwg.mxu0
    %v3241 = vadd.f32 %v2973, %v3166
    %v3242 = vadd.f32 %v2974, %v3168
    %v3243 = vadd.f32 %v2975, %v3237
    %v3244 = vadd.f32 %v2976, %v3239
    %s3245 = scalar_lea.vmem [#allocation8], 3200
    %v3246 = vld [vmem:[%s3245] sm:$0xff]
    %v3247 = vld [vmem:[%s3245 + $0x8] sm:$0xff]
    %v3248 = vld [vmem:[%s3245 + $0x10] sm:$0xff]
    %v3249 = vld [vmem:[%s3245 + $0x18] sm:$0xff]
    %v3250 = vld [vmem:[%s3245 + $0x20] sm:$0xff]
    %v3251 = vld [vmem:[%s3245 + $0x28] sm:$0xff]
    %v3252 = vld [vmem:[%s3245 + $0x30] sm:$0xff]
    %v3253 = vld [vmem:[%s3245 + $0x38] sm:$0xff]
    %v3254 = vld [vmem:[%s3245 + $0x40] sm:$0xff]
    %v3255 = vld [vmem:[%s3245 + $0x48] sm:$0xff]
    %v3256 = vld [vmem:[%s3245 + $0x50] sm:$0xff]
    %v3257 = vld [vmem:[%s3245 + $0x58] sm:$0xff]
    %v3258 = vld [vmem:[%s3245 + $0x60] sm:$0xff]
    %v3259 = vld [vmem:[%s3245 + $0x68] sm:$0xff]
    %v3260 = vld [vmem:[%s3245 + $0x70] sm:$0xff]
    %v3261 = vld [vmem:[%s3245 + $0x78] sm:$0xff]
    %v3262 = vld [vmem:[%s3245 + $0x80] sm:$0xff]
    %v3263 = vld [vmem:[%s3245 + $0x88] sm:$0xff]
    %v3264 = vld [vmem:[%s3245 + $0x90] sm:$0xff]
    %v3265 = vld [vmem:[%s3245 + $0x98] sm:$0xff]
    %v3266 = vld [vmem:[%s3245 + $0xa0] sm:$0xff]
    %v3267 = vld [vmem:[%s3245 + $0xa8] sm:$0xff]
    %v3268 = vld [vmem:[%s3245 + $0xb0] sm:$0xff]
    %v3269 = vld [vmem:[%s3245 + $0xb8] sm:$0xff]
    %v3270 = vld [vmem:[%s3245 + $0xc0] sm:$0xff]
    %v3271 = vld [vmem:[%s3245 + $0xc8] sm:$0xff]
    %v3272 = vld [vmem:[%s3245 + $0xd0] sm:$0xff]
    %v3273 = vld [vmem:[%s3245 + $0xd8] sm:$0xff]
    %v3274 = vld [vmem:[%s3245 + $0xe0] sm:$0xff]
    %v3275 = vld [vmem:[%s3245 + $0xe8] sm:$0xff]
    %v3276 = vld [vmem:[%s3245 + $0xf0] sm:$0xff]
    %v3277 = vld [vmem:[%s3245 + $0xf8] sm:$0xff]
    %v3278 = vld [vmem:[%s3245 + $0x100] sm:$0xff]
    %v3279 = vld [vmem:[%s3245 + $0x108] sm:$0xff]
    %v3280 = vld [vmem:[%s3245 + $0x110] sm:$0xff]
    %v3281 = vld [vmem:[%s3245 + $0x118] sm:$0xff]
    %v3282 = vld [vmem:[%s3245 + $0x120] sm:$0xff]
    %v3283 = vld [vmem:[%s3245 + $0x128] sm:$0xff]
    %v3284 = vld [vmem:[%s3245 + $0x130] sm:$0xff]
    %v3285 = vld [vmem:[%s3245 + $0x138] sm:$0xff]
    %v3286 = vld [vmem:[%s3245 + $0x140] sm:$0xff]
    %v3287 = vld [vmem:[%s3245 + $0x148] sm:$0xff]
    %v3288 = vld [vmem:[%s3245 + $0x150] sm:$0xff]
    %v3289 = vld [vmem:[%s3245 + $0x158] sm:$0xff]
    %v3290 = vld [vmem:[%s3245 + $0x160] sm:$0xff]
    %v3291 = vld [vmem:[%s3245 + $0x168] sm:$0xff]
    %v3292 = vld [vmem:[%s3245 + $0x170] sm:$0xff]
    %v3293 = vld [vmem:[%s3245 + $0x178] sm:$0xff]
    %v3294 = vld [vmem:[%s3245 + $0x180] sm:$0xff]
    %v3295 = vld [vmem:[%s3245 + $0x188] sm:$0xff]
    %v3296 = vld [vmem:[%s3245 + $0x190] sm:$0xff]
    %v3297 = vld [vmem:[%s3245 + $0x198] sm:$0xff]
    %v3298 = vld [vmem:[%s3245 + $0x1a0] sm:$0xff]
    %v3299 = vld [vmem:[%s3245 + $0x1a8] sm:$0xff]
    %v3300 = vld [vmem:[%s3245 + $0x1b0] sm:$0xff]
    %v3301 = vld [vmem:[%s3245 + $0x1b8] sm:$0xff]
    %v3302 = vld [vmem:[%s3245 + $0x1c0] sm:$0xff]
    %v3303 = vld [vmem:[%s3245 + $0x1c8] sm:$0xff]
    %v3304 = vld [vmem:[%s3245 + $0x1d0] sm:$0xff]
    %v3305 = vld [vmem:[%s3245 + $0x1d8] sm:$0xff]
    %v3306 = vld [vmem:[%s3245 + $0x1e0] sm:$0xff]
    %v3307 = vld [vmem:[%s3245 + $0x1e8] sm:$0xff]
    %v3308 = vld [vmem:[%s3245 + $0x1f0] sm:$0xff]
    %v3309 = vld [vmem:[%s3245 + $0x1f8] sm:$0xff]
    %v3310 = vld [vmem:[%s3245 + $0x200] sm:$0xff]
    %v3311 = vld [vmem:[%s3245 + $0x208] sm:$0xff]
    %v3312 = vld [vmem:[%s3245 + $0x210] sm:$0xff]
    %v3313 = vld [vmem:[%s3245 + $0x218] sm:$0xff]
    %v3314 = vld [vmem:[%s3245 + $0x220] sm:$0xff]
    %v3315 = vld [vmem:[%s3245 + $0x228] sm:$0xff]
    %v3316 = vld [vmem:[%s3245 + $0x230] sm:$0xff]
    %v3317 = vld [vmem:[%s3245 + $0x238] sm:$0xff]
    %v3318 = vld [vmem:[%s3245 + $0x240] sm:$0xff]
    %v3319 = vld [vmem:[%s3245 + $0x248] sm:$0xff]
    %v3320 = vld [vmem:[%s3245 + $0x250] sm:$0xff]
    %v3321 = vld [vmem:[%s3245 + $0x258] sm:$0xff]
    %v3322 = vld [vmem:[%s3245 + $0x260] sm:$0xff]
    %v3323 = vld [vmem:[%s3245 + $0x268] sm:$0xff]
    %v3324 = vld [vmem:[%s3245 + $0x270] sm:$0xff]
    %v3325 = vld [vmem:[%s3245 + $0x278] sm:$0xff]
    %v3326 = vld [vmem:[%s3245 + $0x280] sm:$0xff]
    %v3327 = vld [vmem:[%s3245 + $0x288] sm:$0xff]
    %v3328 = vld [vmem:[%s3245 + $0x290] sm:$0xff]
    %v3329 = vld [vmem:[%s3245 + $0x298] sm:$0xff]
    %v3330 = vld [vmem:[%s3245 + $0x2a0] sm:$0xff]
    %v3331 = vld [vmem:[%s3245 + $0x2a8] sm:$0xff]
    %v3332 = vld [vmem:[%s3245 + $0x2b0] sm:$0xff]
    %v3333 = vld [vmem:[%s3245 + $0x2b8] sm:$0xff]
    %v3334 = vld [vmem:[%s3245 + $0x2c0] sm:$0xff]
    %v3335 = vld [vmem:[%s3245 + $0x2c8] sm:$0xff]
    %v3336 = vld [vmem:[%s3245 + $0x2d0] sm:$0xff]
    %v3337 = vld [vmem:[%s3245 + $0x2d8] sm:$0xff]
    %v3338 = vld [vmem:[%s3245 + $0x2e0] sm:$0xff]
    %v3339 = vld [vmem:[%s3245 + $0x2e8] sm:$0xff]
    %v3340 = vld [vmem:[%s3245 + $0x2f0] sm:$0xff]
    %v3341 = vld [vmem:[%s3245 + $0x2f8] sm:$0xff]
    %v3342 = vld [vmem:[%s3245 + $0x300] sm:$0xff]
    %v3343 = vld [vmem:[%s3245 + $0x308] sm:$0xff]
    %v3344 = vld [vmem:[%s3245 + $0x310] sm:$0xff]
    %v3345 = vld [vmem:[%s3245 + $0x318] sm:$0xff]
    %v3346 = vlaneseq
    %v3347 = vshrl.u32 %v3346, 7
    %v3348 = vsub.s32 0, %v3347
    %v3349 = vrot.slane %v2151, %v3348
    %v3350 = vlaneseq
    %v3351 = vshrl.u32 %v3350, 7
    %v3352 = vsub.s32 2, %v3351
    %v3353 = vrot.slane %v2151, %v3352
    %v3354 = vlaneseq
    %v3355 = vshrl.u32 %v3354, 7
    %v3356 = vsub.s32 0, %v3355
    %v3357 = vrot.slane %v2171, %v3356
    %v3358 = vlaneseq
    %v3359 = vshrl.u32 %v3358, 7
    %v3360 = vsub.s32 2, %v3359
    %v3361 = vrot.slane %v2171, %v3360
    %v3362 = vsel %vm1601, %v3357, %v3349
    %v3363 = vsel %vm1601, %v3361, %v3353
    %v3365 = vsel %vm2401, %v3363, 0
    %3367 = vmatprep.subr.mxu0 %v3247
    %3368 = vmatpush1.msra.mxu0 %v3246
    %3369 = vmatprep.subr.mxu0 %v3251
    %3370 = vmatpush1.msra.mxu0 %v3250
    %3371 = vmatprep.subr.mxu0 %v3255
    %3372 = vmatpush1.msra.mxu0 %v3254
    %3373 = vmatprep.subr.mxu0 %v3259
    %3374 = vmatpush1.msra.mxu0 %v3258
    %3375 = vmatprep.subr.mxu0 %v3263
    %3376 = vmatpush1.msra.mxu0 %v3262
    %3377 = vmatprep.subr.mxu0 %v3267
    %3378 = vmatpush1.msra.mxu0 %v3266
    %3379 = vmatprep.subr.mxu0 %v3271
    %3380 = vmatpush1.msra.mxu0 %v3270
    %3381 = vmatprep.subr.mxu0 %v3275
    %3382 = vmatpush1.msra.mxu0 %v3274
    %3383 = vmatprep.subr.mxu0 %v3279
    %3384 = vmatpush1.msra.mxu0 %v3278
    %3385 = vmatprep.subr.mxu0 %v3283
    %3386 = vmatpush1.msra.mxu0 %v3282
    %3387 = vmatprep.subr.mxu0 %v3287
    %3388 = vmatpush1.msra.mxu0 %v3286
    %3389 = vmatprep.subr.mxu0 %v3291
    %3390 = vmatpush1.msra.mxu0 %v3290
    %3391 = vmatprep.subr.mxu0 %v3295
    %3392 = vmatpush1.msra.mxu0 %v3294
    %3393 = vmatprep.subr.mxu0 %v3299
    %3394 = vmatpush1.msra.mxu0 %v3298
    %3395 = vmatprep.subr.mxu0 %v3303
    %3396 = vmatpush1.msra.mxu0 %v3302
    %3397 = vmatprep.subr.mxu0 %v3307
    %3398 = vmatpush1.msra.mxu0 %v3306
    %3399 = vmatprep.subr.mxu0 %v3311
    %3400 = vmatpush1.msra.mxu0 %v3310
    %3401 = vmatprep.subr.mxu0 %v3315
    %3402 = vmatpush1.msra.mxu0 %v3314
    %3403 = vmatprep.subr.mxu0 %v3319
    %3404 = vmatpush1.msra.mxu0 %v3318
    %3405 = vmatprep.subr.mxu0 %v3323
    %3406 = vmatpush1.msra.mxu0 %v3322
    %3407 = vmatprep.subr.mxu0 %v3327
    %3408 = vmatpush1.msra.mxu0 %v3326
    %3409 = vmatprep.subr.mxu0 %v3331
    %3410 = vmatpush1.msra.mxu0 %v3330
    %3411 = vmatprep.subr.mxu0 %v3335
    %3412 = vmatpush1.msra.mxu0 %v3334
    %3413 = vmatprep.subr.mxu0 %v3339
    %3414 = vmatpush1.msra.mxu0 %v3338
    %3415 = vmatprep.subr.mxu0 %v3343
    %3416 = vmatpush1.msra.mxu0 %v3342
    %3417 = vmatprep.subr.mxu0 0.0
    %3418 = vmatpush1.msra.mxu0 0.0
    %3419 = vmatprep.subr.mxu0 0.0
    %3420 = vmatpush1.msra.mxu0 0.0
    %3421 = vmatprep.subr.mxu0 0.0
    %3422 = vmatpush1.msra.mxu0 0.0
    %3423 = vmatprep.subr.mxu0 0.0
    %3424 = vmatpush1.msra.mxu0 0.0
    %3425 = vmatprep.subr.mxu0 0.0
    %3426 = vmatpush1.msra.mxu0 0.0
    %3427 = vmatprep.subr.mxu0 0.0
    %3428 = vmatpush1.msra.mxu0 0.0
    %3429 = vmatprep.subr.mxu0 0.0
    %3430 = vmatpush1.msra.mxu0 0.0
    %3431 = vmatprep.mubr.f32.mxu0 %v3365
    %3432 = vmatmul.mubr.f32.gmra.mrb[0].mxu0 %v3362
    %v3433 = vpop.f32.mrb[0].mxu0
    %v3434 = vadd.f32 0.0, %v3433
    %v3435 = vpop.f32.mrb[0].mxu0
    %v3436 = vadd.f32 0.0, %v3435
    %3437 = vdwg.mxu0
    %3438 = vmatprep.subr.mxu0 %v3249
    %3439 = vmatpush1.msra.mxu0 %v3248
    %3440 = vmatprep.subr.mxu0 %v3253
    %3441 = vmatpush1.msra.mxu0 %v3252
    %3442 = vmatprep.subr.mxu0 %v3257
    %3443 = vmatpush1.msra.mxu0 %v3256
    %3444 = vmatprep.subr.mxu0 %v3261
    %3445 = vmatpush1.msra.mxu0 %v3260
    %3446 = vmatprep.subr.mxu0 %v3265
    %3447 = vmatpush1.msra.mxu0 %v3264
    %3448 = vmatprep.subr.mxu0 %v3269
    %3449 = vmatpush1.msra.mxu0 %v3268
    %3450 = vmatprep.subr.mxu0 %v3273
    %3451 = vmatpush1.msra.mxu0 %v3272
    %3452 = vmatprep.subr.mxu0 %v3277
    %3453 = vmatpush1.msra.mxu0 %v3276
    %3454 = vmatprep.subr.mxu0 %v3281
    %3455 = vmatpush1.msra.mxu0 %v3280
    %3456 = vmatprep.subr.mxu0 %v3285
    %3457 = vmatpush1.msra.mxu0 %v3284
    %3458 = vmatprep.subr.mxu0 %v3289
    %3459 = vmatpush1.msra.mxu0 %v3288
    %3460 = vmatprep.subr.mxu0 %v3293
    %3461 = vmatpush1.msra.mxu0 %v3292
    %3462 = vmatprep.subr.mxu0 %v3297
    %3463 = vmatpush1.msra.mxu0 %v3296
    %3464 = vmatprep.subr.mxu0 %v3301
    %3465 = vmatpush1.msra.mxu0 %v3300
    %3466 = vmatprep.subr.mxu0 %v3305
    %3467 = vmatpush1.msra.mxu0 %v3304
    %3468 = vmatprep.subr.mxu0 %v3309
    %3469 = vmatpush1.msra.mxu0 %v3308
    %3470 = vmatprep.subr.mxu0 %v3313
    %3471 = vmatpush1.msra.mxu0 %v3312
    %3472 = vmatprep.subr.mxu0 %v3317
    %3473 = vmatpush1.msra.mxu0 %v3316
    %3474 = vmatprep.subr.mxu0 %v3321
    %3475 = vmatpush1.msra.mxu0 %v3320
    %3476 = vmatprep.subr.mxu0 %v3325
    %3477 = vmatpush1.msra.mxu0 %v3324
    %3478 = vmatprep.subr.mxu0 %v3329
    %3479 = vmatpush1.msra.mxu0 %v3328
    %3480 = vmatprep.subr.mxu0 %v3333
    %3481 = vmatpush1.msra.mxu0 %v3332
    %3482 = vmatprep.subr.mxu0 %v3337
    %3483 = vmatpush1.msra.mxu0 %v3336
    %3484 = vmatprep.subr.mxu0 %v3341
    %3485 = vmatpush1.msra.mxu0 %v3340
    %3486 = vmatprep.subr.mxu0 %v3345
    %3487 = vmatpush1.msra.mxu0 %v3344
    %3488 = vmatprep.subr.mxu0 0.0
    %3489 = vmatpush1.msra.mxu0 0.0
    %3490 = vmatprep.subr.mxu0 0.0
    %3491 = vmatpush1.msra.mxu0 0.0
    %3492 = vmatprep.subr.mxu0 0.0
    %3493 = vmatpush1.msra.mxu0 0.0
    %3494 = vmatprep.subr.mxu0 0.0
    %3495 = vmatpush1.msra.mxu0 0.0
    %3496 = vmatprep.subr.mxu0 0.0
    %3497 = vmatpush1.msra.mxu0 0.0
    %3498 = vmatprep.subr.mxu0 0.0
    %3499 = vmatpush1.msra.mxu0 0.0
    %3500 = vmatprep.subr.mxu0 0.0
    %3501 = vmatpush1.msra.mxu0 0.0
    %3502 = vmatprep.mubr.f32.mxu0 %v3365
    %3503 = vmatmul.mubr.f32.gmra.mrb[0].mxu0 %v3362
    %v3504 = vpop.f32.mrb[0].mxu0
    %v3505 = vadd.f32 0.0, %v3504
    %v3506 = vpop.f32.mrb[0].mxu0
    %v3507 = vadd.f32 0.0, %v3506
    %3508 = vdwg.mxu0
    %v3509 = vadd.f32 %v3241, %v3434
    %v3510 = vadd.f32 %v3242, %v3436
    %v3511 = vadd.f32 %v3243, %v3505
    %v3512 = vadd.f32 %v3244, %v3507
    %s3513 = scalar_lea.vmem [#allocation8], 4000
    %v3514 = vld [vmem:[%s3513] sm:$0xff]
    %v3515 = vld [vmem:[%s3513 + $0x8] sm:$0xff]
    %v3516 = vld [vmem:[%s3513 + $0x10] sm:$0xff]
    %v3517 = vld [vmem:[%s3513 + $0x18] sm:$0xff]
    %v3518 = vld [vmem:[%s3513 + $0x20] sm:$0xff]
    %v3519 = vld [vmem:[%s3513 + $0x28] sm:$0xff]
    %v3520 = vld [vmem:[%s3513 + $0x30] sm:$0xff]
    %v3521 = vld [vmem:[%s3513 + $0x38] sm:$0xff]
    %v3522 = vld [vmem:[%s3513 + $0x40] sm:$0xff]
    %v3523 = vld [vmem:[%s3513 + $0x48] sm:$0xff]
    %v3524 = vld [vmem:[%s3513 + $0x50] sm:$0xff]
    %v3525 = vld [vmem:[%s3513 + $0x58] sm:$0xff]
    %v3526 = vld [vmem:[%s3513 + $0x60] sm:$0xff]
    %v3527 = vld [vmem:[%s3513 + $0x68] sm:$0xff]
    %v3528 = vld [vmem:[%s3513 + $0x70] sm:$0xff]
    %v3529 = vld [vmem:[%s3513 + $0x78] sm:$0xff]
    %v3530 = vld [vmem:[%s3513 + $0x80] sm:$0xff]
    %v3531 = vld [vmem:[%s3513 + $0x88] sm:$0xff]
    %v3532 = vld [vmem:[%s3513 + $0x90] sm:$0xff]
    %v3533 = vld [vmem:[%s3513 + $0x98] sm:$0xff]
    %v3534 = vld [vmem:[%s3513 + $0xa0] sm:$0xff]
    %v3535 = vld [vmem:[%s3513 + $0xa8] sm:$0xff]
    %v3536 = vld [vmem:[%s3513 + $0xb0] sm:$0xff]
    %v3537 = vld [vmem:[%s3513 + $0xb8] sm:$0xff]
    %v3538 = vld [vmem:[%s3513 + $0xc0] sm:$0xff]
    %v3539 = vld [vmem:[%s3513 + $0xc8] sm:$0xff]
    %v3540 = vld [vmem:[%s3513 + $0xd0] sm:$0xff]
    %v3541 = vld [vmem:[%s3513 + $0xd8] sm:$0xff]
    %v3542 = vld [vmem:[%s3513 + $0xe0] sm:$0xff]
    %v3543 = vld [vmem:[%s3513 + $0xe8] sm:$0xff]
    %v3544 = vld [vmem:[%s3513 + $0xf0] sm:$0xff]
    %v3545 = vld [vmem:[%s3513 + $0xf8] sm:$0xff]
    %v3546 = vld [vmem:[%s3513 + $0x100] sm:$0xff]
    %v3547 = vld [vmem:[%s3513 + $0x108] sm:$0xff]
    %v3548 = vld [vmem:[%s3513 + $0x110] sm:$0xff]
    %v3549 = vld [vmem:[%s3513 + $0x118] sm:$0xff]
    %v3550 = vld [vmem:[%s3513 + $0x120] sm:$0xff]
    %v3551 = vld [vmem:[%s3513 + $0x128] sm:$0xff]
    %v3552 = vld [vmem:[%s3513 + $0x130] sm:$0xff]
    %v3553 = vld [vmem:[%s3513 + $0x138] sm:$0xff]
    %v3554 = vld [vmem:[%s3513 + $0x140] sm:$0xff]
    %v3555 = vld [vmem:[%s3513 + $0x148] sm:$0xff]
    %v3556 = vld [vmem:[%s3513 + $0x150] sm:$0xff]
    %v3557 = vld [vmem:[%s3513 + $0x158] sm:$0xff]
    %v3558 = vld [vmem:[%s3513 + $0x160] sm:$0xff]
    %v3559 = vld [vmem:[%s3513 + $0x168] sm:$0xff]
    %v3560 = vld [vmem:[%s3513 + $0x170] sm:$0xff]
    %v3561 = vld [vmem:[%s3513 + $0x178] sm:$0xff]
    %v3562 = vld [vmem:[%s3513 + $0x180] sm:$0xff]
    %v3563 = vld [vmem:[%s3513 + $0x188] sm:$0xff]
    %v3564 = vld [vmem:[%s3513 + $0x190] sm:$0xff]
    %v3565 = vld [vmem:[%s3513 + $0x198] sm:$0xff]
    %v3566 = vld [vmem:[%s3513 + $0x1a0] sm:$0xff]
    %v3567 = vld [vmem:[%s3513 + $0x1a8] sm:$0xff]
    %v3568 = vld [vmem:[%s3513 + $0x1b0] sm:$0xff]
    %v3569 = vld [vmem:[%s3513 + $0x1b8] sm:$0xff]
    %v3570 = vld [vmem:[%s3513 + $0x1c0] sm:$0xff]
    %v3571 = vld [vmem:[%s3513 + $0x1c8] sm:$0xff]
    %v3572 = vld [vmem:[%s3513 + $0x1d0] sm:$0xff]
    %v3573 = vld [vmem:[%s3513 + $0x1d8] sm:$0xff]
    %v3574 = vld [vmem:[%s3513 + $0x1e0] sm:$0xff]
    %v3575 = vld [vmem:[%s3513 + $0x1e8] sm:$0xff]
    %v3576 = vld [vmem:[%s3513 + $0x1f0] sm:$0xff]
    %v3577 = vld [vmem:[%s3513 + $0x1f8] sm:$0xff]
    %v3578 = vld [vmem:[%s3513 + $0x200] sm:$0xff]
    %v3579 = vld [vmem:[%s3513 + $0x208] sm:$0xff]
    %v3580 = vld [vmem:[%s3513 + $0x210] sm:$0xff]
    %v3581 = vld [vmem:[%s3513 + $0x218] sm:$0xff]
    %v3582 = vld [vmem:[%s3513 + $0x220] sm:$0xff]
    %v3583 = vld [vmem:[%s3513 + $0x228] sm:$0xff]
    %v3584 = vld [vmem:[%s3513 + $0x230] sm:$0xff]
    %v3585 = vld [vmem:[%s3513 + $0x238] sm:$0xff]
    %v3586 = vld [vmem:[%s3513 + $0x240] sm:$0xff]
    %v3587 = vld [vmem:[%s3513 + $0x248] sm:$0xff]
    %v3588 = vld [vmem:[%s3513 + $0x250] sm:$0xff]
    %v3589 = vld [vmem:[%s3513 + $0x258] sm:$0xff]
    %v3590 = vld [vmem:[%s3513 + $0x260] sm:$0xff]
    %v3591 = vld [vmem:[%s3513 + $0x268] sm:$0xff]
    %v3592 = vld [vmem:[%s3513 + $0x270] sm:$0xff]
    %v3593 = vld [vmem:[%s3513 + $0x278] sm:$0xff]
    %v3594 = vld [vmem:[%s3513 + $0x280] sm:$0xff]
    %v3595 = vld [vmem:[%s3513 + $0x288] sm:$0xff]
    %v3596 = vld [vmem:[%s3513 + $0x290] sm:$0xff]
    %v3597 = vld [vmem:[%s3513 + $0x298] sm:$0xff]
    %v3598 = vld [vmem:[%s3513 + $0x2a0] sm:$0xff]
    %v3599 = vld [vmem:[%s3513 + $0x2a8] sm:$0xff]
    %v3600 = vld [vmem:[%s3513 + $0x2b0] sm:$0xff]
    %v3601 = vld [vmem:[%s3513 + $0x2b8] sm:$0xff]
    %v3602 = vld [vmem:[%s3513 + $0x2c0] sm:$0xff]
    %v3603 = vld [vmem:[%s3513 + $0x2c8] sm:$0xff]
    %v3604 = vld [vmem:[%s3513 + $0x2d0] sm:$0xff]
    %v3605 = vld [vmem:[%s3513 + $0x2d8] sm:$0xff]
    %v3606 = vld [vmem:[%s3513 + $0x2e0] sm:$0xff]
    %v3607 = vld [vmem:[%s3513 + $0x2e8] sm:$0xff]
    %v3608 = vld [vmem:[%s3513 + $0x2f0] sm:$0xff]
    %v3609 = vld [vmem:[%s3513 + $0x2f8] sm:$0xff]
    %v3610 = vld [vmem:[%s3513 + $0x300] sm:$0xff]
    %v3611 = vld [vmem:[%s3513 + $0x308] sm:$0xff]
    %v3612 = vld [vmem:[%s3513 + $0x310] sm:$0xff]
    %v3613 = vld [vmem:[%s3513 + $0x318] sm:$0xff]
    %v3614 = vlaneseq
    %v3615 = vshrl.u32 %v3614, 7
    %v3616 = vsub.s32 1, %v3615
    %v3617 = vrot.slane %v2151, %v3616
    %v3618 = vlaneseq
    %v3619 = vshrl.u32 %v3618, 7
    %v3620 = vsub.s32 3, %v3619
    %v3621 = vrot.slane %v2151, %v3620
    %v3622 = vlaneseq
    %v3623 = vshrl.u32 %v3622, 7
    %v3624 = vsub.s32 1, %v3623
    %v3625 = vrot.slane %v2171, %v3624
    %v3626 = vlaneseq
    %v3627 = vshrl.u32 %v3626, 7
    %v3628 = vsub.s32 3, %v3627
    %v3629 = vrot.slane %v2171, %v3628
    %v3630 = vsel %vm1601, %v3625, %v3617
    %v3631 = vsel %vm1601, %v3629, %v3621
    %v3633 = vsel %vm2401, %v3631, 0
    %3635 = vmatprep.subr.mxu0 %v3515
    %3636 = vmatpush1.msra.mxu0 %v3514
    %3637 = vmatprep.subr.mxu0 %v3519
    %3638 = vmatpush1.msra.mxu0 %v3518
    %3639 = vmatprep.subr.mxu0 %v3523
    %3640 = vmatpush1.msra.mxu0 %v3522
    %3641 = vmatprep.subr.mxu0 %v3527
    %3642 = vmatpush1.msra.mxu0 %v3526
    %3643 = vmatprep.subr.mxu0 %v3531
    %3644 = vmatpush1.msra.mxu0 %v3530
    %3645 = vmatprep.subr.mxu0 %v3535
    %3646 = vmatpush1.msra.mxu0 %v3534
    %3647 = vmatprep.subr.mxu0 %v3539
    %3648 = vmatpush1.msra.mxu0 %v3538
    %3649 = vmatprep.subr.mxu0 %v3543
    %3650 = vmatpush1.msra.mxu0 %v3542
    %3651 = vmatprep.subr.mxu0 %v3547
    %3652 = vmatpush1.msra.mxu0 %v3546
    %3653 = vmatprep.subr.mxu0 %v3551
    %3654 = vmatpush1.msra.mxu0 %v3550
    %3655 = vmatprep.subr.mxu0 %v3555
    %3656 = vmatpush1.msra.mxu0 %v3554
    %3657 = vmatprep.subr.mxu0 %v3559
    %3658 = vmatpush1.msra.mxu0 %v3558
    %3659 = vmatprep.subr.mxu0 %v3563
    %3660 = vmatpush1.msra.mxu0 %v3562
    %3661 = vmatprep.subr.mxu0 %v3567
    %3662 = vmatpush1.msra.mxu0 %v3566
    %3663 = vmatprep.subr.mxu0 %v3571
    %3664 = vmatpush1.msra.mxu0 %v3570
    %3665 = vmatprep.subr.mxu0 %v3575
    %3666 = vmatpush1.msra.mxu0 %v3574
    %3667 = vmatprep.subr.mxu0 %v3579
    %3668 = vmatpush1.msra.mxu0 %v3578
    %3669 = vmatprep.subr.mxu0 %v3583
    %3670 = vmatpush1.msra.mxu0 %v3582
    %3671 = vmatprep.subr.mxu0 %v3587
    %3672 = vmatpush1.msra.mxu0 %v3586
    %3673 = vmatprep.subr.mxu0 %v3591
    %3674 = vmatpush1.msra.mxu0 %v3590
    %3675 = vmatprep.subr.mxu0 %v3595
    %3676 = vmatpush1.msra.mxu0 %v3594
    %3677 = vmatprep.subr.mxu0 %v3599
    %3678 = vmatpush1.msra.mxu0 %v3598
    %3679 = vmatprep.subr.mxu0 %v3603
    %3680 = vmatpush1.msra.mxu0 %v3602
    %3681 = vmatprep.subr.mxu0 %v3607
    %3682 = vmatpush1.msra.mxu0 %v3606
    %3683 = vmatprep.subr.mxu0 %v3611
    %3684 = vmatpush1.msra.mxu0 %v3610
    %3685 = vmatprep.subr.mxu0 0.0
    %3686 = vmatpush1.msra.mxu0 0.0
    %3687 = vmatprep.subr.mxu0 0.0
    %3688 = vmatpush1.msra.mxu0 0.0
    %3689 = vmatprep.subr.mxu0 0.0
    %3690 = vmatpush1.msra.mxu0 0.0
    %3691 = vmatprep.subr.mxu0 0.0
    %3692 = vmatpush1.msra.mxu0 0.0
    %3693 = vmatprep.subr.mxu0 0.0
    %3694 = vmatpush1.msra.mxu0 0.0
    %3695 = vmatprep.subr.mxu0 0.0
    %3696 = vmatpush1.msra.mxu0 0.0
    %3697 = vmatprep.subr.mxu0 0.0
    %3698 = vmatpush1.msra.mxu0 0.0
    %3699 = vmatprep.mubr.f32.mxu0 %v3633
    %3700 = vmatmul.mubr.f32.gmra.mrb[0].mxu0 %v3630
    %v3701 = vpop.f32.mrb[0].mxu0
    %v3702 = vadd.f32 0.0, %v3701
    %v3703 = vpop.f32.mrb[0].mxu0
    %v3704 = vadd.f32 0.0, %v3703
    %3705 = vdwg.mxu0
    %3706 = vmatprep.subr.mxu0 %v3517
    %3707 = vmatpush1.msra.mxu0 %v3516
    %3708 = vmatprep.subr.mxu0 %v3521
    %3709 = vmatpush1.msra.mxu0 %v3520
    %3710 = vmatprep.subr.mxu0 %v3525
    %3711 = vmatpush1.msra.mxu0 %v3524
    %3712 = vmatprep.subr.mxu0 %v3529
    %3713 = vmatpush1.msra.mxu0 %v3528
    %3714 = vmatprep.subr.mxu0 %v3533
    %3715 = vmatpush1.msra.mxu0 %v3532
    %3716 = vmatprep.subr.mxu0 %v3537
    %3717 = vmatpush1.msra.mxu0 %v3536
    %3718 = vmatprep.subr.mxu0 %v3541
    %3719 = vmatpush1.msra.mxu0 %v3540
    %3720 = vmatprep.subr.mxu0 %v3545
    %3721 = vmatpush1.msra.mxu0 %v3544
    %3722 = vmatprep.subr.mxu0 %v3549
    %3723 = vmatpush1.msra.mxu0 %v3548
    %3724 = vmatprep.subr.mxu0 %v3553
    %3725 = vmatpush1.msra.mxu0 %v3552
    %3726 = vmatprep.subr.mxu0 %v3557
    %3727 = vmatpush1.msra.mxu0 %v3556
    %3728 = vmatprep.subr.mxu0 %v3561
    %3729 = vmatpush1.msra.mxu0 %v3560
    %3730 = vmatprep.subr.mxu0 %v3565
    %3731 = vmatpush1.msra.mxu0 %v3564
    %3732 = vmatprep.subr.mxu0 %v3569
    %3733 = vmatpush1.msra.mxu0 %v3568
    %3734 = vmatprep.subr.mxu0 %v3573
    %3735 = vmatpush1.msra.mxu0 %v3572
    %3736 = vmatprep.subr.mxu0 %v3577
    %3737 = vmatpush1.msra.mxu0 %v3576
    %3738 = vmatprep.subr.mxu0 %v3581
    %3739 = vmatpush1.msra.mxu0 %v3580
    %3740 = vmatprep.subr.mxu0 %v3585
    %3741 = vmatpush1.msra.mxu0 %v3584
    %3742 = vmatprep.subr.mxu0 %v3589
    %3743 = vmatpush1.msra.mxu0 %v3588
    %3744 = vmatprep.subr.mxu0 %v3593
    %3745 = vmatpush1.msra.mxu0 %v3592
    %3746 = vmatprep.subr.mxu0 %v3597
    %3747 = vmatpush1.msra.mxu0 %v3596
    %3748 = vmatprep.subr.mxu0 %v3601
    %3749 = vmatpush1.msra.mxu0 %v3600
    %3750 = vmatprep.subr.mxu0 %v3605
    %3751 = vmatpush1.msra.mxu0 %v3604
    %3752 = vmatprep.subr.mxu0 %v3609
    %3753 = vmatpush1.msra.mxu0 %v3608
    %3754 = vmatprep.subr.mxu0 %v3613
    %3755 = vmatpush1.msra.mxu0 %v3612
    %3756 = vmatprep.subr.mxu0 0.0
    %3757 = vmatpush1.msra.mxu0 0.0
    %3758 = vmatprep.subr.mxu0 0.0
    %3759 = vmatpush1.msra.mxu0 0.0
    %3760 = vmatprep.subr.mxu0 0.0
    %3761 = vmatpush1.msra.mxu0 0.0
    %3762 = vmatprep.subr.mxu0 0.0
    %3763 = vmatpush1.msra.mxu0 0.0
    %3764 = vmatprep.subr.mxu0 0.0
    %3765 = vmatpush1.msra.mxu0 0.0
    %3766 = vmatprep.subr.mxu0 0.0
    %3767 = vmatpush1.msra.mxu0 0.0
    %3768 = vmatprep.subr.mxu0 0.0
    %3769 = vmatpush1.msra.mxu0 0.0
    %3770 = vmatprep.mubr.f32.mxu0 %v3633
    %3771 = vmatmul.mubr.f32.gmra.mrb[0].mxu0 %v3630
    %v3772 = vpop.f32.mrb[0].mxu0
    %v3773 = vadd.f32 0.0, %v3772
    %v3774 = vpop.f32.mrb[0].mxu0
    %v3775 = vadd.f32 0.0, %v3774
    %3776 = vdwg.mxu0
    %v3777 = vadd.f32 %v3509, %v3702
    %v3778 = vadd.f32 %v3510, %v3704
    %v3779 = vadd.f32 %v3511, %v3773
    %v3780 = vadd.f32 %v3512, %v3775
    %s3781 = scalar_lea.vmem [#allocation8], 4800
    %v3782 = vld [vmem:[%s3781] sm:$0xff]
    %v3783 = vld [vmem:[%s3781 + $0x8] sm:$0xff]
    %v3784 = vld [vmem:[%s3781 + $0x10] sm:$0xff]
    %v3785 = vld [vmem:[%s3781 + $0x18] sm:$0xff]
    %v3786 = vld [vmem:[%s3781 + $0x20] sm:$0xff]
    %v3787 = vld [vmem:[%s3781 + $0x28] sm:$0xff]
    %v3788 = vld [vmem:[%s3781 + $0x30] sm:$0xff]
    %v3789 = vld [vmem:[%s3781 + $0x38] sm:$0xff]
    %v3790 = vld [vmem:[%s3781 + $0x40] sm:$0xff]
    %v3791 = vld [vmem:[%s3781 + $0x48] sm:$0xff]
    %v3792 = vld [vmem:[%s3781 + $0x50] sm:$0xff]
    %v3793 = vld [vmem:[%s3781 + $0x58] sm:$0xff]
    %v3794 = vld [vmem:[%s3781 + $0x60] sm:$0xff]
    %v3795 = vld [vmem:[%s3781 + $0x68] sm:$0xff]
    %v3796 = vld [vmem:[%s3781 + $0x70] sm:$0xff]
    %v3797 = vld [vmem:[%s3781 + $0x78] sm:$0xff]
    %v3798 = vld [vmem:[%s3781 + $0x80] sm:$0xff]
    %v3799 = vld [vmem:[%s3781 + $0x88] sm:$0xff]
    %v3800 = vld [vmem:[%s3781 + $0x90] sm:$0xff]
    %v3801 = vld [vmem:[%s3781 + $0x98] sm:$0xff]
    %v3802 = vld [vmem:[%s3781 + $0xa0] sm:$0xff]
    %v3803 = vld [vmem:[%s3781 + $0xa8] sm:$0xff]
    %v3804 = vld [vmem:[%s3781 + $0xb0] sm:$0xff]
    %v3805 = vld [vmem:[%s3781 + $0xb8] sm:$0xff]
    %v3806 = vld [vmem:[%s3781 + $0xc0] sm:$0xff]
    %v3807 = vld [vmem:[%s3781 + $0xc8] sm:$0xff]
    %v3808 = vld [vmem:[%s3781 + $0xd0] sm:$0xff]
    %v3809 = vld [vmem:[%s3781 + $0xd8] sm:$0xff]
    %v3810 = vld [vmem:[%s3781 + $0xe0] sm:$0xff]
    %v3811 = vld [vmem:[%s3781 + $0xe8] sm:$0xff]
    %v3812 = vld [vmem:[%s3781 + $0xf0] sm:$0xff]
    %v3813 = vld [vmem:[%s3781 + $0xf8] sm:$0xff]
    %v3814 = vld [vmem:[%s3781 + $0x100] sm:$0xff]
    %v3815 = vld [vmem:[%s3781 + $0x108] sm:$0xff]
    %v3816 = vld [vmem:[%s3781 + $0x110] sm:$0xff]
    %v3817 = vld [vmem:[%s3781 + $0x118] sm:$0xff]
    %v3818 = vld [vmem:[%s3781 + $0x120] sm:$0xff]
    %v3819 = vld [vmem:[%s3781 + $0x128] sm:$0xff]
    %v3820 = vld [vmem:[%s3781 + $0x130] sm:$0xff]
    %v3821 = vld [vmem:[%s3781 + $0x138] sm:$0xff]
    %v3822 = vld [vmem:[%s3781 + $0x140] sm:$0xff]
    %v3823 = vld [vmem:[%s3781 + $0x148] sm:$0xff]
    %v3824 = vld [vmem:[%s3781 + $0x150] sm:$0xff]
    %v3825 = vld [vmem:[%s3781 + $0x158] sm:$0xff]
    %v3826 = vld [vmem:[%s3781 + $0x160] sm:$0xff]
    %v3827 = vld [vmem:[%s3781 + $0x168] sm:$0xff]
    %v3828 = vld [vmem:[%s3781 + $0x170] sm:$0xff]
    %v3829 = vld [vmem:[%s3781 + $0x178] sm:$0xff]
    %v3830 = vld [vmem:[%s3781 + $0x180] sm:$0xff]
    %v3831 = vld [vmem:[%s3781 + $0x188] sm:$0xff]
    %v3832 = vld [vmem:[%s3781 + $0x190] sm:$0xff]
    %v3833 = vld [vmem:[%s3781 + $0x198] sm:$0xff]
    %v3834 = vld [vmem:[%s3781 + $0x1a0] sm:$0xff]
    %v3835 = vld [vmem:[%s3781 + $0x1a8] sm:$0xff]
    %v3836 = vld [vmem:[%s3781 + $0x1b0] sm:$0xff]
    %v3837 = vld [vmem:[%s3781 + $0x1b8] sm:$0xff]
    %v3838 = vld [vmem:[%s3781 + $0x1c0] sm:$0xff]
    %v3839 = vld [vmem:[%s3781 + $0x1c8] sm:$0xff]
    %v3840 = vld [vmem:[%s3781 + $0x1d0] sm:$0xff]
    %v3841 = vld [vmem:[%s3781 + $0x1d8] sm:$0xff]
    %v3842 = vld [vmem:[%s3781 + $0x1e0] sm:$0xff]
    %v3843 = vld [vmem:[%s3781 + $0x1e8] sm:$0xff]
    %v3844 = vld [vmem:[%s3781 + $0x1f0] sm:$0xff]
    %v3845 = vld [vmem:[%s3781 + $0x1f8] sm:$0xff]
    %v3846 = vld [vmem:[%s3781 + $0x200] sm:$0xff]
    %v3847 = vld [vmem:[%s3781 + $0x208] sm:$0xff]
    %v3848 = vld [vmem:[%s3781 + $0x210] sm:$0xff]
    %v3849 = vld [vmem:[%s3781 + $0x218] sm:$0xff]
    %v3850 = vld [vmem:[%s3781 + $0x220] sm:$0xff]
    %v3851 = vld [vmem:[%s3781 + $0x228] sm:$0xff]
    %v3852 = vld [vmem:[%s3781 + $0x230] sm:$0xff]
    %v3853 = vld [vmem:[%s3781 + $0x238] sm:$0xff]
    %v3854 = vld [vmem:[%s3781 + $0x240] sm:$0xff]
    %v3855 = vld [vmem:[%s3781 + $0x248] sm:$0xff]
    %v3856 = vld [vmem:[%s3781 + $0x250] sm:$0xff]
    %v3857 = vld [vmem:[%s3781 + $0x258] sm:$0xff]
    %v3858 = vld [vmem:[%s3781 + $0x260] sm:$0xff]
    %v3859 = vld [vmem:[%s3781 + $0x268] sm:$0xff]
    %v3860 = vld [vmem:[%s3781 + $0x270] sm:$0xff]
    %v3861 = vld [vmem:[%s3781 + $0x278] sm:$0xff]
    %v3862 = vld [vmem:[%s3781 + $0x280] sm:$0xff]
    %v3863 = vld [vmem:[%s3781 + $0x288] sm:$0xff]
    %v3864 = vld [vmem:[%s3781 + $0x290] sm:$0xff]
    %v3865 = vld [vmem:[%s3781 + $0x298] sm:$0xff]
    %v3866 = vld [vmem:[%s3781 + $0x2a0] sm:$0xff]
    %v3867 = vld [vmem:[%s3781 + $0x2a8] sm:$0xff]
    %v3868 = vld [vmem:[%s3781 + $0x2b0] sm:$0xff]
    %v3869 = vld [vmem:[%s3781 + $0x2b8] sm:$0xff]
    %v3870 = vld [vmem:[%s3781 + $0x2c0] sm:$0xff]
    %v3871 = vld [vmem:[%s3781 + $0x2c8] sm:$0xff]
    %v3872 = vld [vmem:[%s3781 + $0x2d0] sm:$0xff]
    %v3873 = vld [vmem:[%s3781 + $0x2d8] sm:$0xff]
    %v3874 = vld [vmem:[%s3781 + $0x2e0] sm:$0xff]
    %v3875 = vld [vmem:[%s3781 + $0x2e8] sm:$0xff]
    %v3876 = vld [vmem:[%s3781 + $0x2f0] sm:$0xff]
    %v3877 = vld [vmem:[%s3781 + $0x2f8] sm:$0xff]
    %v3878 = vld [vmem:[%s3781 + $0x300] sm:$0xff]
    %v3879 = vld [vmem:[%s3781 + $0x308] sm:$0xff]
    %v3880 = vld [vmem:[%s3781 + $0x310] sm:$0xff]
    %v3881 = vld [vmem:[%s3781 + $0x318] sm:$0xff]
    %v3882 = vlaneseq
    %v3883 = vshrl.u32 %v3882, 7
    %v3884 = vsub.s32 0, %v3883
    %v3885 = vrot.slane %v2153, %v3884
    %v3886 = vlaneseq
    %v3887 = vshrl.u32 %v3886, 7
    %v3888 = vsub.s32 2, %v3887
    %v3889 = vrot.slane %v2153, %v3888
    %v3890 = vlaneseq
    %v3891 = vshrl.u32 %v3890, 7
    %v3892 = vsub.s32 0, %v3891
    %v3893 = vrot.slane %v2179, %v3892
    %v3894 = vlaneseq
    %v3895 = vshrl.u32 %v3894, 7
    %v3896 = vsub.s32 2, %v3895
    %v3897 = vrot.slane %v2179, %v3896
    %v3898 = vsel %vm1601, %v3893, %v3885
    %v3899 = vsel %vm1601, %v3897, %v3889
    %v3901 = vsel %vm2401, %v3899, 0
    %3903 = vmatprep.subr.mxu0 %v3783
    %3904 = vmatpush1.msra.mxu0 %v3782
    %3905 = vmatprep.subr.mxu0 %v3787
    %3906 = vmatpush1.msra.mxu0 %v3786
    %3907 = vmatprep.subr.mxu0 %v3791
    %3908 = vmatpush1.msra.mxu0 %v3790
    %3909 = vmatprep.subr.mxu0 %v3795
    %3910 = vmatpush1.msra.mxu0 %v3794
    %3911 = vmatprep.subr.mxu0 %v3799
    %3912 = vmatpush1.msra.mxu0 %v3798
    %3913 = vmatprep.subr.mxu0 %v3803
    %3914 = vmatpush1.msra.mxu0 %v3802
    %3915 = vmatprep.subr.mxu0 %v3807
    %3916 = vmatpush1.msra.mxu0 %v3806
    %3917 = vmatprep.subr.mxu0 %v3811
    %3918 = vmatpush1.msra.mxu0 %v3810
    %3919 = vmatprep.subr.mxu0 %v3815
    %3920 = vmatpush1.msra.mxu0 %v3814
    %3921 = vmatprep.subr.mxu0 %v3819
    %3922 = vmatpush1.msra.mxu0 %v3818
    %3923 = vmatprep.subr.mxu0 %v3823
    %3924 = vmatpush1.msra.mxu0 %v3822
    %3925 = vmatprep.subr.mxu0 %v3827
    %3926 = vmatpush1.msra.mxu0 %v3826
    %3927 = vmatprep.subr.mxu0 %v3831
    %3928 = vmatpush1.msra.mxu0 %v3830
    %3929 = vmatprep.subr.mxu0 %v3835
    %3930 = vmatpush1.msra.mxu0 %v3834
    %3931 = vmatprep.subr.mxu0 %v3839
    %3932 = vmatpush1.msra.mxu0 %v3838
    %3933 = vmatprep.subr.mxu0 %v3843
    %3934 = vmatpush1.msra.mxu0 %v3842
    %3935 = vmatprep.subr.mxu0 %v3847
    %3936 = vmatpush1.msra.mxu0 %v3846
    %3937 = vmatprep.subr.mxu0 %v3851
    %3938 = vmatpush1.msra.mxu0 %v3850
    %3939 = vmatprep.subr.mxu0 %v3855
    %3940 = vmatpush1.msra.mxu0 %v3854
    %3941 = vmatprep.subr.mxu0 %v3859
    %3942 = vmatpush1.msra.mxu0 %v3858
    %3943 = vmatprep.subr.mxu0 %v3863
    %3944 = vmatpush1.msra.mxu0 %v3862
    %3945 = vmatprep.subr.mxu0 %v3867
    %3946 = vmatpush1.msra.mxu0 %v3866
    %3947 = vmatprep.subr.mxu0 %v3871
    %3948 = vmatpush1.msra.mxu0 %v3870
    %3949 = vmatprep.subr.mxu0 %v3875
    %3950 = vmatpush1.msra.mxu0 %v3874
    %3951 = vmatprep.subr.mxu0 %v3879
    %3952 = vmatpush1.msra.mxu0 %v3878
    %3953 = vmatprep.subr.mxu0 0.0
    %3954 = vmatpush1.msra.mxu0 0.0
    %3955 = vmatprep.subr.mxu0 0.0
    %3956 = vmatpush1.msra.mxu0 0.0
    %3957 = vmatprep.subr.mxu0 0.0
    %3958 = vmatpush1.msra.mxu0 0.0
    %3959 = vmatprep.subr.mxu0 0.0
    %3960 = vmatpush1.msra.mxu0 0.0
    %3961 = vmatprep.subr.mxu0 0.0
    %3962 = vmatpush1.msra.mxu0 0.0
    %3963 = vmatprep.subr.mxu0 0.0
    %3964 = vmatpush1.msra.mxu0 0.0
    %3965 = vmatprep.subr.mxu0 0.0
    %3966 = vmatpush1.msra.mxu0 0.0
    %3967 = vmatprep.mubr.f32.mxu0 %v3901
    %3968 = vmatmul.mubr.f32.gmra.mrb[0].mxu0 %v3898
    %v3969 = vpop.f32.mrb[0].mxu0
    %v3970 = vadd.f32 0.0, %v3969
    %v3971 = vpop.f32.mrb[0].mxu0
    %v3972 = vadd.f32 0.0, %v3971
    %3973 = vdwg.mxu0
    %3974 = vmatprep.subr.mxu0 %v3785
    %3975 = vmatpush1.msra.mxu0 %v3784
    %3976 = vmatprep.subr.mxu0 %v3789
    %3977 = vmatpush1.msra.mxu0 %v3788
    %3978 = vmatprep.subr.mxu0 %v3793
    %3979 = vmatpush1.msra.mxu0 %v3792
    %3980 = vmatprep.subr.mxu0 %v3797
    %3981 = vmatpush1.msra.mxu0 %v3796
    %3982 = vmatprep.subr.mxu0 %v3801
    %3983 = vmatpush1.msra.mxu0 %v3800
    %3984 = vmatprep.subr.mxu0 %v3805
    %3985 = vmatpush1.msra.mxu0 %v3804
    %3986 = vmatprep.subr.mxu0 %v3809
    %3987 = vmatpush1.msra.mxu0 %v3808
    %3988 = vmatprep.subr.mxu0 %v3813
    %3989 = vmatpush1.msra.mxu0 %v3812
    %3990 = vmatprep.subr.mxu0 %v3817
    %3991 = vmatpush1.msra.mxu0 %v3816
    %3992 = vmatprep.subr.mxu0 %v3821
    %3993 = vmatpush1.msra.mxu0 %v3820
    %3994 = vmatprep.subr.mxu0 %v3825
    %3995 = vmatpush1.msra.mxu0 %v3824
    %3996 = vmatprep.subr.mxu0 %v3829
    %3997 = vmatpush1.msra.mxu0 %v3828
    %3998 = vmatprep.subr.mxu0 %v3833
    %3999 = vmatpush1.msra.mxu0 %v3832
    %4000 = vmatprep.subr.mxu0 %v3837
    %4001 = vmatpush1.msra.mxu0 %v3836
    %4002 = vmatprep.subr.mxu0 %v3841
    %4003 = vmatpush1.msra.mxu0 %v3840
    %4004 = vmatprep.subr.mxu0 %v3845
    %4005 = vmatpush1.msra.mxu0 %v3844
    %4006 = vmatprep.subr.mxu0 %v3849
    %4007 = vmatpush1.msra.mxu0 %v3848
    %4008 = vmatprep.subr.mxu0 %v3853
    %4009 = vmatpush1.msra.mxu0 %v3852
    %4010 = vmatprep.subr.mxu0 %v3857
    %4011 = vmatpush1.msra.mxu0 %v3856
    %4012 = vmatprep.subr.mxu0 %v3861
    %4013 = vmatpush1.msra.mxu0 %v3860
    %4014 = vmatprep.subr.mxu0 %v3865
    %4015 = vmatpush1.msra.mxu0 %v3864
    %4016 = vmatprep.subr.mxu0 %v3869
    %4017 = vmatpush1.msra.mxu0 %v3868
    %4018 = vmatprep.subr.mxu0 %v3873
    %4019 = vmatpush1.msra.mxu0 %v3872
    %4020 = vmatprep.subr.mxu0 %v3877
    %4021 = vmatpush1.msra.mxu0 %v3876
    %4022 = vmatprep.subr.mxu0 %v3881
    %4023 = vmatpush1.msra.mxu0 %v3880
    %4024 = vmatprep.subr.mxu0 0.0
    %4025 = vmatpush1.msra.mxu0 0.0
    %4026 = vmatprep.subr.mxu0 0.0
    %4027 = vmatpush1.msra.mxu0 0.0
    %4028 = vmatprep.subr.mxu0 0.0
    %4029 = vmatpush1.msra.mxu0 0.0
    %4030 = vmatprep.subr.mxu0 0.0
    %4031 = vmatpush1.msra.mxu0 0.0
    %4032 = vmatprep.subr.mxu0 0.0
    %4033 = vmatpush1.msra.mxu0 0.0
    %4034 = vmatprep.subr.mxu0 0.0
    %4035 = vmatpush1.msra.mxu0 0.0
    %4036 = vmatprep.subr.mxu0 0.0
    %4037 = vmatpush1.msra.mxu0 0.0
    %4038 = vmatprep.mubr.f32.mxu0 %v3901
    %4039 = vmatmul.mubr.f32.gmra.mrb[0].mxu0 %v3898
    %v4040 = vpop.f32.mrb[0].mxu0
    %v4041 = vadd.f32 0.0, %v4040
    %v4042 = vpop.f32.mrb[0].mxu0
    %v4043 = vadd.f32 0.0, %v4042
    %4044 = vdwg.mxu0
    %v4045 = vadd.f32 %v3777, %v3970
    %v4046 = vadd.f32 %v3778, %v3972
    %v4047 = vadd.f32 %v3779, %v4041
    %v4048 = vadd.f32 %v3780, %v4043
    %s4049 = scalar_lea.vmem [#allocation8], 5600
    %v4050 = vld [vmem:[%s4049] sm:$0xff]
    %v4051 = vld [vmem:[%s4049 + $0x8] sm:$0xff]
    %v4052 = vld [vmem:[%s4049 + $0x10] sm:$0xff]
    %v4053 = vld [vmem:[%s4049 + $0x18] sm:$0xff]
    %v4054 = vld [vmem:[%s4049 + $0x20] sm:$0xff]
    %v4055 = vld [vmem:[%s4049 + $0x28] sm:$0xff]
    %v4056 = vld [vmem:[%s4049 + $0x30] sm:$0xff]
    %v4057 = vld [vmem:[%s4049 + $0x38] sm:$0xff]
    %v4058 = vld [vmem:[%s4049 + $0x40] sm:$0xff]
    %v4059 = vld [vmem:[%s4049 + $0x48] sm:$0xff]
    %v4060 = vld [vmem:[%s4049 + $0x50] sm:$0xff]
    %v4061 = vld [vmem:[%s4049 + $0x58] sm:$0xff]
    %v4062 = vld [vmem:[%s4049 + $0x60] sm:$0xff]
    %v4063 = vld [vmem:[%s4049 + $0x68] sm:$0xff]
    %v4064 = vld [vmem:[%s4049 + $0x70] sm:$0xff]
    %v4065 = vld [vmem:[%s4049 + $0x78] sm:$0xff]
    %v4066 = vld [vmem:[%s4049 + $0x80] sm:$0xff]
    %v4067 = vld [vmem:[%s4049 + $0x88] sm:$0xff]
    %v4068 = vld [vmem:[%s4049 + $0x90] sm:$0xff]
    %v4069 = vld [vmem:[%s4049 + $0x98] sm:$0xff]
    %v4070 = vld [vmem:[%s4049 + $0xa0] sm:$0xff]
    %v4071 = vld [vmem:[%s4049 + $0xa8] sm:$0xff]
    %v4072 = vld [vmem:[%s4049 + $0xb0] sm:$0xff]
    %v4073 = vld [vmem:[%s4049 + $0xb8] sm:$0xff]
    %v4074 = vld [vmem:[%s4049 + $0xc0] sm:$0xff]
    %v4075 = vld [vmem:[%s4049 + $0xc8] sm:$0xff]
    %v4076 = vld [vmem:[%s4049 + $0xd0] sm:$0xff]
    %v4077 = vld [vmem:[%s4049 + $0xd8] sm:$0xff]
    %v4078 = vld [vmem:[%s4049 + $0xe0] sm:$0xff]
    %v4079 = vld [vmem:[%s4049 + $0xe8] sm:$0xff]
    %v4080 = vld [vmem:[%s4049 + $0xf0] sm:$0xff]
    %v4081 = vld [vmem:[%s4049 + $0xf8] sm:$0xff]
    %v4082 = vld [vmem:[%s4049 + $0x100] sm:$0xff]
    %v4083 = vld [vmem:[%s4049 + $0x108] sm:$0xff]
    %v4084 = vld [vmem:[%s4049 + $0x110] sm:$0xff]
    %v4085 = vld [vmem:[%s4049 + $0x118] sm:$0xff]
    %v4086 = vld [vmem:[%s4049 + $0x120] sm:$0xff]
    %v4087 = vld [vmem:[%s4049 + $0x128] sm:$0xff]
    %v4088 = vld [vmem:[%s4049 + $0x130] sm:$0xff]
    %v4089 = vld [vmem:[%s4049 + $0x138] sm:$0xff]
    %v4090 = vld [vmem:[%s4049 + $0x140] sm:$0xff]
    %v4091 = vld [vmem:[%s4049 + $0x148] sm:$0xff]
    %v4092 = vld [vmem:[%s4049 + $0x150] sm:$0xff]
    %v4093 = vld [vmem:[%s4049 + $0x158] sm:$0xff]
    %v4094 = vld [vmem:[%s4049 + $0x160] sm:$0xff]
    %v4095 = vld [vmem:[%s4049 + $0x168] sm:$0xff]
    %v4096 = vld [vmem:[%s4049 + $0x170] sm:$0xff]
    %v4097 = vld [vmem:[%s4049 + $0x178] sm:$0xff]
    %v4098 = vld [vmem:[%s4049 + $0x180] sm:$0xff]
    %v4099 = vld [vmem:[%s4049 + $0x188] sm:$0xff]
    %v4100 = vld [vmem:[%s4049 + $0x190] sm:$0xff]
    %v4101 = vld [vmem:[%s4049 + $0x198] sm:$0xff]
    %v4102 = vld [vmem:[%s4049 + $0x1a0] sm:$0xff]
    %v4103 = vld [vmem:[%s4049 + $0x1a8] sm:$0xff]
    %v4104 = vld [vmem:[%s4049 + $0x1b0] sm:$0xff]
    %v4105 = vld [vmem:[%s4049 + $0x1b8] sm:$0xff]
    %v4106 = vld [vmem:[%s4049 + $0x1c0] sm:$0xff]
    %v4107 = vld [vmem:[%s4049 + $0x1c8] sm:$0xff]
    %v4108 = vld [vmem:[%s4049 + $0x1d0] sm:$0xff]
    %v4109 = vld [vmem:[%s4049 + $0x1d8] sm:$0xff]
    %v4110 = vld [vmem:[%s4049 + $0x1e0] sm:$0xff]
    %v4111 = vld [vmem:[%s4049 + $0x1e8] sm:$0xff]
    %v4112 = vld [vmem:[%s4049 + $0x1f0] sm:$0xff]
    %v4113 = vld [vmem:[%s4049 + $0x1f8] sm:$0xff]
    %v4114 = vld [vmem:[%s4049 + $0x200] sm:$0xff]
    %v4115 = vld [vmem:[%s4049 + $0x208] sm:$0xff]
    %v4116 = vld [vmem:[%s4049 + $0x210] sm:$0xff]
    %v4117 = vld [vmem:[%s4049 + $0x218] sm:$0xff]
    %v4118 = vld [vmem:[%s4049 + $0x220] sm:$0xff]
    %v4119 = vld [vmem:[%s4049 + $0x228] sm:$0xff]
    %v4120 = vld [vmem:[%s4049 + $0x230] sm:$0xff]
    %v4121 = vld [vmem:[%s4049 + $0x238] sm:$0xff]
    %v4122 = vld [vmem:[%s4049 + $0x240] sm:$0xff]
    %v4123 = vld [vmem:[%s4049 + $0x248] sm:$0xff]
    %v4124 = vld [vmem:[%s4049 + $0x250] sm:$0xff]
    %v4125 = vld [vmem:[%s4049 + $0x258] sm:$0xff]
    %v4126 = vld [vmem:[%s4049 + $0x260] sm:$0xff]
    %v4127 = vld [vmem:[%s4049 + $0x268] sm:$0xff]
    %v4128 = vld [vmem:[%s4049 + $0x270] sm:$0xff]
    %v4129 = vld [vmem:[%s4049 + $0x278] sm:$0xff]
    %v4130 = vld [vmem:[%s4049 + $0x280] sm:$0xff]
    %v4131 = vld [vmem:[%s4049 + $0x288] sm:$0xff]
    %v4132 = vld [vmem:[%s4049 + $0x290] sm:$0xff]
    %v4133 = vld [vmem:[%s4049 + $0x298] sm:$0xff]
    %v4134 = vld [vmem:[%s4049 + $0x2a0] sm:$0xff]
    %v4135 = vld [vmem:[%s4049 + $0x2a8] sm:$0xff]
    %v4136 = vld [vmem:[%s4049 + $0x2b0] sm:$0xff]
    %v4137 = vld [vmem:[%s4049 + $0x2b8] sm:$0xff]
    %v4138 = vld [vmem:[%s4049 + $0x2c0] sm:$0xff]
    %v4139 = vld [vmem:[%s4049 + $0x2c8] sm:$0xff]
    %v4140 = vld [vmem:[%s4049 + $0x2d0] sm:$0xff]
    %v4141 = vld [vmem:[%s4049 + $0x2d8] sm:$0xff]
    %v4142 = vld [vmem:[%s4049 + $0x2e0] sm:$0xff]
    %v4143 = vld [vmem:[%s4049 + $0x2e8] sm:$0xff]
    %v4144 = vld [vmem:[%s4049 + $0x2f0] sm:$0xff]
    %v4145 = vld [vmem:[%s4049 + $0x2f8] sm:$0xff]
    %v4146 = vld [vmem:[%s4049 + $0x300] sm:$0xff]
    %v4147 = vld [vmem:[%s4049 + $0x308] sm:$0xff]
    %v4148 = vld [vmem:[%s4049 + $0x310] sm:$0xff]
    %v4149 = vld [vmem:[%s4049 + $0x318] sm:$0xff]
    %v4150 = vlaneseq
    %v4151 = vshrl.u32 %v4150, 7
    %v4152 = vsub.s32 1, %v4151
    %v4153 = vrot.slane %v2153, %v4152
    %v4154 = vlaneseq
    %v4155 = vshrl.u32 %v4154, 7
    %v4156 = vsub.s32 3, %v4155
    %v4157 = vrot.slane %v2153, %v4156
    %v4158 = vlaneseq
    %v4159 = vshrl.u32 %v4158, 7
    %v4160 = vsub.s32 1, %v4159
    %v4161 = vrot.slane %v2179, %v4160
    %v4162 = vlaneseq
    %v4163 = vshrl.u32 %v4162, 7
    %v4164 = vsub.s32 3, %v4163
    %v4165 = vrot.slane %v2179, %v4164
    %v4166 = vsel %vm1601, %v4161, %v4153
    %v4167 = vsel %vm1601, %v4165, %v4157
    %v4169 = vsel %vm2401, %v4167, 0
    %4171 = vmatprep.subr.mxu0 %v4051
    %4172 = vmatpush1.msra.mxu0 %v4050
    %4173 = vmatprep.subr.mxu0 %v4055
    %4174 = vmatpush1.msra.mxu0 %v4054
    %4175 = vmatprep.subr.mxu0 %v4059
    %4176 = vmatpush1.msra.mxu0 %v4058
    %4177 = vmatprep.subr.mxu0 %v4063
    %4178 = vmatpush1.msra.mxu0 %v4062
    %4179 = vmatprep.subr.mxu0 %v4067
    %4180 = vmatpush1.msra.mxu0 %v4066
    %4181 = vmatprep.subr.mxu0 %v4071
    %4182 = vmatpush1.msra.mxu0 %v4070
    %4183 = vmatprep.subr.mxu0 %v4075
    %4184 = vmatpush1.msra.mxu0 %v4074
    %4185 = vmatprep.subr.mxu0 %v4079
    %4186 = vmatpush1.msra.mxu0 %v4078
    %4187 = vmatprep.subr.mxu0 %v4083
    %4188 = vmatpush1.msra.mxu0 %v4082
    %4189 = vmatprep.subr.mxu0 %v4087
    %4190 = vmatpush1.msra.mxu0 %v4086
    %4191 = vmatprep.subr.mxu0 %v4091
    %4192 = vmatpush1.msra.mxu0 %v4090
    %4193 = vmatprep.subr.mxu0 %v4095
    %4194 = vmatpush1.msra.mxu0 %v4094
    %4195 = vmatprep.subr.mxu0 %v4099
    %4196 = vmatpush1.msra.mxu0 %v4098
    %4197 = vmatprep.subr.mxu0 %v4103
    %4198 = vmatpush1.msra.mxu0 %v4102
    %4199 = vmatprep.subr.mxu0 %v4107
    %4200 = vmatpush1.msra.mxu0 %v4106
    %4201 = vmatprep.subr.mxu0 %v4111
    %4202 = vmatpush1.msra.mxu0 %v4110
    %4203 = vmatprep.subr.mxu0 %v4115
    %4204 = vmatpush1.msra.mxu0 %v4114
    %4205 = vmatprep.subr.mxu0 %v4119
    %4206 = vmatpush1.msra.mxu0 %v4118
    %4207 = vmatprep.subr.mxu0 %v4123
    %4208 = vmatpush1.msra.mxu0 %v4122
    %4209 = vmatprep.subr.mxu0 %v4127
    %4210 = vmatpush1.msra.mxu0 %v4126
    %4211 = vmatprep.subr.mxu0 %v4131
    %4212 = vmatpush1.msra.mxu0 %v4130
    %4213 = vmatprep.subr.mxu0 %v4135
    %4214 = vmatpush1.msra.mxu0 %v4134
    %4215 = vmatprep.subr.mxu0 %v4139
    %4216 = vmatpush1.msra.mxu0 %v4138
    %4217 = vmatprep.subr.mxu0 %v4143
    %4218 = vmatpush1.msra.mxu0 %v4142
    %4219 = vmatprep.subr.mxu0 %v4147
    %4220 = vmatpush1.msra.mxu0 %v4146
    %4221 = vmatprep.subr.mxu0 0.0
    %4222 = vmatpush1.msra.mxu0 0.0
    %4223 = vmatprep.subr.mxu0 0.0
    %4224 = vmatpush1.msra.mxu0 0.0
    %4225 = vmatprep.subr.mxu0 0.0
    %4226 = vmatpush1.msra.mxu0 0.0
    %4227 = vmatprep.subr.mxu0 0.0
    %4228 = vmatpush1.msra.mxu0 0.0
    %4229 = vmatprep.subr.mxu0 0.0
    %4230 = vmatpush1.msra.mxu0 0.0
    %4231 = vmatprep.subr.mxu0 0.0
    %4232 = vmatpush1.msra.mxu0 0.0
    %4233 = vmatprep.subr.mxu0 0.0
    %4234 = vmatpush1.msra.mxu0 0.0
    %4235 = vmatprep.mubr.f32.mxu0 %v4169
    %4236 = vmatmul.mubr.f32.gmra.mrb[0].mxu0 %v4166
    %v4237 = vpop.f32.mrb[0].mxu0
    %v4238 = vadd.f32 0.0, %v4237
    %v4239 = vpop.f32.mrb[0].mxu0
    %v4240 = vadd.f32 0.0, %v4239
    %4241 = vdwg.mxu0
    %4242 = vmatprep.subr.mxu0 %v4053
    %4243 = vmatpush1.msra.mxu0 %v4052
    %4244 = vmatprep.subr.mxu0 %v4057
    %4245 = vmatpush1.msra.mxu0 %v4056
    %4246 = vmatprep.subr.mxu0 %v4061
    %4247 = vmatpush1.msra.mxu0 %v4060
    %4248 = vmatprep.subr.mxu0 %v4065
    %4249 = vmatpush1.msra.mxu0 %v4064
    %4250 = vmatprep.subr.mxu0 %v4069
    %4251 = vmatpush1.msra.mxu0 %v4068
    %4252 = vmatprep.subr.mxu0 %v4073
    %4253 = vmatpush1.msra.mxu0 %v4072
    %4254 = vmatprep.subr.mxu0 %v4077
    %4255 = vmatpush1.msra.mxu0 %v4076
    %4256 = vmatprep.subr.mxu0 %v4081
    %4257 = vmatpush1.msra.mxu0 %v4080
    %4258 = vmatprep.subr.mxu0 %v4085
    %4259 = vmatpush1.msra.mxu0 %v4084
    %4260 = vmatprep.subr.mxu0 %v4089
    %4261 = vmatpush1.msra.mxu0 %v4088
    %4262 = vmatprep.subr.mxu0 %v4093
    %4263 = vmatpush1.msra.mxu0 %v4092
    %4264 = vmatprep.subr.mxu0 %v4097
    %4265 = vmatpush1.msra.mxu0 %v4096
    %4266 = vmatprep.subr.mxu0 %v4101
    %4267 = vmatpush1.msra.mxu0 %v4100
    %4268 = vmatprep.subr.mxu0 %v4105
    %4269 = vmatpush1.msra.mxu0 %v4104
    %4270 = vmatprep.subr.mxu0 %v4109
    %4271 = vmatpush1.msra.mxu0 %v4108
    %4272 = vmatprep.subr.mxu0 %v4113
    %4273 = vmatpush1.msra.mxu0 %v4112
    %4274 = vmatprep.subr.mxu0 %v4117
    %4275 = vmatpush1.msra.mxu0 %v4116
    %4276 = vmatprep.subr.mxu0 %v4121
    %4277 = vmatpush1.msra.mxu0 %v4120
    %4278 = vmatprep.subr.mxu0 %v4125
    %4279 = vmatpush1.msra.mxu0 %v4124
    %4280 = vmatprep.subr.mxu0 %v4129
    %4281 = vmatpush1.msra.mxu0 %v4128
    %4282 = vmatprep.subr.mxu0 %v4133
    %4283 = vmatpush1.msra.mxu0 %v4132
    %4284 = vmatprep.subr.mxu0 %v4137
    %4285 = vmatpush1.msra.mxu0 %v4136
    %4286 = vmatprep.subr.mxu0 %v4141
    %4287 = vmatpush1.msra.mxu0 %v4140
    %4288 = vmatprep.subr.mxu0 %v4145
    %4289 = vmatpush1.msra.mxu0 %v4144
    %4290 = vmatprep.subr.mxu0 %v4149
    %4291 = vmatpush1.msra.mxu0 %v4148
    %4292 = vmatprep.subr.mxu0 0.0
    %4293 = vmatpush1.msra.mxu0 0.0
    %4294 = vmatprep.subr.mxu0 0.0
    %4295 = vmatpush1.msra.mxu0 0.0
    %4296 = vmatprep.subr.mxu0 0.0
    %4297 = vmatpush1.msra.mxu0 0.0
    %4298 = vmatprep.subr.mxu0 0.0
    %4299 = vmatpush1.msra.mxu0 0.0
    %4300 = vmatprep.subr.mxu0 0.0
    %4301 = vmatpush1.msra.mxu0 0.0
    %4302 = vmatprep.subr.mxu0 0.0
    %4303 = vmatpush1.msra.mxu0 0.0
    %4304 = vmatprep.subr.mxu0 0.0
    %4305 = vmatpush1.msra.mxu0 0.0
    %4306 = vmatprep.mubr.f32.mxu0 %v4169
    %4307 = vmatmul.mubr.f32.gmra.mrb[0].mxu0 %v4166
    %v4308 = vpop.f32.mrb[0].mxu0
    %v4309 = vadd.f32 0.0, %v4308
    %v4310 = vpop.f32.mrb[0].mxu0
    %v4311 = vadd.f32 0.0, %v4310
    %4312 = vdwg.mxu0
    %v4313 = vadd.f32 %v4045, %v4238
    %v4314 = vadd.f32 %v4046, %v4240
    %v4315 = vadd.f32 %v4047, %v4309
    %v4316 = vadd.f32 %v4048, %v4311
    %s4317 = scalar_lea.vmem [#allocation8], 6400
    %v4318 = vld [vmem:[%s4317] sm:$0xff]
    %v4319 = vld [vmem:[%s4317 + $0x8] sm:$0xff]
    %v4320 = vld [vmem:[%s4317 + $0x10] sm:$0xff]
    %v4321 = vld [vmem:[%s4317 + $0x18] sm:$0xff]
    %v4322 = vld [vmem:[%s4317 + $0x20] sm:$0xff]
    %v4323 = vld [vmem:[%s4317 + $0x28] sm:$0xff]
    %v4324 = vld [vmem:[%s4317 + $0x30] sm:$0xff]
    %v4325 = vld [vmem:[%s4317 + $0x38] sm:$0xff]
    %v4326 = vld [vmem:[%s4317 + $0x40] sm:$0xff]
    %v4327 = vld [vmem:[%s4317 + $0x48] sm:$0xff]
    %v4328 = vld [vmem:[%s4317 + $0x50] sm:$0xff]
    %v4329 = vld [vmem:[%s4317 + $0x58] sm:$0xff]
    %v4330 = vld [vmem:[%s4317 + $0x60] sm:$0xff]
    %v4331 = vld [vmem:[%s4317 + $0x68] sm:$0xff]
    %v4332 = vld [vmem:[%s4317 + $0x70] sm:$0xff]
    %v4333 = vld [vmem:[%s4317 + $0x78] sm:$0xff]
    %v4334 = vld [vmem:[%s4317 + $0x80] sm:$0xff]
    %v4335 = vld [vmem:[%s4317 + $0x88] sm:$0xff]
    %v4336 = vld [vmem:[%s4317 + $0x90] sm:$0xff]
    %v4337 = vld [vmem:[%s4317 + $0x98] sm:$0xff]
    %v4338 = vld [vmem:[%s4317 + $0xa0] sm:$0xff]
    %v4339 = vld [vmem:[%s4317 + $0xa8] sm:$0xff]
    %v4340 = vld [vmem:[%s4317 + $0xb0] sm:$0xff]
    %v4341 = vld [vmem:[%s4317 + $0xb8] sm:$0xff]
    %v4342 = vld [vmem:[%s4317 + $0xc0] sm:$0xff]
    %v4343 = vld [vmem:[%s4317 + $0xc8] sm:$0xff]
    %v4344 = vld [vmem:[%s4317 + $0xd0] sm:$0xff]
    %v4345 = vld [vmem:[%s4317 + $0xd8] sm:$0xff]
    %v4346 = vld [vmem:[%s4317 + $0xe0] sm:$0xff]
    %v4347 = vld [vmem:[%s4317 + $0xe8] sm:$0xff]
    %v4348 = vld [vmem:[%s4317 + $0xf0] sm:$0xff]
    %v4349 = vld [vmem:[%s4317 + $0xf8] sm:$0xff]
    %v4350 = vld [vmem:[%s4317 + $0x100] sm:$0xff]
    %v4351 = vld [vmem:[%s4317 + $0x108] sm:$0xff]
    %v4352 = vld [vmem:[%s4317 + $0x110] sm:$0xff]
    %v4353 = vld [vmem:[%s4317 + $0x118] sm:$0xff]
    %v4354 = vld [vmem:[%s4317 + $0x120] sm:$0xff]
    %v4355 = vld [vmem:[%s4317 + $0x128] sm:$0xff]
    %v4356 = vld [vmem:[%s4317 + $0x130] sm:$0xff]
    %v4357 = vld [vmem:[%s4317 + $0x138] sm:$0xff]
    %v4358 = vld [vmem:[%s4317 + $0x140] sm:$0xff]
    %v4359 = vld [vmem:[%s4317 + $0x148] sm:$0xff]
    %v4360 = vld [vmem:[%s4317 + $0x150] sm:$0xff]
    %v4361 = vld [vmem:[%s4317 + $0x158] sm:$0xff]
    %v4362 = vld [vmem:[%s4317 + $0x160] sm:$0xff]
    %v4363 = vld [vmem:[%s4317 + $0x168] sm:$0xff]
    %v4364 = vld [vmem:[%s4317 + $0x170] sm:$0xff]
    %v4365 = vld [vmem:[%s4317 + $0x178] sm:$0xff]
    %v4366 = vld [vmem:[%s4317 + $0x180] sm:$0xff]
    %v4367 = vld [vmem:[%s4317 + $0x188] sm:$0xff]
    %v4368 = vld [vmem:[%s4317 + $0x190] sm:$0xff]
    %v4369 = vld [vmem:[%s4317 + $0x198] sm:$0xff]
    %v4370 = vld [vmem:[%s4317 + $0x1a0] sm:$0xff]
    %v4371 = vld [vmem:[%s4317 + $0x1a8] sm:$0xff]
    %v4372 = vld [vmem:[%s4317 + $0x1b0] sm:$0xff]
    %v4373 = vld [vmem:[%s4317 + $0x1b8] sm:$0xff]
    %v4374 = vld [vmem:[%s4317 + $0x1c0] sm:$0xff]
    %v4375 = vld [vmem:[%s4317 + $0x1c8] sm:$0xff]
    %v4376 = vld [vmem:[%s4317 + $0x1d0] sm:$0xff]
    %v4377 = vld [vmem:[%s4317 + $0x1d8] sm:$0xff]
    %v4378 = vld [vmem:[%s4317 + $0x1e0] sm:$0xff]
    %v4379 = vld [vmem:[%s4317 + $0x1e8] sm:$0xff]
    %v4380 = vld [vmem:[%s4317 + $0x1f0] sm:$0xff]
    %v4381 = vld [vmem:[%s4317 + $0x1f8] sm:$0xff]
    %v4382 = vld [vmem:[%s4317 + $0x200] sm:$0xff]
    %v4383 = vld [vmem:[%s4317 + $0x208] sm:$0xff]
    %v4384 = vld [vmem:[%s4317 + $0x210] sm:$0xff]
    %v4385 = vld [vmem:[%s4317 + $0x218] sm:$0xff]
    %v4386 = vld [vmem:[%s4317 + $0x220] sm:$0xff]
    %v4387 = vld [vmem:[%s4317 + $0x228] sm:$0xff]
    %v4388 = vld [vmem:[%s4317 + $0x230] sm:$0xff]
    %v4389 = vld [vmem:[%s4317 + $0x238] sm:$0xff]
    %v4390 = vld [vmem:[%s4317 + $0x240] sm:$0xff]
    %v4391 = vld [vmem:[%s4317 + $0x248] sm:$0xff]
    %v4392 = vld [vmem:[%s4317 + $0x250] sm:$0xff]
    %v4393 = vld [vmem:[%s4317 + $0x258] sm:$0xff]
    %v4394 = vld [vmem:[%s4317 + $0x260] sm:$0xff]
    %v4395 = vld [vmem:[%s4317 + $0x268] sm:$0xff]
    %v4396 = vld [vmem:[%s4317 + $0x270] sm:$0xff]
    %v4397 = vld [vmem:[%s4317 + $0x278] sm:$0xff]
    %v4398 = vld [vmem:[%s4317 + $0x280] sm:$0xff]
    %v4399 = vld [vmem:[%s4317 + $0x288] sm:$0xff]
    %v4400 = vld [vmem:[%s4317 + $0x290] sm:$0xff]
    %v4401 = vld [vmem:[%s4317 + $0x298] sm:$0xff]
    %v4402 = vld [vmem:[%s4317 + $0x2a0] sm:$0xff]
    %v4403 = vld [vmem:[%s4317 + $0x2a8] sm:$0xff]
    %v4404 = vld [vmem:[%s4317 + $0x2b0] sm:$0xff]
    %v4405 = vld [vmem:[%s4317 + $0x2b8] sm:$0xff]
    %v4406 = vld [vmem:[%s4317 + $0x2c0] sm:$0xff]
    %v4407 = vld [vmem:[%s4317 + $0x2c8] sm:$0xff]
    %v4408 = vld [vmem:[%s4317 + $0x2d0] sm:$0xff]
    %v4409 = vld [vmem:[%s4317 + $0x2d8] sm:$0xff]
    %v4410 = vld [vmem:[%s4317 + $0x2e0] sm:$0xff]
    %v4411 = vld [vmem:[%s4317 + $0x2e8] sm:$0xff]
    %v4412 = vld [vmem:[%s4317 + $0x2f0] sm:$0xff]
    %v4413 = vld [vmem:[%s4317 + $0x2f8] sm:$0xff]
    %v4414 = vld [vmem:[%s4317 + $0x300] sm:$0xff]
    %v4415 = vld [vmem:[%s4317 + $0x308] sm:$0xff]
    %v4416 = vld [vmem:[%s4317 + $0x310] sm:$0xff]
    %v4417 = vld [vmem:[%s4317 + $0x318] sm:$0xff]
    %v4418 = vlaneseq
    %v4419 = vshrl.u32 %v4418, 7
    %v4420 = vsub.s32 0, %v4419
    %v4421 = vrot.slane %v2162, %v4420
    %v4422 = vlaneseq
    %v4423 = vshrl.u32 %v4422, 7
    %v4424 = vsub.s32 2, %v4423
    %v4425 = vrot.slane %v2162, %v4424
    %v4426 = vlaneseq
    %v4427 = vshrl.u32 %v4426, 7
    %v4428 = vsub.s32 0, %v4427
    %v4429 = vrot.slane %v2180, %v4428
    %v4430 = vlaneseq
    %v4431 = vshrl.u32 %v4430, 7
    %v4432 = vsub.s32 2, %v4431
    %v4433 = vrot.slane %v2180, %v4432
    %v4434 = vsel %vm1601, %v4429, %v4421
    %v4435 = vsel %vm1601, %v4433, %v4425
    %v4437 = vsel %vm2401, %v4435, 0
    %4439 = vmatprep.subr.mxu0 %v4319
    %4440 = vmatpush1.msra.mxu0 %v4318
    %4441 = vmatprep.subr.mxu0 %v4323
    %4442 = vmatpush1.msra.mxu0 %v4322
    %4443 = vmatprep.subr.mxu0 %v4327
    %4444 = vmatpush1.msra.mxu0 %v4326
    %4445 = vmatprep.subr.mxu0 %v4331
    %4446 = vmatpush1.msra.mxu0 %v4330
    %4447 = vmatprep.subr.mxu0 %v4335
    %4448 = vmatpush1.msra.mxu0 %v4334
    %4449 = vmatprep.subr.mxu0 %v4339
    %4450 = vmatpush1.msra.mxu0 %v4338
    %4451 = vmatprep.subr.mxu0 %v4343
    %4452 = vmatpush1.msra.mxu0 %v4342
    %4453 = vmatprep.subr.mxu0 %v4347
    %4454 = vmatpush1.msra.mxu0 %v4346
    %4455 = vmatprep.subr.mxu0 %v4351
    %4456 = vmatpush1.msra.mxu0 %v4350
    %4457 = vmatprep.subr.mxu0 %v4355
    %4458 = vmatpush1.msra.mxu0 %v4354
    %4459 = vmatprep.subr.mxu0 %v4359
    %4460 = vmatpush1.msra.mxu0 %v4358
    %4461 = vmatprep.subr.mxu0 %v4363
    %4462 = vmatpush1.msra.mxu0 %v4362
    %4463 = vmatprep.subr.mxu0 %v4367
    %4464 = vmatpush1.msra.mxu0 %v4366
    %4465 = vmatprep.subr.mxu0 %v4371
    %4466 = vmatpush1.msra.mxu0 %v4370
    %4467 = vmatprep.subr.mxu0 %v4375
    %4468 = vmatpush1.msra.mxu0 %v4374
    %4469 = vmatprep.subr.mxu0 %v4379
    %4470 = vmatpush1.msra.mxu0 %v4378
    %4471 = vmatprep.subr.mxu0 %v4383
    %4472 = vmatpush1.msra.mxu0 %v4382
    %4473 = vmatprep.subr.mxu0 %v4387
    %4474 = vmatpush1.msra.mxu0 %v4386
    %4475 = vmatprep.subr.mxu0 %v4391
    %4476 = vmatpush1.msra.mxu0 %v4390
    %4477 = vmatprep.subr.mxu0 %v4395
    %4478 = vmatpush1.msra.mxu0 %v4394
    %4479 = vmatprep.subr.mxu0 %v4399
    %4480 = vmatpush1.msra.mxu0 %v4398
    %4481 = vmatprep.subr.mxu0 %v4403
    %4482 = vmatpush1.msra.mxu0 %v4402
    %4483 = vmatprep.subr.mxu0 %v4407
    %4484 = vmatpush1.msra.mxu0 %v4406
    %4485 = vmatprep.subr.mxu0 %v4411
    %4486 = vmatpush1.msra.mxu0 %v4410
    %4487 = vmatprep.subr.mxu0 %v4415
    %4488 = vmatpush1.msra.mxu0 %v4414
    %4489 = vmatprep.subr.mxu0 0.0
    %4490 = vmatpush1.msra.mxu0 0.0
    %4491 = vmatprep.subr.mxu0 0.0
    %4492 = vmatpush1.msra.mxu0 0.0
    %4493 = vmatprep.subr.mxu0 0.0
    %4494 = vmatpush1.msra.mxu0 0.0
    %4495 = vmatprep.subr.mxu0 0.0
    %4496 = vmatpush1.msra.mxu0 0.0
    %4497 = vmatprep.subr.mxu0 0.0
    %4498 = vmatpush1.msra.mxu0 0.0
    %4499 = vmatprep.subr.mxu0 0.0
    %4500 = vmatpush1.msra.mxu0 0.0
    %4501 = vmatprep.subr.mxu0 0.0
    %4502 = vmatpush1.msra.mxu0 0.0
    %4503 = vmatprep.mubr.f32.mxu0 %v4437
    %4504 = vmatmul.mubr.f32.gmra.mrb[0].mxu0 %v4434
    %v4505 = vpop.f32.mrb[0].mxu0
    %v4506 = vadd.f32 0.0, %v4505
    %v4507 = vpop.f32.mrb[0].mxu0
    %v4508 = vadd.f32 0.0, %v4507
    %4509 = vdwg.mxu0
    %4510 = vmatprep.subr.mxu0 %v4321
    %4511 = vmatpush1.msra.mxu0 %v4320
    %4512 = vmatprep.subr.mxu0 %v4325
    %4513 = vmatpush1.msra.mxu0 %v4324
    %4514 = vmatprep.subr.mxu0 %v4329
    %4515 = vmatpush1.msra.mxu0 %v4328
    %4516 = vmatprep.subr.mxu0 %v4333
    %4517 = vmatpush1.msra.mxu0 %v4332
    %4518 = vmatprep.subr.mxu0 %v4337
    %4519 = vmatpush1.msra.mxu0 %v4336
    %4520 = vmatprep.subr.mxu0 %v4341
    %4521 = vmatpush1.msra.mxu0 %v4340
    %4522 = vmatprep.subr.mxu0 %v4345
    %4523 = vmatpush1.msra.mxu0 %v4344
    %4524 = vmatprep.subr.mxu0 %v4349
    %4525 = vmatpush1.msra.mxu0 %v4348
    %4526 = vmatprep.subr.mxu0 %v4353
    %4527 = vmatpush1.msra.mxu0 %v4352
    %4528 = vmatprep.subr.mxu0 %v4357
    %4529 = vmatpush1.msra.mxu0 %v4356
    %4530 = vmatprep.subr.mxu0 %v4361
    %4531 = vmatpush1.msra.mxu0 %v4360
    %4532 = vmatprep.subr.mxu0 %v4365
    %4533 = vmatpush1.msra.mxu0 %v4364
    %4534 = vmatprep.subr.mxu0 %v4369
    %4535 = vmatpush1.msra.mxu0 %v4368
    %4536 = vmatprep.subr.mxu0 %v4373
    %4537 = vmatpush1.msra.mxu0 %v4372
    %4538 = vmatprep.subr.mxu0 %v4377
    %4539 = vmatpush1.msra.mxu0 %v4376
    %4540 = vmatprep.subr.mxu0 %v4381
    %4541 = vmatpush1.msra.mxu0 %v4380
    %4542 = vmatprep.subr.mxu0 %v4385
    %4543 = vmatpush1.msra.mxu0 %v4384
    %4544 = vmatprep.subr.mxu0 %v4389
    %4545 = vmatpush1.msra.mxu0 %v4388
    %4546 = vmatprep.subr.mxu0 %v4393
    %4547 = vmatpush1.msra.mxu0 %v4392
    %4548 = vmatprep.subr.mxu0 %v4397
    %4549 = vmatpush1.msra.mxu0 %v4396
    %4550 = vmatprep.subr.mxu0 %v4401
    %4551 = vmatpush1.msra.mxu0 %v4400
    %4552 = vmatprep.subr.mxu0 %v4405
    %4553 = vmatpush1.msra.mxu0 %v4404
    %4554 = vmatprep.subr.mxu0 %v4409
    %4555 = vmatpush1.msra.mxu0 %v4408
    %4556 = vmatprep.subr.mxu0 %v4413
    %4557 = vmatpush1.msra.mxu0 %v4412
    %4558 = vmatprep.subr.mxu0 %v4417
    %4559 = vmatpush1.msra.mxu0 %v4416
    %4560 = vmatprep.subr.mxu0 0.0
    %4561 = vmatpush1.msra.mxu0 0.0
    %4562 = vmatprep.subr.mxu0 0.0
    %4563 = vmatpush1.msra.mxu0 0.0
    %4564 = vmatprep.subr.mxu0 0.0
    %4565 = vmatpush1.msra.mxu0 0.0
    %4566 = vmatprep.subr.mxu0 0.0
    %4567 = vmatpush1.msra.mxu0 0.0
    %4568 = vmatprep.subr.mxu0 0.0
    %4569 = vmatpush1.msra.mxu0 0.0
    %4570 = vmatprep.subr.mxu0 0.0
    %4571 = vmatpush1.msra.mxu0 0.0
    %4572 = vmatprep.subr.mxu0 0.0
    %4573 = vmatpush1.msra.mxu0 0.0
    %4574 = vmatprep.mubr.f32.mxu0 %v4437
    %4575 = vmatmul.mubr.f32.gmra.mrb[0].mxu0 %v4434
    %v4576 = vpop.f32.mrb[0].mxu0
    %v4577 = vadd.f32 0.0, %v4576
    %v4578 = vpop.f32.mrb[0].mxu0
    %v4579 = vadd.f32 0.0, %v4578
    %4580 = vdwg.mxu0
    %v4581 = vadd.f32 %v4313, %v4506
    %v4582 = vadd.f32 %v4314, %v4508
    %v4583 = vadd.f32 %v4315, %v4577
    %v4584 = vadd.f32 %v4316, %v4579
    %s4585 = scalar_lea.vmem [#allocation8], 7200
    %v4586 = vld [vmem:[%s4585] sm:$0xff]
    %v4587 = vld [vmem:[%s4585 + $0x8] sm:$0xff]
    %v4588 = vld [vmem:[%s4585 + $0x10] sm:$0xff]
    %v4589 = vld [vmem:[%s4585 + $0x18] sm:$0xff]
    %v4590 = vld [vmem:[%s4585 + $0x20] sm:$0xff]
    %v4591 = vld [vmem:[%s4585 + $0x28] sm:$0xff]
    %v4592 = vld [vmem:[%s4585 + $0x30] sm:$0xff]
    %v4593 = vld [vmem:[%s4585 + $0x38] sm:$0xff]
    %v4594 = vld [vmem:[%s4585 + $0x40] sm:$0xff]
    %v4595 = vld [vmem:[%s4585 + $0x48] sm:$0xff]
    %v4596 = vld [vmem:[%s4585 + $0x50] sm:$0xff]
    %v4597 = vld [vmem:[%s4585 + $0x58] sm:$0xff]
    %v4598 = vld [vmem:[%s4585 + $0x60] sm:$0xff]
    %v4599 = vld [vmem:[%s4585 + $0x68] sm:$0xff]
    %v4600 = vld [vmem:[%s4585 + $0x70] sm:$0xff]
    %v4601 = vld [vmem:[%s4585 + $0x78] sm:$0xff]
    %v4602 = vld [vmem:[%s4585 + $0x80] sm:$0xff]
    %v4603 = vld [vmem:[%s4585 + $0x88] sm:$0xff]
    %v4604 = vld [vmem:[%s4585 + $0x90] sm:$0xff]
    %v4605 = vld [vmem:[%s4585 + $0x98] sm:$0xff]
    %v4606 = vld [vmem:[%s4585 + $0xa0] sm:$0xff]
    %v4607 = vld [vmem:[%s4585 + $0xa8] sm:$0xff]
    %v4608 = vld [vmem:[%s4585 + $0xb0] sm:$0xff]
    %v4609 = vld [vmem:[%s4585 + $0xb8] sm:$0xff]
    %v4610 = vld [vmem:[%s4585 + $0xc0] sm:$0xff]
    %v4611 = vld [vmem:[%s4585 + $0xc8] sm:$0xff]
    %v4612 = vld [vmem:[%s4585 + $0xd0] sm:$0xff]
    %v4613 = vld [vmem:[%s4585 + $0xd8] sm:$0xff]
    %v4614 = vld [vmem:[%s4585 + $0xe0] sm:$0xff]
    %v4615 = vld [vmem:[%s4585 + $0xe8] sm:$0xff]
    %v4616 = vld [vmem:[%s4585 + $0xf0] sm:$0xff]
    %v4617 = vld [vmem:[%s4585 + $0xf8] sm:$0xff]
    %v4618 = vld [vmem:[%s4585 + $0x100] sm:$0xff]
    %v4619 = vld [vmem:[%s4585 + $0x108] sm:$0xff]
    %v4620 = vld [vmem:[%s4585 + $0x110] sm:$0xff]
    %v4621 = vld [vmem:[%s4585 + $0x118] sm:$0xff]
    %v4622 = vld [vmem:[%s4585 + $0x120] sm:$0xff]
    %v4623 = vld [vmem:[%s4585 + $0x128] sm:$0xff]
    %v4624 = vld [vmem:[%s4585 + $0x130] sm:$0xff]
    %v4625 = vld [vmem:[%s4585 + $0x138] sm:$0xff]
    %v4626 = vld [vmem:[%s4585 + $0x140] sm:$0xff]
    %v4627 = vld [vmem:[%s4585 + $0x148] sm:$0xff]
    %v4628 = vld [vmem:[%s4585 + $0x150] sm:$0xff]
    %v4629 = vld [vmem:[%s4585 + $0x158] sm:$0xff]
    %v4630 = vld [vmem:[%s4585 + $0x160] sm:$0xff]
    %v4631 = vld [vmem:[%s4585 + $0x168] sm:$0xff]
    %v4632 = vld [vmem:[%s4585 + $0x170] sm:$0xff]
    %v4633 = vld [vmem:[%s4585 + $0x178] sm:$0xff]
    %v4634 = vld [vmem:[%s4585 + $0x180] sm:$0xff]
    %v4635 = vld [vmem:[%s4585 + $0x188] sm:$0xff]
    %v4636 = vld [vmem:[%s4585 + $0x190] sm:$0xff]
    %v4637 = vld [vmem:[%s4585 + $0x198] sm:$0xff]
    %v4638 = vld [vmem:[%s4585 + $0x1a0] sm:$0xff]
    %v4639 = vld [vmem:[%s4585 + $0x1a8] sm:$0xff]
    %v4640 = vld [vmem:[%s4585 + $0x1b0] sm:$0xff]
    %v4641 = vld [vmem:[%s4585 + $0x1b8] sm:$0xff]
    %v4642 = vld [vmem:[%s4585 + $0x1c0] sm:$0xff]
    %v4643 = vld [vmem:[%s4585 + $0x1c8] sm:$0xff]
    %v4644 = vld [vmem:[%s4585 + $0x1d0] sm:$0xff]
    %v4645 = vld [vmem:[%s4585 + $0x1d8] sm:$0xff]
    %v4646 = vld [vmem:[%s4585 + $0x1e0] sm:$0xff]
    %v4647 = vld [vmem:[%s4585 + $0x1e8] sm:$0xff]
    %v4648 = vld [vmem:[%s4585 + $0x1f0] sm:$0xff]
    %v4649 = vld [vmem:[%s4585 + $0x1f8] sm:$0xff]
    %v4650 = vld [vmem:[%s4585 + $0x200] sm:$0xff]
    %v4651 = vld [vmem:[%s4585 + $0x208] sm:$0xff]
    %v4652 = vld [vmem:[%s4585 + $0x210] sm:$0xff]
    %v4653 = vld [vmem:[%s4585 + $0x218] sm:$0xff]
    %v4654 = vld [vmem:[%s4585 + $0x220] sm:$0xff]
    %v4655 = vld [vmem:[%s4585 + $0x228] sm:$0xff]
    %v4656 = vld [vmem:[%s4585 + $0x230] sm:$0xff]
    %v4657 = vld [vmem:[%s4585 + $0x238] sm:$0xff]
    %v4658 = vld [vmem:[%s4585 + $0x240] sm:$0xff]
    %v4659 = vld [vmem:[%s4585 + $0x248] sm:$0xff]
    %v4660 = vld [vmem:[%s4585 + $0x250] sm:$0xff]
    %v4661 = vld [vmem:[%s4585 + $0x258] sm:$0xff]
    %v4662 = vld [vmem:[%s4585 + $0x260] sm:$0xff]
    %v4663 = vld [vmem:[%s4585 + $0x268] sm:$0xff]
    %v4664 = vld [vmem:[%s4585 + $0x270] sm:$0xff]
    %v4665 = vld [vmem:[%s4585 + $0x278] sm:$0xff]
    %v4666 = vld [vmem:[%s4585 + $0x280] sm:$0xff]
    %v4667 = vld [vmem:[%s4585 + $0x288] sm:$0xff]
    %v4668 = vld [vmem:[%s4585 + $0x290] sm:$0xff]
    %v4669 = vld [vmem:[%s4585 + $0x298] sm:$0xff]
    %v4670 = vld [vmem:[%s4585 + $0x2a0] sm:$0xff]
    %v4671 = vld [vmem:[%s4585 + $0x2a8] sm:$0xff]
    %v4672 = vld [vmem:[%s4585 + $0x2b0] sm:$0xff]
    %v4673 = vld [vmem:[%s4585 + $0x2b8] sm:$0xff]
    %v4674 = vld [vmem:[%s4585 + $0x2c0] sm:$0xff]
    %v4675 = vld [vmem:[%s4585 + $0x2c8] sm:$0xff]
    %v4676 = vld [vmem:[%s4585 + $0x2d0] sm:$0xff]
    %v4677 = vld [vmem:[%s4585 + $0x2d8] sm:$0xff]
    %v4678 = vld [vmem:[%s4585 + $0x2e0] sm:$0xff]
    %v4679 = vld [vmem:[%s4585 + $0x2e8] sm:$0xff]
    %v4680 = vld [vmem:[%s4585 + $0x2f0] sm:$0xff]
    %v4681 = vld [vmem:[%s4585 + $0x2f8] sm:$0xff]
    %v4682 = vld [vmem:[%s4585 + $0x300] sm:$0xff]
    %v4683 = vld [vmem:[%s4585 + $0x308] sm:$0xff]
    %v4684 = vld [vmem:[%s4585 + $0x310] sm:$0xff]
    %v4685 = vld [vmem:[%s4585 + $0x318] sm:$0xff]
    %v4686 = vlaneseq
    %v4687 = vshrl.u32 %v4686, 7
    %v4688 = vsub.s32 1, %v4687
    %v4689 = vrot.slane %v2162, %v4688
    %v4690 = vlaneseq
    %v4691 = vshrl.u32 %v4690, 7
    %v4692 = vsub.s32 3, %v4691
    %v4693 = vrot.slane %v2162, %v4692
    %v4694 = vlaneseq
    %v4695 = vshrl.u32 %v4694, 7
    %v4696 = vsub.s32 1, %v4695
    %v4697 = vrot.slane %v2180, %v4696
    %v4698 = vlaneseq
    %v4699 = vshrl.u32 %v4698, 7
    %v4700 = vsub.s32 3, %v4699
    %v4701 = vrot.slane %v2180, %v4700
    %v4702 = vsel %vm1601, %v4697, %v4689
    %v4703 = vsel %vm1601, %v4701, %v4693
    %v4705 = vsel %vm2401, %v4703, 0
    %4707 = vmatprep.subr.mxu0 %v4587
    %4708 = vmatpush1.msra.mxu0 %v4586
    %4709 = vmatprep.subr.mxu0 %v4591
    %4710 = vmatpush1.msra.mxu0 %v4590
    %4711 = vmatprep.subr.mxu0 %v4595
    %4712 = vmatpush1.msra.mxu0 %v4594
    %4713 = vmatprep.subr.mxu0 %v4599
    %4714 = vmatpush1.msra.mxu0 %v4598
    %4715 = vmatprep.subr.mxu0 %v4603
    %4716 = vmatpush1.msra.mxu0 %v4602
    %4717 = vmatprep.subr.mxu0 %v4607
    %4718 = vmatpush1.msra.mxu0 %v4606
    %4719 = vmatprep.subr.mxu0 %v4611
    %4720 = vmatpush1.msra.mxu0 %v4610
    %4721 = vmatprep.subr.mxu0 %v4615
    %4722 = vmatpush1.msra.mxu0 %v4614
    %4723 = vmatprep.subr.mxu0 %v4619
    %4724 = vmatpush1.msra.mxu0 %v4618
    %4725 = vmatprep.subr.mxu0 %v4623
    %4726 = vmatpush1.msra.mxu0 %v4622
    %4727 = vmatprep.subr.mxu0 %v4627
    %4728 = vmatpush1.msra.mxu0 %v4626
    %4729 = vmatprep.subr.mxu0 %v4631
    %4730 = vmatpush1.msra.mxu0 %v4630
    %4731 = vmatprep.subr.mxu0 %v4635
    %4732 = vmatpush1.msra.mxu0 %v4634
    %4733 = vmatprep.subr.mxu0 %v4639
    %4734 = vmatpush1.msra.mxu0 %v4638
    %4735 = vmatprep.subr.mxu0 %v4643
    %4736 = vmatpush1.msra.mxu0 %v4642
    %4737 = vmatprep.subr.mxu0 %v4647
    %4738 = vmatpush1.msra.mxu0 %v4646
    %4739 = vmatprep.subr.mxu0 %v4651
    %4740 = vmatpush1.msra.mxu0 %v4650
    %4741 = vmatprep.subr.mxu0 %v4655
    %4742 = vmatpush1.msra.mxu0 %v4654
    %4743 = vmatprep.subr.mxu0 %v4659
    %4744 = vmatpush1.msra.mxu0 %v4658
    %4745 = vmatprep.subr.mxu0 %v4663
    %4746 = vmatpush1.msra.mxu0 %v4662
    %4747 = vmatprep.subr.mxu0 %v4667
    %4748 = vmatpush1.msra.mxu0 %v4666
    %4749 = vmatprep.subr.mxu0 %v4671
    %4750 = vmatpush1.msra.mxu0 %v4670
    %4751 = vmatprep.subr.mxu0 %v4675
    %4752 = vmatpush1.msra.mxu0 %v4674
    %4753 = vmatprep.subr.mxu0 %v4679
    %4754 = vmatpush1.msra.mxu0 %v4678
    %4755 = vmatprep.subr.mxu0 %v4683
    %4756 = vmatpush1.msra.mxu0 %v4682
    %4757 = vmatprep.subr.mxu0 0.0
    %4758 = vmatpush1.msra.mxu0 0.0
    %4759 = vmatprep.subr.mxu0 0.0
    %4760 = vmatpush1.msra.mxu0 0.0
    %4761 = vmatprep.subr.mxu0 0.0
    %4762 = vmatpush1.msra.mxu0 0.0
    %4763 = vmatprep.subr.mxu0 0.0
    %4764 = vmatpush1.msra.mxu0 0.0
    %4765 = vmatprep.subr.mxu0 0.0
    %4766 = vmatpush1.msra.mxu0 0.0
    %4767 = vmatprep.subr.mxu0 0.0
    %4768 = vmatpush1.msra.mxu0 0.0
    %4769 = vmatprep.subr.mxu0 0.0
    %4770 = vmatpush1.msra.mxu0 0.0
    %4771 = vmatprep.mubr.f32.mxu0 %v4705
    %4772 = vmatmul.mubr.f32.gmra.mrb[0].mxu0 %v4702
    %v4773 = vpop.f32.mrb[0].mxu0
    %v4774 = vadd.f32 0.0, %v4773
    %v4775 = vpop.f32.mrb[0].mxu0
    %v4776 = vadd.f32 0.0, %v4775
    %4777 = vdwg.mxu0
    %4778 = vmatprep.subr.mxu0 %v4589
    %4779 = vmatpush1.msra.mxu0 %v4588
    %4780 = vmatprep.subr.mxu0 %v4593
    %4781 = vmatpush1.msra.mxu0 %v4592
    %4782 = vmatprep.subr.mxu0 %v4597
    %4783 = vmatpush1.msra.mxu0 %v4596
    %4784 = vmatprep.subr.mxu0 %v4601
    %4785 = vmatpush1.msra.mxu0 %v4600
    %4786 = vmatprep.subr.mxu0 %v4605
    %4787 = vmatpush1.msra.mxu0 %v4604
    %4788 = vmatprep.subr.mxu0 %v4609
    %4789 = vmatpush1.msra.mxu0 %v4608
    %4790 = vmatprep.subr.mxu0 %v4613
    %4791 = vmatpush1.msra.mxu0 %v4612
    %4792 = vmatprep.subr.mxu0 %v4617
    %4793 = vmatpush1.msra.mxu0 %v4616
    %4794 = vmatprep.subr.mxu0 %v4621
    %4795 = vmatpush1.msra.mxu0 %v4620
    %4796 = vmatprep.subr.mxu0 %v4625
    %4797 = vmatpush1.msra.mxu0 %v4624
    %4798 = vmatprep.subr.mxu0 %v4629
    %4799 = vmatpush1.msra.mxu0 %v4628
    %4800 = vmatprep.subr.mxu0 %v4633
    %4801 = vmatpush1.msra.mxu0 %v4632
    %4802 = vmatprep.subr.mxu0 %v4637
    %4803 = vmatpush1.msra.mxu0 %v4636
    %4804 = vmatprep.subr.mxu0 %v4641
    %4805 = vmatpush1.msra.mxu0 %v4640
    %4806 = vmatprep.subr.mxu0 %v4645
    %4807 = vmatpush1.msra.mxu0 %v4644
    %4808 = vmatprep.subr.mxu0 %v4649
    %4809 = vmatpush1.msra.mxu0 %v4648
    %4810 = vmatprep.subr.mxu0 %v4653
    %4811 = vmatpush1.msra.mxu0 %v4652
    %4812 = vmatprep.subr.mxu0 %v4657
    %4813 = vmatpush1.msra.mxu0 %v4656
    %4814 = vmatprep.subr.mxu0 %v4661
    %4815 = vmatpush1.msra.mxu0 %v4660
    %4816 = vmatprep.subr.mxu0 %v4665
    %4817 = vmatpush1.msra.mxu0 %v4664
    %4818 = vmatprep.subr.mxu0 %v4669
    %4819 = vmatpush1.msra.mxu0 %v4668
    %4820 = vmatprep.subr.mxu0 %v4673
    %4821 = vmatpush1.msra.mxu0 %v4672
    %4822 = vmatprep.subr.mxu0 %v4677
    %4823 = vmatpush1.msra.mxu0 %v4676
    %4824 = vmatprep.subr.mxu0 %v4681
    %4825 = vmatpush1.msra.mxu0 %v4680
    %4826 = vmatprep.subr.mxu0 %v4685
    %4827 = vmatpush1.msra.mxu0 %v4684
    %4828 = vmatprep.subr.mxu0 0.0
    %4829 = vmatpush1.msra.mxu0 0.0
    %4830 = vmatprep.subr.mxu0 0.0
    %4831 = vmatpush1.msra.mxu0 0.0
    %4832 = vmatprep.subr.mxu0 0.0
    %4833 = vmatpush1.msra.mxu0 0.0
    %4834 = vmatprep.subr.mxu0 0.0
    %4835 = vmatpush1.msra.mxu0 0.0
    %4836 = vmatprep.subr.mxu0 0.0
    %4837 = vmatpush1.msra.mxu0 0.0
    %4838 = vmatprep.subr.mxu0 0.0
    %4839 = vmatpush1.msra.mxu0 0.0
    %4840 = vmatprep.subr.mxu0 0.0
    %4841 = vmatpush1.msra.mxu0 0.0
    %4842 = vmatprep.mubr.f32.mxu0 %v4705
    %4843 = vmatmul.mubr.f32.gmra.mrb[0].mxu0 %v4702
    %v4844 = vpop.f32.mrb[0].mxu0
    %v4845 = vadd.f32 0.0, %v4844
    %v4846 = vpop.f32.mrb[0].mxu0
    %v4847 = vadd.f32 0.0, %v4846
    %4848 = vdwg.mxu0
    %v4849 = vadd.f32 %v4581, %v4774
    %v4850 = vadd.f32 %v4582, %v4776
    %v4851 = vadd.f32 %v4583, %v4845
    %v4852 = vadd.f32 %v4584, %v4847
    %v4853 = vld [vmem:[#allocation10] sm:$0xf]
    %v4855 = vlaneseq
    %v4856 = vshrl.u32 %v4855, 7
    %v4857 = vsub.s32 0, %v4856
    %v4858 = vrot.slane %v4853, %v4857
    %v4859 = vlaneseq
    %v4860 = vshrl.u32 %v4859, 7
    %v4861 = vsub.s32 1, %v4860
    %v4862 = vrot.slane %v4853, %v4861
    %v4863 = vlaneseq
    %v4864 = vshrl.u32 %v4863, 7
    %v4865 = vsub.s32 2, %v4864
    %v4866 = vrot.slane %v4853, %v4865
    %v4867 = vlaneseq
    %v4868 = vshrl.u32 %v4867, 7
    %v4869 = vsub.s32 3, %v4868
    %v4870 = vrot.slane %v4853, %v4869
    %v4875 = vadd.f32 %v4849, %v4858
    %v4876 = vadd.f32 %v4850, %v4862
    %v4877 = vadd.f32 %v4851, %v4866
    %v4878 = vadd.f32 %v4852, %v4870
    %v4879 = vmax.f32 %v4875, 0.0
    %v4880 = vmax.f32 %v4876, 0.0
    %v4881 = vmax.f32 %v4877, 0.0
    %v4882 = vmax.f32 %v4878, 0.0
    %v4883 = vld [vmem:[%s7] sm:$0xff]
    %v4884 = vld [vmem:[%s7 + $0x8] sm:$0xff]
    %v4885 = vld [vmem:[%s7 + $0x10] sm:$0xff]
    %v4886 = vld [vmem:[%s7 + $0x18] sm:$0xff]
    %v4887 = vld [vmem:[%s7 + $0x20] sm:$0xff]
    %v4888 = vld [vmem:[%s7 + $0x28] sm:$0xff]
    %v4889 = vld [vmem:[%s7 + $0x30] sm:$0xff]
    %v4890 = vld [vmem:[%s7 + $0x38] sm:$0xff]
    %v4891 = vld [vmem:[%s7 + $0x40] sm:$0xff]
    %v4892 = vld [vmem:[%s7 + $0x48] sm:$0xff]
    %v4893 = vld [vmem:[%s7 + $0x50] sm:$0xff]
    %v4894 = vld [vmem:[%s7 + $0x58] sm:$0xff]
    %v4895 = vld [vmem:[%s7 + $0x60] sm:$0xff]
    %v4896 = vld [vmem:[%s7 + $0x68] sm:$0xff]
    %v4897 = vld [vmem:[%s7 + $0x70] sm:$0xff]
    %v4898 = vld [vmem:[%s7 + $0x78] sm:$0xff]
    %v4899 = vld [vmem:[%s7 + $0x80] sm:$0xff]
    %v4900 = vld [vmem:[%s7 + $0x88] sm:$0xff]
    %v4901 = vld [vmem:[%s7 + $0x90] sm:$0xff]
    %v4902 = vld [vmem:[%s7 + $0x98] sm:$0xff]
    %v4903 = vld [vmem:[%s7 + $0xa0] sm:$0xff]
    %v4904 = vld [vmem:[%s7 + $0xa8] sm:$0xff]
    %v4905 = vld [vmem:[%s7 + $0xb0] sm:$0xff]
    %v4906 = vld [vmem:[%s7 + $0xb8] sm:$0xff]
    %v4907 = vld [vmem:[%s7 + $0xc0] sm:$0xff]
    %v4908 = vld [vmem:[%s7 + $0xc8] sm:$0xff]
    %v4909 = vld [vmem:[%s7 + $0xd0] sm:$0xff]
    %v4910 = vld [vmem:[%s7 + $0xd8] sm:$0xff]
    %v4911 = vld [vmem:[%s7 + $0xe0] sm:$0xff]
    %v4912 = vld [vmem:[%s7 + $0xe8] sm:$0xff]
    %v4913 = vld [vmem:[%s7 + $0xf0] sm:$0xff]
    %v4914 = vld [vmem:[%s7 + $0xf8] sm:$0xff]
    %v4915 = vld [vmem:[%s7 + $0x100] sm:$0xff]
    %v4916 = vld [vmem:[%s7 + $0x108] sm:$0xff]
    %v4917 = vld [vmem:[%s7 + $0x110] sm:$0xff]
    %v4918 = vld [vmem:[%s7 + $0x118] sm:$0xff]
    %v4919 = vld [vmem:[%s7 + $0x120] sm:$0xff]
    %v4920 = vld [vmem:[%s7 + $0x128] sm:$0xff]
    %v4921 = vld [vmem:[%s7 + $0x130] sm:$0xff]
    %v4922 = vld [vmem:[%s7 + $0x138] sm:$0xff]
    %v4923 = vld [vmem:[%s7 + $0x140] sm:$0xff]
    %v4924 = vld [vmem:[%s7 + $0x148] sm:$0xff]
    %v4925 = vld [vmem:[%s7 + $0x150] sm:$0xff]
    %v4926 = vld [vmem:[%s7 + $0x158] sm:$0xff]
    %v4927 = vld [vmem:[%s7 + $0x160] sm:$0xff]
    %v4928 = vld [vmem:[%s7 + $0x168] sm:$0xff]
    %v4929 = vld [vmem:[%s7 + $0x170] sm:$0xff]
    %v4930 = vld [vmem:[%s7 + $0x178] sm:$0xff]
    %v4931 = vld [vmem:[%s7 + $0x180] sm:$0xff]
    %v4932 = vld [vmem:[%s7 + $0x188] sm:$0xff]
    %v4933 = vld [vmem:[%s7 + $0x190] sm:$0xff]
    %v4934 = vld [vmem:[%s7 + $0x198] sm:$0xff]
    %v4935 = vld [vmem:[%s7 + $0x1a0] sm:$0xff]
    %v4936 = vld [vmem:[%s7 + $0x1a8] sm:$0xff]
    %v4937 = vld [vmem:[%s7 + $0x1b0] sm:$0xff]
    %v4938 = vld [vmem:[%s7 + $0x1b8] sm:$0xff]
    %v4939 = vld [vmem:[%s7 + $0x1c0] sm:$0xff]
    %v4940 = vld [vmem:[%s7 + $0x1c8] sm:$0xff]
    %v4941 = vld [vmem:[%s7 + $0x1d0] sm:$0xff]
    %v4942 = vld [vmem:[%s7 + $0x1d8] sm:$0xff]
    %v4943 = vld [vmem:[%s7 + $0x1e0] sm:$0xff]
    %v4944 = vld [vmem:[%s7 + $0x1e8] sm:$0xff]
    %v4945 = vld [vmem:[%s7 + $0x1f0] sm:$0xf]
    %v4946 = vld [vmem:[#allocation11] sm:$0x1]
    %v4948 = vlaneseq
    %v4949 = vshrl.u32 %v4948, 7
    %v4950 = vsub.s32 0, %v4949
    %v4951 = vrot.slane %v4946, %v4950
    %vm4953 = vcmask 949248
    %v4955 = vsel %vm4953, %v4882, 0
    %v4958 = vsel %vm168, %v4945, 0
    %4960 = vmatprep.subr.mxu0 0.0
    %4961 = vmatpush1.msra.mxu0 %v4883
    %4962 = vmatprep.subr.mxu0 0.0
    %4963 = vmatpush1.msra.mxu0 %v4884
    %4964 = vmatprep.subr.mxu0 0.0
    %4965 = vmatpush1.msra.mxu0 %v4885
    %4966 = vmatprep.subr.mxu0 0.0
    %4967 = vmatpush1.msra.mxu0 %v4886
    %4968 = vmatprep.subr.mxu0 0.0
    %4969 = vmatpush1.msra.mxu0 %v4887
    %4970 = vmatprep.subr.mxu0 0.0
    %4971 = vmatpush1.msra.mxu0 %v4888
    %4972 = vmatprep.subr.mxu0 0.0
    %4973 = vmatpush1.msra.mxu0 %v4889
    %4974 = vmatprep.subr.mxu0 0.0
    %4975 = vmatpush1.msra.mxu0 %v4890
    %4976 = vmatprep.subr.mxu0 0.0
    %4977 = vmatpush1.msra.mxu0 %v4891
    %4978 = vmatprep.subr.mxu0 0.0
    %4979 = vmatpush1.msra.mxu0 %v4892
    %4980 = vmatprep.subr.mxu0 0.0
    %4981 = vmatpush1.msra.mxu0 %v4893
    %4982 = vmatprep.subr.mxu0 0.0
    %4983 = vmatpush1.msra.mxu0 %v4894
    %4984 = vmatprep.subr.mxu0 0.0
    %4985 = vmatpush1.msra.mxu0 %v4895
    %4986 = vmatprep.subr.mxu0 0.0
    %4987 = vmatpush1.msra.mxu0 %v4896
    %4988 = vmatprep.subr.mxu0 0.0
    %4989 = vmatpush1.msra.mxu0 %v4897
    %4990 = vmatprep.subr.mxu0 0.0
    %4991 = vmatpush1.msra.mxu0 %v4898
    %4992 = vmatprep.subr.mxu0 0.0
    %4993 = vmatpush1.msra.mxu0 %v4899
    %4994 = vmatprep.subr.mxu0 0.0
    %4995 = vmatpush1.msra.mxu0 %v4900
    %4996 = vmatprep.subr.mxu0 0.0
    %4997 = vmatpush1.msra.mxu0 %v4901
    %4998 = vmatprep.subr.mxu0 0.0
    %4999 = vmatpush1.msra.mxu0 %v4902
    %5000 = vmatprep.subr.mxu0 0.0
    %5001 = vmatpush1.msra.mxu0 %v4903
    %5002 = vmatprep.subr.mxu0 0.0
    %5003 = vmatpush1.msra.mxu0 %v4904
    %5004 = vmatprep.subr.mxu0 0.0
    %5005 = vmatpush1.msra.mxu0 %v4905
    %5006 = vmatprep.subr.mxu0 0.0
    %5007 = vmatpush1.msra.mxu0 %v4906
    %5008 = vmatprep.subr.mxu0 0.0
    %5009 = vmatpush1.msra.mxu0 %v4907
    %5010 = vmatprep.subr.mxu0 0.0
    %5011 = vmatpush1.msra.mxu0 %v4908
    %5012 = vmatprep.subr.mxu0 0.0
    %5013 = vmatpush1.msra.mxu0 %v4909
    %5014 = vmatprep.subr.mxu0 0.0
    %5015 = vmatpush1.msra.mxu0 %v4910
    %5016 = vmatprep.subr.mxu0 0.0
    %5017 = vmatpush1.msra.mxu0 %v4911
    %5018 = vmatprep.subr.mxu0 0.0
    %5019 = vmatpush1.msra.mxu0 %v4912
    %5020 = vmatprep.subr.mxu0 0.0
    %5021 = vmatpush1.msra.mxu0 %v4913
    %5022 = vmatprep.subr.mxu0 0.0
    %5023 = vmatpush1.msra.mxu0 %v4914
    %5024 = vmatprep.mubr.f32.mxu0 %v4880
    %5025 = vmatmul.mubr.f32.gmra.mrb[0].mxu0 %v4879
    %v5026 = vpop.f32.mrb[0].mxu0
    %v5027 = vadd.f32 %v4951, %v5026
    %v5028 = vpop.f32.mrb[0].mxu0
    %5029 = vdwg.mxu0
    %5030 = vmatprep.subr.mxu0 0.0
    %5031 = vmatpush1.msra.mxu0 %v4915
    %5032 = vmatprep.subr.mxu0 0.0
    %5033 = vmatpush1.msra.mxu0 %v4916
    %5034 = vmatprep.subr.mxu0 0.0
    %5035 = vmatpush1.msra.mxu0 %v4917
    %5036 = vmatprep.subr.mxu0 0.0
    %5037 = vmatpush1.msra.mxu0 %v4918
    %5038 = vmatprep.subr.mxu0 0.0
    %5039 = vmatpush1.msra.mxu0 %v4919
    %5040 = vmatprep.subr.mxu0 0.0
    %5041 = vmatpush1.msra.mxu0 %v4920
    %5042 = vmatprep.subr.mxu0 0.0
    %5043 = vmatpush1.msra.mxu0 %v4921
    %5044 = vmatprep.subr.mxu0 0.0
    %5045 = vmatpush1.msra.mxu0 %v4922
    %5046 = vmatprep.subr.mxu0 0.0
    %5047 = vmatpush1.msra.mxu0 %v4923
    %5048 = vmatprep.subr.mxu0 0.0
    %5049 = vmatpush1.msra.mxu0 %v4924
    %5050 = vmatprep.subr.mxu0 0.0
    %5051 = vmatpush1.msra.mxu0 %v4925
    %5052 = vmatprep.subr.mxu0 0.0
    %5053 = vmatpush1.msra.mxu0 %v4926
    %5054 = vmatprep.subr.mxu0 0.0
    %5055 = vmatpush1.msra.mxu0 %v4927
    %5056 = vmatprep.subr.mxu0 0.0
    %5057 = vmatpush1.msra.mxu0 %v4928
    %5058 = vmatprep.subr.mxu0 0.0
    %5059 = vmatpush1.msra.mxu0 %v4929
    %5060 = vmatprep.subr.mxu0 0.0
    %5061 = vmatpush1.msra.mxu0 %v4930
    %5062 = vmatprep.subr.mxu0 0.0
    %5063 = vmatpush1.msra.mxu0 %v4931
    %5064 = vmatprep.subr.mxu0 0.0
    %5065 = vmatpush1.msra.mxu0 %v4932
    %5066 = vmatprep.subr.mxu0 0.0
    %5067 = vmatpush1.msra.mxu0 %v4933
    %5068 = vmatprep.subr.mxu0 0.0
    %5069 = vmatpush1.msra.mxu0 %v4934
    %5070 = vmatprep.subr.mxu0 0.0
    %5071 = vmatpush1.msra.mxu0 %v4935
    %5072 = vmatprep.subr.mxu0 0.0
    %5073 = vmatpush1.msra.mxu0 %v4936
    %5074 = vmatprep.subr.mxu0 0.0
    %5075 = vmatpush1.msra.mxu0 %v4937
    %5076 = vmatprep.subr.mxu0 0.0
    %5077 = vmatpush1.msra.mxu0 %v4938
    %5078 = vmatprep.subr.mxu0 0.0
    %5079 = vmatpush1.msra.mxu0 %v4939
    %5080 = vmatprep.subr.mxu0 0.0
    %5081 = vmatpush1.msra.mxu0 %v4940
    %5082 = vmatprep.subr.mxu0 0.0
    %5083 = vmatpush1.msra.mxu0 %v4941
    %5084 = vmatprep.subr.mxu0 0.0
    %5085 = vmatpush1.msra.mxu0 %v4942
    %5086 = vmatprep.subr.mxu0 0.0
    %5087 = vmatpush1.msra.mxu0 %v4943
    %5088 = vmatprep.subr.mxu0 0.0
    %5089 = vmatpush1.msra.mxu0 %v4944
    %5090 = vmatprep.subr.mxu0 0.0
    %5091 = vmatpush1.msra.mxu0 %v4958
    %5092 = vmatprep.subr.mxu0 0.0
    %5093 = vmatpush1.msra.mxu0 0.0
    %5094 = vmatprep.mubr.f32.mxu0 %v4955
    %5095 = vmatmul.mubr.f32.gmra.mrb[0].mxu0 %v4881
    %v5096 = vpop.f32.mrb[0].mxu0
    %v5097 = vadd.f32 %v5027, %v5096
    %v5098 = vpop.f32.mrb[0].mxu0
    %5099 = vdwg.mxu0
    %vm5100 = vcmask 74752
    %v5101 = vsel %vm5100, %v5097, -inf
    %5102 = vmax.xlane.f32.xlu0 %v5101
    %v5103 = vpop.xlane.xlu0 %5102
    %v5104 = vsub.f32 %v5097, %v5103
    %v5105 = vmul.f32 %v5104, 1.442695
    %v5106 = vpow.pop %v5105
    %v5107 = vsel %vm5100, %v5106, 0.0
    %5108 = vadd.xlane.f32.xlu0 %v5107
    %v5109 = vpop.xlane.xlu0 %5108
    %v5110 = vlog2.pop %v5109
    %v5111 = vmul.f32 %v5110, 0.6931472
    %v5112 = vsub.f32 %v5104, %v5111
    %5113 = vst.msk [vmem:[#allocation13] sm:$0x3] %vm5100, %v5112
    // Predicated region
    $region62: #{net_forward.1} parent=1 // pred_check
      _
    $region63: #{net_forward.1} parent=1 // pred_check_branch
      %5115 = sbr.rel (0) target = $region65
    $region64: #{net_forward.1} parent=1 // pred_region
      %s5117 = ssub.s32 32, 32
      %5118 = vsyncadd [#allocation4], %s5117
      %s5120 = sshll.u32 [#allocation13], 4
      %s5121 = int_to_ptr.vmem [resolvable:$true] %s5120
      %5123 = dma.vmem_to_hbm [thread:$0]  %s5121, 32, %s9, [#allocation4]
    $region65: #{net_forward.1} parent=1 // pred_fallthru
      _
    // Predicated region
    $region66: #{net_forward.1} parent=1 // pred_check
      _
    $region67: #{net_forward.1} parent=1 // pred_check_branch
      %5125 = sbr.rel (0) target = $region69
    $region68: #{net_forward.1} parent=1 // pred_region
      %5126 = dma.done [#allocation4], 32
    $region69: #{net_forward.1} parent=1 // pred_fallthru
      _
    %5127 = vsyncpa [#allocation3], 1
    %5128 = vsyncpa [#allocation6], 1
    %5129 = vsyncpa [#allocation9], 1
    %5130 = vsyncpa [#allocation12], 1
    %5131 = vsyncpa [#allocation4], 1

</llo_original>
